<compile_context>
chip_gen: v5e
topology: v5e:2x2
jax: 0.10.0
libtpu: 0.0.40
codegen_flags: <defaults>
</compile_context>

<pallas_src>
import functools
import math

import jax
import jax.numpy as jnp
from jax.experimental import pallas as pl
from jax.experimental.pallas import tpu as pltpu

LN_EPS = 1e-5                       # torch.nn.LayerNorm default


def _default_vmem_limit():
    # v5e / v6e: 128 MiB VMEM per TensorCore -> 96 MiB scoped budget.
    # v7x: 64 MiB per TensorCore -> 48 MiB so weight double-buffering still fits.
    # Unknown generation: leave the compiler default.
    try:
        kind = jax.devices()[0].device_kind.lower()
    except Exception:
        return None
    if "v5" in kind or "v6" in kind:
        return 96 * 1024 * 1024
    if "v7" in kind:
        return 48 * 1024 * 1024
    return None


VMEM_LIMIT = _default_vmem_limit()


# ----------------------------- in-kernel math ------------------------------

def _erf(x):
    # Abramowitz & Stegun 7.1.26 polynomial erf (|err| < 1.5e-7); exp() lands on
    # the EUP slot.
    p = 0.3275911
    a1, a2, a3, a4, a5 = (0.254829592, -0.284496736, 1.421413741,
                          -1.453152027, 1.061405429)
    sgn = jnp.where(x >= 0.0, 1.0, -1.0)
    ax = jnp.abs(x)
    t = 1.0 / (1.0 + p * ax)
    poly = ((((a5 * t + a4) * t + a3) * t + a2) * t + a1) * t
    return sgn * (1.0 - poly * jnp.exp(-ax * ax))


def _gelu(x):
    # exact (erf-based) GELU, matching torch F.gelu default
    return 0.5 * x * (1.0 + _erf(x * (1.0 / math.sqrt(2.0))))


def _layernorm(x, gamma, beta):
    mean = jnp.mean(x, axis=-1, keepdims=True)
    var = jnp.mean(jnp.square(x - mean), axis=-1, keepdims=True)
    return (x - mean) * jax.lax.rsqrt(var + LN_EPS) * gamma + beta


# ------------------------------- kernels -----------------------------------

def embed_ln_kernel(x_ref, g_ref, b_ref, o_ref):
    # x_ref: (tm, H) token tile of the summed embeddings
    o_ref[...] = _layernorm(x_ref[...], g_ref[...], b_ref[...])


def bert_layer_stack_kernel(num_heads, seq_len,
                            x_ref, wqkv_ref, bqkv_ref, wo_ref, bo_ref,
                            g1_ref, be1_ref, w1_ref, b1_ref, w2_ref, b2_ref,
                            g2_ref, be2_ref, o_ref):
    """One (batch-block, layer) grid step of the whole encoder stack.

    Grid = (batch_blocks, L) with L LAST.  The output block index depends only
    on the batch axis, so the activations stay resident in VMEM across the
    sequential ("arbitrary") layer axis while per-layer weights (indexed by the
    layer axis) pipeline ahead.  Do NOT reorder the grid to (L, batch): the
    carried-activation pattern relies on the layer axis being innermost.
    """
    tm, H = o_ref.shape
    S = seq_len
    bb = tm // S                     # batch elements folded into this block
    nh = num_heads
    hs = H // nh
    scale = 1.0 / math.sqrt(hs)

    @pl.when(pl.program_id(1) == 0)
    def _():
        o_ref[...] = x_ref[...]      # seed resident activations from embeddings

    x = o_ref[...]                   # (tm, H) fp32, carried across layers
    xb = x.astype(jnp.bfloat16)

    # ---- fused QKV projection: one lane-dense (tm,H) @ (H,3H) MXU pass ----
    qkv = jnp.dot(xb, wqkv_ref[...],
                  preferred_element_type=jnp.float32) + bqkv_ref[...]   # (tm, 3H)

    # ---- per-batch-element attention (q/k/v sliced at H-aligned offsets) ----
    ctx_rows = []
    for b in range(bb):                               # static, small
        r0 = b * S
        q = (qkv[r0:r0 + S, 0:H] * scale).astype(jnp.bfloat16)   # scale folded in
        k = qkv[r0:r0 + S, H:2 * H].astype(jnp.bfloat16)
        v = qkv[r0:r0 + S, 2 * H:3 * H].astype(jnp.bfloat16)
        parts = []
        for h in range(nh):                           # static per-head loop
            c0 = h * hs
            qh = q[:, c0:c0 + hs]
            kh = k[:, c0:c0 + hs]
            vh = v[:, c0:c0 + hs]
            s = jnp.einsum('qd,kd->qk', qh, kh,
                           preferred_element_type=jnp.float32)    # (S, S)
            s = s - jnp.max(s, axis=-1, keepdims=True)            # softmax over keys
            e = jnp.exp(s)
            p = e * pl.reciprocal(jnp.sum(e, axis=-1, keepdims=True), approx=True)
            parts.append(jnp.dot(p.astype(jnp.bfloat16), vh,
                                 preferred_element_type=jnp.float32))  # (S, hs)
        ctx_rows.append(jnp.concatenate(parts, axis=-1))          # (S, H)
    ctx = jnp.concatenate(ctx_rows, axis=0) if bb > 1 else ctx_rows[0]  # (tm, H)

    # ---- output projection: single (tm,H) @ (H,H) contraction (K = H) ----
    attn = jnp.dot(ctx.astype(jnp.bfloat16), wo_ref[...],
                   preferred_element_type=jnp.float32) + bo_ref[...]

    # ---- residual + LN, GELU MLP, residual + LN (elementwise in fp32) ----
    h1 = _layernorm(x + attn, g1_ref[...], be1_ref[...])
    m = _gelu(jnp.dot(h1.astype(jnp.bfloat16), w1_ref[...],
                      preferred_element_type=jnp.float32) + b1_ref[...])
    m = jnp.dot(m.astype(jnp.bfloat16), w2_ref[...],
                preferred_element_type=jnp.float32) + b2_ref[...]
    o_ref[...] = _layernorm(m + h1, g2_ref[...], be2_ref[...])


def bert_head_kernel(x_ref, wl_ref, bl_ref, g_ref, be_ref, wu_ref, bu_ref,
                     o_ref, nrm_ref):
    # Grid = (token_tiles, vocab_tiles) with the vocab axis innermost and
    # "arbitrary": dense+GELU+LayerNorm is computed once per token tile (at
    # vocab tile 0), cached in VMEM scratch, and reused for every vocab tile.
    @pl.when(pl.program_id(1) == 0)
    def _():
        enc = jnp.dot(x_ref[...].astype(jnp.bfloat16), wl_ref[...],
                      preferred_element_type=jnp.float32) + bl_ref[...]
        nrm_ref[...] = _layernorm(_gelu(enc), g_ref[...], be_ref[...])
    o_ref[...] = jnp.dot(nrm_ref[...].astype(jnp.bfloat16), wu_ref[...],
                         preferred_element_type=jnp.float32) + bu_ref[...]


# ------------------------------ wrappers ------------------------------------

def _embed_ln(summed, gamma, beta, *, tokens_per_block=512):
    M, H = summed.shape
    tm = M if M <= tokens_per_block else tokens_per_block
    return pl.pallas_call(
        embed_ln_kernel,
        out_shape=jax.ShapeDtypeStruct((M, H), jnp.float32),
        grid=(pl.cdiv(M, tm),),
        in_specs=[pl.BlockSpec((tm, H), lambda i: (i, 0)),
                  pl.BlockSpec((1, H), lambda i: (0, 0)),
                  pl.BlockSpec((1, H), lambda i: (0, 0))],
        out_specs=pl.BlockSpec((tm, H), lambda i: (i, 0)),
        compiler_params=pltpu.CompilerParams(
            dimension_semantics=("parallel",),
            vmem_limit_bytes=VMEM_LIMIT),
    )(summed, gamma, beta)


def _pick_batch_block(B, S, H, budget_bytes):
    # Largest divisor of B whose resident fp32 activation block fits the budget
    # (keeps each layer's weights fetched from HBM exactly once when bb == B).
    for bb in range(B, 0, -1):
        if B % bb != 0:
            continue
        if bb * S * H * 4 > budget_bytes:
            continue
        if bb != B and (bb * S) % 8 != 0:   # keep sublane-aligned blocks
            continue
        return bb
    return 1


def _encoder_stack(x2, stack, num_heads, seq_len, *, act_block_bytes=8 << 20):
    M, H = x2.shape
    L = stack['w_qkv'].shape[0]
    I = stack['w1'].shape[-1]
    B = M // seq_len
    bb = _pick_batch_block(B, seq_len, H, act_block_bytes)
    tm = bb * seq_len

    kernel = functools.partial(bert_layer_stack_kernel, num_heads, seq_len)

    def wspec(*shape):
        # per-layer weight: constant across the batch axis, indexed by layer axis
        n = len(shape)
        return pl.BlockSpec((None,) + shape, lambda i, l, _n=n: (l,) + (0,) * _n)

    # TODO(synk): for BERT-large on v7x (64 MiB VMEM) tile w1/w2 over the
    # intermediate dim (extra grid axis) and consider fp8 weight storage.
    in_specs = [
        pl.BlockSpec((tm, H), lambda i, l: (i, 0)),   # embeddings (seed)
        wspec(H, 3 * H), wspec(1, 3 * H),             # fused QKV weight / bias
        wspec(H, H), wspec(1, H),                     # output-proj weight / bias
        wspec(1, H), wspec(1, H),                     # LN1 gamma, beta
        wspec(H, I), wspec(1, I),                     # MLP w1, b1
        wspec(I, H), wspec(1, H),                     # MLP w2, b2
        wspec(1, H), wspec(1, H),                     # LN2 gamma, beta
    ]
    out_spec = pl.BlockSpec((tm, H), lambda i, l: (i, 0))

    return pl.pallas_call(
        kernel,
        out_shape=jax.ShapeDtypeStruct((M, H), jnp.float32),
        grid=(M // tm, L),                             # layer axis LAST
        in_specs=in_specs,
        out_specs=out_spec,
        compiler_params=pltpu.CompilerParams(
            dimension_semantics=("parallel", "arbitrary"),
            vmem_limit_bytes=VMEM_LIMIT),
    )(x2, stack['w_qkv'], stack['b_qkv'], stack['w_out'], stack['b_out'],
      stack['ln1_g'], stack['ln1_b'], stack['w1'], stack['b1'],
      stack['w2'], stack['b2'], stack['ln2_g'], stack['ln2_b'])


def _lm_head(x2, lin_w, lin_b, ln_g, ln_b, un_w, un_b, *,
             tokens_per_block=512, vocab_per_block=2048):
    M, H = x2.shape
    V = un_w.shape[-1]
    tm = M if M <= tokens_per_block else tokens_per_block
    tv = V if V <= vocab_per_block else vocab_per_block
    return pl.pallas_call(
        bert_head_kernel,
        out_shape=jax.ShapeDtypeStruct((M, V), jnp.float32),
        grid=(pl.cdiv(M, tm), pl.cdiv(V, tv)),         # vocab axis innermost
        in_specs=[pl.BlockSpec((tm, H), lambda i, j: (i, 0)),
                  pl.BlockSpec((H, H), lambda i, j: (0, 0)),
                  pl.BlockSpec((1, H), lambda i, j: (0, 0)),
                  pl.BlockSpec((1, H), lambda i, j: (0, 0)),
                  pl.BlockSpec((1, H), lambda i, j: (0, 0)),
                  pl.BlockSpec((H, tv), lambda i, j: (0, j)),
                  pl.BlockSpec((1, tv), lambda i, j: (0, j))],
        out_specs=pl.BlockSpec((tm, tv), lambda i, j: (i, j)),
        scratch_shapes=[pltpu.VMEM((tm, H), jnp.float32)],
        compiler_params=pltpu.CompilerParams(
            dimension_semantics=("parallel", "arbitrary"),
            vmem_limit_bytes=VMEM_LIMIT),
    )(x2, lin_w, lin_b, ln_g, ln_b, un_w, un_b)


# --------------------------- parameter building -----------------------------

def init_bert_params(key, *, vocab_size, hidden_size, max_position_embeddings,
                     type_vocab_size, intermediate_size, num_layers, num_heads):
    H, I, nh = hidden_size, intermediate_size, num_heads
    assert H % nh == 0
    keys = iter(jax.random.split(key, 32 + num_layers * 16))
    nrm = lambda shape, s=0.02: s * jax.random.normal(next(keys), shape, jnp.float32)

    params = {
        'tok_emb': nrm((vocab_size, H)),
        'pos_emb': nrm((max_position_embeddings, H)),
        'type_emb': nrm((type_vocab_size, H)),
        'emb_g': 1.0 + nrm((1, H), 0.01),
        'emb_b': nrm((1, H), 0.01),
        'lin_w': nrm((H, H)).astype(jnp.bfloat16), 'lin_b': nrm((1, H)),
        'ln_g': 1.0 + nrm((1, H), 0.01), 'ln_b': nrm((1, H), 0.01),
        'unemb_w': nrm((H, vocab_size)).astype(jnp.bfloat16),
        'unemb_b': nrm((1, vocab_size)),
    }

    names = ('w_qkv', 'b_qkv', 'w_out', 'b_out', 'ln1_g', 'ln1_b',
             'w1', 'b1', 'w2', 'b2', 'ln2_g', 'ln2_b')
    per_layer = {n: [] for n in names}
    for _ in range(num_layers):
        wq, wk, wv, wo = (nrm((H, H)) for _ in range(4))
        bq, bk, bv, bo = (nrm((H,)) for _ in range(4))
        # fused QKV weight packed on the lane dim: (H, 3H) = [Wq | Wk | Wv]
        per_layer['w_qkv'].append(
            jnp.concatenate([wq, wk, wv], axis=1).astype(jnp.bfloat16))
        per_layer['b_qkv'].append(jnp.concatenate([bq, bk, bv]).reshape(1, 3 * H))
        per_layer['w_out'].append(wo.astype(jnp.bfloat16))        # (H, H)
        per_layer['b_out'].append(bo.reshape(1, H))
        per_layer['ln1_g'].append(1.0 + nrm((1, H), 0.01))
        per_layer['ln1_b'].append(nrm((1, H), 0.01))
        per_layer['w1'].append(nrm((H, I)).astype(jnp.bfloat16))
        per_layer['b1'].append(nrm((1, I)))
        per_layer['w2'].append(nrm((I, H)).astype(jnp.bfloat16))
        per_layer['b2'].append(nrm((1, H)))
        per_layer['ln2_g'].append(1.0 + nrm((1, H), 0.01))
        per_layer['ln2_b'].append(nrm((1, H), 0.01))
    params['stack'] = {k: jnp.stack(v) for k, v in per_layer.items()}
    return params


# -------------------------------- forward -----------------------------------

def bert_forward(params, input_ids, num_heads):
    B, S = input_ids.shape
    H = params['tok_emb'].shape[-1]
    # token_type_ids = zeros_like(input_ids)  (as in Bert.forward)
    # TODO(synk): embedding-table gathers stay as plain-JAX glue (not in-kernel).
    tok = jnp.take(params['tok_emb'], input_ids, axis=0)
    typ = jnp.take(params['type_emb'], jnp.zeros_like(input_ids), axis=0)
    pos = params['pos_emb'][:S][None, :, :]
    summed = (tok + typ + pos).reshape(B * S, H)               # token-major [B*S, H]

    x = _embed_ln(summed, params['emb_g'], params['emb_b'])    # LN kernel
    # dropout(p=0.0) -> identity

    x = _encoder_stack(x, params['stack'], num_heads, S)       # all layers, one call

    logits = _lm_head(x, params['lin_w'], params['lin_b'],
                      params['ln_g'], params['ln_b'],
                      params['unemb_w'], params['unemb_b'])
    return logits.reshape(B, S, -1)


# -------------------------------- main --------------------------------------

if __name__ == "__main__":
    # small BERT config (H and V chosen as multiples of 128 for lane-dense stores)
    vocab_size = 128
    hidden_size = 128
    max_position_embeddings = 16
    type_vocab_size = 2
    dropout = 0.0            # identity in forward
    intermediate_size = 256
    num_heads = 4
    num_layers = 2
    batch, seq = 2, 8

    key = jax.random.PRNGKey(0)
    k_params, k_ids = jax.random.split(key)
    params = init_bert_params(
        k_params,
        vocab_size=vocab_size, hidden_size=hidden_size,
        max_position_embeddings=max_position_embeddings,
        type_vocab_size=type_vocab_size,
        intermediate_size=intermediate_size,
        num_layers=num_layers, num_heads=num_heads)

    input_ids = jax.random.randint(k_ids, (batch, seq), 0, vocab_size,
                                   dtype=jnp.int32)

    fwd = jax.jit(functools.partial(bert_forward, num_heads=num_heads))
    out = fwd(params, input_ids)
    jax.block_until_ready(out)
    assert out.shape == (batch, seq, vocab_size)
    assert out.dtype == jnp.float32
    assert bool(jnp.all(jnp.isfinite(out)))
    print("KERNEL_OK")
</pallas_src>

<mosaic_0001>
module attributes {stable_mosaic.version = 11 : i64} {
  func.func @embed_ln_kernel(%arg0: i32, %arg1: memref<16x128xf32, #tpu.memory_space<vmem>>, %arg2: memref<1x128xf32, #tpu.memory_space<vmem>>, %arg3: memref<1x128xf32, #tpu.memory_space<vmem>>, %arg4: memref<16x128xf32, #tpu.memory_space<vmem>>) attributes {dimension_semantics = [#tpu.dimension_semantics<parallel>], iteration_bounds = array<i64: 1>, scalar_prefetch = 0 : i64, scratch_operands = 0 : i64, tpu.core_type = #tpu.core_type<tc>, window_params = [{transform_indices = @transform_0, window_bounds = array<i64: 16, 128>}, {pipeline_mode = #tpu.pipeline_mode<synchronous>, transform_indices = @transform_1, window_bounds = array<i64: 1, 128>}, {pipeline_mode = #tpu.pipeline_mode<synchronous>, transform_indices = @transform_2, window_bounds = array<i64: 1, 128>}, {transform_indices = @transform_3, window_bounds = array<i64: 16, 128>}]} {
    %c0 = arith.constant 0 : index
    %c0_0 = arith.constant 0 : index
    %0 = vector.load %arg1[%c0, %c0_0] : memref<16x128xf32, #tpu.memory_space<vmem>>, vector<16x128xf32>
    %c0_1 = arith.constant 0 : index
    %c0_2 = arith.constant 0 : index
    %1 = vector.load %arg2[%c0_1, %c0_2] : memref<1x128xf32, #tpu.memory_space<vmem>>, vector<1x128xf32>
    %c0_3 = arith.constant 0 : index
    %c0_4 = arith.constant 0 : index
    %2 = vector.load %arg3[%c0_3, %c0_4] : memref<1x128xf32, #tpu.memory_space<vmem>>, vector<1x128xf32>
    %cst = arith.constant dense<0.000000e+00> : vector<16xf32>
    %3 = vector.multi_reduction <add>, %0, %cst [1] : vector<16x128xf32> to vector<16xf32>
    %4 = vector.shape_cast %3 : vector<16xf32> to vector<16x1xf32>
    %cst_5 = arith.constant 1.280000e+02 : f32
    %5 = vector.broadcast %cst_5 : f32 to vector<16x1xf32>
    %6 = arith.divf %4, %5 : vector<16x1xf32>
    %7 = vector.broadcast %6 : vector<16x1xf32> to vector<16x128xf32>
    %8 = arith.subf %0, %7 : vector<16x128xf32>
    %9 = arith.mulf %8, %8 : vector<16x128xf32>
    %cst_6 = arith.constant dense<0.000000e+00> : vector<16xf32>
    %10 = vector.multi_reduction <add>, %9, %cst_6 [1] : vector<16x128xf32> to vector<16xf32>
    %11 = vector.shape_cast %10 : vector<16xf32> to vector<16x1xf32>
    %cst_7 = arith.constant 1.280000e+02 : f32
    %12 = vector.broadcast %cst_7 : f32 to vector<16x1xf32>
    %13 = arith.divf %11, %12 : vector<16x1xf32>
    %14 = vector.broadcast %6 : vector<16x1xf32> to vector<16x128xf32>
    %15 = arith.subf %0, %14 : vector<16x128xf32>
    %cst_8 = arith.constant 9.99999974E-6 : f32
    %16 = vector.broadcast %cst_8 : f32 to vector<16x1xf32>
    %17 = arith.addf %13, %16 : vector<16x1xf32>
    %18 = math.rsqrt %17 : vector<16x1xf32>
    %19 = vector.broadcast %18 : vector<16x1xf32> to vector<16x128xf32>
    %20 = arith.mulf %15, %19 : vector<16x128xf32>
    %21 = vector.broadcast %1 : vector<1x128xf32> to vector<16x128xf32>
    %22 = arith.mulf %20, %21 : vector<16x128xf32>
    %23 = vector.broadcast %2 : vector<1x128xf32> to vector<16x128xf32>
    %24 = arith.addf %22, %23 : vector<16x128xf32>
    %c0_9 = arith.constant 0 : index
    %c0_10 = arith.constant 0 : index
    %25 = vector.load %arg4[%c0_9, %c0_10] : memref<16x128xf32, #tpu.memory_space<vmem>>, vector<16x128xf32>
    tpu.vector_store %arg4[%c0_9, %c0_10], %24 {strides = array<i32>} : memref<16x128xf32, #tpu.memory_space<vmem>>, vector<16x128xf32>,
    return
  }
  func.func @transform_0(%arg0: i32) -> (i32, i32) {
    %c0_i32 = arith.constant 0 : i32
    %c0_i32_0 = arith.constant 0 : i32
    return %arg0, %c0_i32 : i32, i32
  }
  func.func @transform_1(%arg0: i32) -> (i32, i32) {
    %c0_i32 = arith.constant 0 : i32
    %c0_i32_0 = arith.constant 0 : i32
    %c0_i32_1 = arith.constant 0 : i32
    return %c0_i32, %c0_i32_0 : i32, i32
  }
  func.func @transform_2(%arg0: i32) -> (i32, i32) {
    %c0_i32 = arith.constant 0 : i32
    %c0_i32_0 = arith.constant 0 : i32
    %c0_i32_1 = arith.constant 0 : i32
    return %c0_i32, %c0_i32_0 : i32, i32
  }
  func.func @transform_3(%arg0: i32) -> (i32, i32) {
    %c0_i32 = arith.constant 0 : i32
    %c0_i32_0 = arith.constant 0 : i32
    return %arg0, %c0_i32 : i32, i32
  }
}

module attributes {stable_mosaic.version = 11 : i64} {
  func.func @bert_layer_stack_kernel(%arg0: i32, %arg1: i32, %arg2: memref<16x128xf32, #tpu.memory_space<vmem>>, %arg3: memref<1x128x384xbf16, #tpu.memory_space<vmem>>, %arg4: memref<1x1x384xf32, #tpu.memory_space<vmem>>, %arg5: memref<1x128x128xbf16, #tpu.memory_space<vmem>>, %arg6: memref<1x1x128xf32, #tpu.memory_space<vmem>>, %arg7: memref<1x1x128xf32, #tpu.memory_space<vmem>>, %arg8: memref<1x1x128xf32, #tpu.memory_space<vmem>>, %arg9: memref<1x128x256xbf16, #tpu.memory_space<vmem>>, %arg10: memref<1x1x256xf32, #tpu.memory_space<vmem>>, %arg11: memref<1x256x128xbf16, #tpu.memory_space<vmem>>, %arg12: memref<1x1x128xf32, #tpu.memory_space<vmem>>, %arg13: memref<1x1x128xf32, #tpu.memory_space<vmem>>, %arg14: memref<1x1x128xf32, #tpu.memory_space<vmem>>, %arg15: memref<16x128xf32, #tpu.memory_space<vmem>>) attributes {dimension_semantics = [#tpu.dimension_semantics<parallel>, #tpu.dimension_semantics<arbitrary>], iteration_bounds = array<i64: 1, 2>, scalar_prefetch = 0 : i64, scratch_operands = 0 : i64, tpu.core_type = #tpu.core_type<tc>, window_params = [{transform_indices = @transform_0, window_bounds = array<i64: 16, 128>}, {transform_indices = @transform_1, window_bounds = array<i64: 1, 128, 384>}, {transform_indices = @transform_2, window_bounds = array<i64: 1, 1, 384>}, {transform_indices = @transform_3, window_bounds = array<i64: 1, 128, 128>}, {transform_indices = @transform_4, window_bounds = array<i64: 1, 1, 128>}, {transform_indices = @transform_5, window_bounds = array<i64: 1, 1, 128>}, {transform_indices = @transform_6, window_bounds = array<i64: 1, 1, 128>}, {transform_indices = @transform_7, window_bounds = array<i64: 1, 128, 256>}, {transform_indices = @transform_8, window_bounds = array<i64: 1, 1, 256>}, {transform_indices = @transform_9, window_bounds = array<i64: 1, 256, 128>}, {transform_indices = @transform_10, window_bounds = array<i64: 1, 1, 128>}, {transform_indices = @transform_11, window_bounds = array<i64: 1, 1, 128>}, {transform_indices = @transform_12, window_bounds = array<i64: 1, 1, 128>}, {transform_indices = @transform_13, window_bounds = array<i64: 16, 128>}]} {
    %c0_i32 = arith.constant 0 : i32
    %0 = arith.cmpi eq, %arg1, %c0_i32 : i32
    %1 = arith.extui %0 : i1 to i32
    %c0_i32_0 = arith.constant 0 : i32
    %2 = arith.cmpi ne, %1, %c0_i32_0 : i32
    scf.if %2 {
      %c0_103 = arith.constant 0 : index
      %c0_104 = arith.constant 0 : index
      %279 = vector.load %arg2[%c0_103, %c0_104] : memref<16x128xf32, #tpu.memory_space<vmem>>, vector<16x128xf32>
      %c0_105 = arith.constant 0 : index
      %c0_106 = arith.constant 0 : index
      %280 = vector.load %arg15[%c0_105, %c0_106] : memref<16x128xf32, #tpu.memory_space<vmem>>, vector<16x128xf32>
      tpu.vector_store %arg15[%c0_105, %c0_106], %279 {strides = array<i32>} : memref<16x128xf32, #tpu.memory_space<vmem>>, vector<16x128xf32>,
    } else {
    }
    %c0 = arith.constant 0 : index
    %c0_1 = arith.constant 0 : index
    %3 = vector.load %arg15[%c0, %c0_1] : memref<16x128xf32, #tpu.memory_space<vmem>>, vector<16x128xf32>
    %4 = arith.truncf %3 : vector<16x128xf32> to vector<16x128xbf16>
    %c0_2 = arith.constant 0 : index
    %c0_3 = arith.constant 0 : index
    %c0_4 = arith.constant 0 : index
    %5 = vector.load %arg3[%c0_2, %c0_3, %c0_4] : memref<1x128x384xbf16, #tpu.memory_space<vmem>>, vector<1x128x384xbf16>
    %6 = vector.shape_cast %5 : vector<1x128x384xbf16> to vector<128x384xbf16>
    %cst = arith.constant dense<0.000000e+00> : vector<16x384xf32>
    %7 = tpu.matmul %4, %6, %cst {dimension_numbers = #tpu.dot_dimension_numbers<[1], [0], [0], [1], [0, 0, 1, 1], [], []>} : vector<16x128xbf16>, vector<128x384xbf16>, vector<16x384xf32> -> vector<16x384xf32>
    %c0_5 = arith.constant 0 : index
    %c0_6 = arith.constant 0 : index
    %c0_7 = arith.constant 0 : index
    %8 = vector.load %arg4[%c0_5, %c0_6, %c0_7] : memref<1x1x384xf32, #tpu.memory_space<vmem>>, vector<1x1x384xf32>
    %9 = vector.shape_cast %8 : vector<1x1x384xf32> to vector<1x384xf32>
    %10 = vector.broadcast %9 : vector<1x384xf32> to vector<16x384xf32>
    %11 = arith.addf %7, %10 : vector<16x384xf32>
    %12 = vector.extract_strided_slice %11 {offsets = [0, 0], sizes = [8, 128], strides = [1, 1]} : vector<16x384xf32> to vector<8x128xf32>
    %cst_8 = arith.constant 0.176776692 : f32
    %13 = vector.broadcast %cst_8 : f32 to vector<8x128xf32>
    %14 = arith.mulf %12, %13 : vector<8x128xf32>
    %15 = arith.truncf %14 : vector<8x128xf32> to vector<8x128xbf16>
    %16 = vector.extract_strided_slice %11 {offsets = [0, 128], sizes = [8, 128], strides = [1, 1]} : vector<16x384xf32> to vector<8x128xf32>
    %17 = arith.truncf %16 : vector<8x128xf32> to vector<8x128xbf16>
    %18 = vector.extract_strided_slice %11 {offsets = [0, 256], sizes = [8, 128], strides = [1, 1]} : vector<16x384xf32> to vector<8x128xf32>
    %19 = arith.truncf %18 : vector<8x128xf32> to vector<8x128xbf16>
    %20 = vector.extract_strided_slice %15 {offsets = [0, 0], sizes = [8, 32], strides = [1, 1]} : vector<8x128xbf16> to vector<8x32xbf16>
    %21 = vector.extract_strided_slice %17 {offsets = [0, 0], sizes = [8, 32], strides = [1, 1]} : vector<8x128xbf16> to vector<8x32xbf16>
    %22 = vector.extract_strided_slice %19 {offsets = [0, 0], sizes = [8, 32], strides = [1, 1]} : vector<8x128xbf16> to vector<8x32xbf16>
    "tpu.trace_start"() <{level = 10 : i32, message = "qd,kd->qk"}> : () -> ()
    %cst_9 = arith.constant dense<0.000000e+00> : vector<8x8xf32>
    %23 = tpu.matmul %20, %21, %cst_9 {dimension_numbers = #tpu.dot_dimension_numbers<[1], [1], [0], [0], [0, 0, 1, 0], [], []>} : vector<8x32xbf16>, vector<8x32xbf16>, vector<8x8xf32> -> vector<8x8xf32>
    "tpu.trace_stop"() : () -> ()
    %cst_10 = arith.constant dense<0xFF800000> : vector<8xf32>
    %24 = vector.multi_reduction <maximumf>, %23, %cst_10 [1] : vector<8x8xf32> to vector<8xf32>
    %25 = vector.shape_cast %24 : vector<8xf32> to vector<8x1xf32>
    %26 = vector.broadcast %25 : vector<8x1xf32> to vector<8x8xf32>
    %27 = arith.subf %23, %26 : vector<8x8xf32>
    %28 = math.exp %27 : vector<8x8xf32>
    %cst_11 = arith.constant dense<0.000000e+00> : vector<8xf32>
    %29 = vector.multi_reduction <add>, %28, %cst_11 [1] : vector<8x8xf32> to vector<8xf32>
    %30 = vector.shape_cast %29 : vector<8xf32> to vector<8x1xf32>
    %31 = tpu.reciprocal %30 {approx = true} : vector<8x1xf32> -> vector<8x1xf32>
    %32 = vector.broadcast %31 : vector<8x1xf32> to vector<8x8xf32>
    %33 = arith.mulf %28, %32 : vector<8x8xf32>
    %34 = arith.truncf %33 : vector<8x8xf32> to vector<8x8xbf16>
    %cst_12 = arith.constant dense<0.000000e+00> : vector<8x32xf32>
    %35 = tpu.matmul %34, %22, %cst_12 {dimension_numbers = #tpu.dot_dimension_numbers<[1], [0], [0], [1], [0, 0, 1, 1], [], []>} : vector<8x8xbf16>, vector<8x32xbf16>, vector<8x32xf32> -> vector<8x32xf32>
    %36 = vector.extract_strided_slice %15 {offsets = [0, 32], sizes = [8, 32], strides = [1, 1]} : vector<8x128xbf16> to vector<8x32xbf16>
    %37 = vector.extract_strided_slice %17 {offsets = [0, 32], sizes = [8, 32], strides = [1, 1]} : vector<8x128xbf16> to vector<8x32xbf16>
    %38 = vector.extract_strided_slice %19 {offsets = [0, 32], sizes = [8, 32], strides = [1, 1]} : vector<8x128xbf16> to vector<8x32xbf16>
    "tpu.trace_start"() <{level = 10 : i32, message = "qd,kd->qk"}> : () -> ()
    %cst_13 = arith.constant dense<0.000000e+00> : vector<8x8xf32>
    %39 = tpu.matmul %36, %37, %cst_13 {dimension_numbers = #tpu.dot_dimension_numbers<[1], [1], [0], [0], [0, 0, 1, 0], [], []>} : vector<8x32xbf16>, vector<8x32xbf16>, vector<8x8xf32> -> vector<8x8xf32>
    "tpu.trace_stop"() : () -> ()
    %cst_14 = arith.constant dense<0xFF800000> : vector<8xf32>
    %40 = vector.multi_reduction <maximumf>, %39, %cst_14 [1] : vector<8x8xf32> to vector<8xf32>
    %41 = vector.shape_cast %40 : vector<8xf32> to vector<8x1xf32>
    %42 = vector.broadcast %41 : vector<8x1xf32> to vector<8x8xf32>
    %43 = arith.subf %39, %42 : vector<8x8xf32>
    %44 = math.exp %43 : vector<8x8xf32>
    %cst_15 = arith.constant dense<0.000000e+00> : vector<8xf32>
    %45 = vector.multi_reduction <add>, %44, %cst_15 [1] : vector<8x8xf32> to vector<8xf32>
    %46 = vector.shape_cast %45 : vector<8xf32> to vector<8x1xf32>
    %47 = tpu.reciprocal %46 {approx = true} : vector<8x1xf32> -> vector<8x1xf32>
    %48 = vector.broadcast %47 : vector<8x1xf32> to vector<8x8xf32>
    %49 = arith.mulf %44, %48 : vector<8x8xf32>
    %50 = arith.truncf %49 : vector<8x8xf32> to vector<8x8xbf16>
    %cst_16 = arith.constant dense<0.000000e+00> : vector<8x32xf32>
    %51 = tpu.matmul %50, %38, %cst_16 {dimension_numbers = #tpu.dot_dimension_numbers<[1], [0], [0], [1], [0, 0, 1, 1], [], []>} : vector<8x8xbf16>, vector<8x32xbf16>, vector<8x32xf32> -> vector<8x32xf32>
    %52 = vector.extract_strided_slice %15 {offsets = [0, 64], sizes = [8, 32], strides = [1, 1]} : vector<8x128xbf16> to vector<8x32xbf16>
    %53 = vector.extract_strided_slice %17 {offsets = [0, 64], sizes = [8, 32], strides = [1, 1]} : vector<8x128xbf16> to vector<8x32xbf16>
    %54 = vector.extract_strided_slice %19 {offsets = [0, 64], sizes = [8, 32], strides = [1, 1]} : vector<8x128xbf16> to vector<8x32xbf16>
    "tpu.trace_start"() <{level = 10 : i32, message = "qd,kd->qk"}> : () -> ()
    %cst_17 = arith.constant dense<0.000000e+00> : vector<8x8xf32>
    %55 = tpu.matmul %52, %53, %cst_17 {dimension_numbers = #tpu.dot_dimension_numbers<[1], [1], [0], [0], [0, 0, 1, 0], [], []>} : vector<8x32xbf16>, vector<8x32xbf16>, vector<8x8xf32> -> vector<8x8xf32>
    "tpu.trace_stop"() : () -> ()
    %cst_18 = arith.constant dense<0xFF800000> : vector<8xf32>
    %56 = vector.multi_reduction <maximumf>, %55, %cst_18 [1] : vector<8x8xf32> to vector<8xf32>
    %57 = vector.shape_cast %56 : vector<8xf32> to vector<8x1xf32>
    %58 = vector.broadcast %57 : vector<8x1xf32> to vector<8x8xf32>
    %59 = arith.subf %55, %58 : vector<8x8xf32>
    %60 = math.exp %59 : vector<8x8xf32>
    %cst_19 = arith.constant dense<0.000000e+00> : vector<8xf32>
    %61 = vector.multi_reduction <add>, %60, %cst_19 [1] : vector<8x8xf32> to vector<8xf32>
    %62 = vector.shape_cast %61 : vector<8xf32> to vector<8x1xf32>
    %63 = tpu.reciprocal %62 {approx = true} : vector<8x1xf32> -> vector<8x1xf32>
    %64 = vector.broadcast %63 : vector<8x1xf32> to vector<8x8xf32>
    %65 = arith.mulf %60, %64 : vector<8x8xf32>
    %66 = arith.truncf %65 : vector<8x8xf32> to vector<8x8xbf16>
    %cst_20 = arith.constant dense<0.000000e+00> : vector<8x32xf32>
    %67 = tpu.matmul %66, %54, %cst_20 {dimension_numbers = #tpu.dot_dimension_numbers<[1], [0], [0], [1], [0, 0, 1, 1], [], []>} : vector<8x8xbf16>, vector<8x32xbf16>, vector<8x32xf32> -> vector<8x32xf32>
    %68 = vector.extract_strided_slice %15 {offsets = [0, 96], sizes = [8, 32], strides = [1, 1]} : vector<8x128xbf16> to vector<8x32xbf16>
    %69 = vector.extract_strided_slice %17 {offsets = [0, 96], sizes = [8, 32], strides = [1, 1]} : vector<8x128xbf16> to vector<8x32xbf16>
    %70 = vector.extract_strided_slice %19 {offsets = [0, 96], sizes = [8, 32], strides = [1, 1]} : vector<8x128xbf16> to vector<8x32xbf16>
    "tpu.trace_start"() <{level = 10 : i32, message = "qd,kd->qk"}> : () -> ()
    %cst_21 = arith.constant dense<0.000000e+00> : vector<8x8xf32>
    %71 = tpu.matmul %68, %69, %cst_21 {dimension_numbers = #tpu.dot_dimension_numbers<[1], [1], [0], [0], [0, 0, 1, 0], [], []>} : vector<8x32xbf16>, vector<8x32xbf16>, vector<8x8xf32> -> vector<8x8xf32>
    "tpu.trace_stop"() : () -> ()
    %cst_22 = arith.constant dense<0xFF800000> : vector<8xf32>
    %72 = vector.multi_reduction <maximumf>, %71, %cst_22 [1] : vector<8x8xf32> to vector<8xf32>
    %73 = vector.shape_cast %72 : vector<8xf32> to vector<8x1xf32>
    %74 = vector.broadcast %73 : vector<8x1xf32> to vector<8x8xf32>
    %75 = arith.subf %71, %74 : vector<8x8xf32>
    %76 = math.exp %75 : vector<8x8xf32>
    %cst_23 = arith.constant dense<0.000000e+00> : vector<8xf32>
    %77 = vector.multi_reduction <add>, %76, %cst_23 [1] : vector<8x8xf32> to vector<8xf32>
    %78 = vector.shape_cast %77 : vector<8xf32> to vector<8x1xf32>
    %79 = tpu.reciprocal %78 {approx = true} : vector<8x1xf32> -> vector<8x1xf32>
    %80 = vector.broadcast %79 : vector<8x1xf32> to vector<8x8xf32>
    %81 = arith.mulf %76, %80 : vector<8x8xf32>
    %82 = arith.truncf %81 : vector<8x8xf32> to vector<8x8xbf16>
    %cst_24 = arith.constant dense<0.000000e+00> : vector<8x32xf32>
    %83 = tpu.matmul %82, %70, %cst_24 {dimension_numbers = #tpu.dot_dimension_numbers<[1], [0], [0], [1], [0, 0, 1, 1], [], []>} : vector<8x8xbf16>, vector<8x32xbf16>, vector<8x32xf32> -> vector<8x32xf32>
    %84 = tpu.concatenate %35, %51, %67, %83 in 1 : vector<8x32xf32>, vector<8x32xf32>, vector<8x32xf32>, vector<8x32xf32> -> vector<8x128xf32>
    %85 = vector.extract_strided_slice %11 {offsets = [8, 0], sizes = [8, 128], strides = [1, 1]} : vector<16x384xf32> to vector<8x128xf32>
    %cst_25 = arith.constant 0.176776692 : f32
    %86 = vector.broadcast %cst_25 : f32 to vector<8x128xf32>
    %87 = arith.mulf %85, %86 : vector<8x128xf32>
    %88 = arith.truncf %87 : vector<8x128xf32> to vector<8x128xbf16>
    %89 = vector.extract_strided_slice %11 {offsets = [8, 128], sizes = [8, 128], strides = [1, 1]} : vector<16x384xf32> to vector<8x128xf32>
    %90 = arith.truncf %89 : vector<8x128xf32> to vector<8x128xbf16>
    %91 = vector.extract_strided_slice %11 {offsets = [8, 256], sizes = [8, 128], strides = [1, 1]} : vector<16x384xf32> to vector<8x128xf32>
    %92 = arith.truncf %91 : vector<8x128xf32> to vector<8x128xbf16>
    %93 = vector.extract_strided_slice %88 {offsets = [0, 0], sizes = [8, 32], strides = [1, 1]} : vector<8x128xbf16> to vector<8x32xbf16>
    %94 = vector.extract_strided_slice %90 {offsets = [0, 0], sizes = [8, 32], strides = [1, 1]} : vector<8x128xbf16> to vector<8x32xbf16>
    %95 = vector.extract_strided_slice %92 {offsets = [0, 0], sizes = [8, 32], strides = [1, 1]} : vector<8x128xbf16> to vector<8x32xbf16>
    "tpu.trace_start"() <{level = 10 : i32, message = "qd,kd->qk"}> : () -> ()
    %cst_26 = arith.constant dense<0.000000e+00> : vector<8x8xf32>
    %96 = tpu.matmul %93, %94, %cst_26 {dimension_numbers = #tpu.dot_dimension_numbers<[1], [1], [0], [0], [0, 0, 1, 0], [], []>} : vector<8x32xbf16>, vector<8x32xbf16>, vector<8x8xf32> -> vector<8x8xf32>
    "tpu.trace_stop"() : () -> ()
    %cst_27 = arith.constant dense<0xFF800000> : vector<8xf32>
    %97 = vector.multi_reduction <maximumf>, %96, %cst_27 [1] : vector<8x8xf32> to vector<8xf32>
    %98 = vector.shape_cast %97 : vector<8xf32> to vector<8x1xf32>
    %99 = vector.broadcast %98 : vector<8x1xf32> to vector<8x8xf32>
    %100 = arith.subf %96, %99 : vector<8x8xf32>
    %101 = math.exp %100 : vector<8x8xf32>
    %cst_28 = arith.constant dense<0.000000e+00> : vector<8xf32>
    %102 = vector.multi_reduction <add>, %101, %cst_28 [1] : vector<8x8xf32> to vector<8xf32>
    %103 = vector.shape_cast %102 : vector<8xf32> to vector<8x1xf32>
    %104 = tpu.reciprocal %103 {approx = true} : vector<8x1xf32> -> vector<8x1xf32>
    %105 = vector.broadcast %104 : vector<8x1xf32> to vector<8x8xf32>
    %106 = arith.mulf %101, %105 : vector<8x8xf32>
    %107 = arith.truncf %106 : vector<8x8xf32> to vector<8x8xbf16>
    %cst_29 = arith.constant dense<0.000000e+00> : vector<8x32xf32>
    %108 = tpu.matmul %107, %95, %cst_29 {dimension_numbers = #tpu.dot_dimension_numbers<[1], [0], [0], [1], [0, 0, 1, 1], [], []>} : vector<8x8xbf16>, vector<8x32xbf16>, vector<8x32xf32> -> vector<8x32xf32>
    %109 = vector.extract_strided_slice %88 {offsets = [0, 32], sizes = [8, 32], strides = [1, 1]} : vector<8x128xbf16> to vector<8x32xbf16>
    %110 = vector.extract_strided_slice %90 {offsets = [0, 32], sizes = [8, 32], strides = [1, 1]} : vector<8x128xbf16> to vector<8x32xbf16>
    %111 = vector.extract_strided_slice %92 {offsets = [0, 32], sizes = [8, 32], strides = [1, 1]} : vector<8x128xbf16> to vector<8x32xbf16>
    "tpu.trace_start"() <{level = 10 : i32, message = "qd,kd->qk"}> : () -> ()
    %cst_30 = arith.constant dense<0.000000e+00> : vector<8x8xf32>
    %112 = tpu.matmul %109, %110, %cst_30 {dimension_numbers = #tpu.dot_dimension_numbers<[1], [1], [0], [0], [0, 0, 1, 0], [], []>} : vector<8x32xbf16>, vector<8x32xbf16>, vector<8x8xf32> -> vector<8x8xf32>
    "tpu.trace_stop"() : () -> ()
    %cst_31 = arith.constant dense<0xFF800000> : vector<8xf32>
    %113 = vector.multi_reduction <maximumf>, %112, %cst_31 [1] : vector<8x8xf32> to vector<8xf32>
    %114 = vector.shape_cast %113 : vector<8xf32> to vector<8x1xf32>
    %115 = vector.broadcast %114 : vector<8x1xf32> to vector<8x8xf32>
    %116 = arith.subf %112, %115 : vector<8x8xf32>
    %117 = math.exp %116 : vector<8x8xf32>
    %cst_32 = arith.constant dense<0.000000e+00> : vector<8xf32>
    %118 = vector.multi_reduction <add>, %117, %cst_32 [1] : vector<8x8xf32> to vector<8xf32>
    %119 = vector.shape_cast %118 : vector<8xf32> to vector<8x1xf32>
    %120 = tpu.reciprocal %119 {approx = true} : vector<8x1xf32> -> vector<8x1xf32>
    %121 = vector.broadcast %120 : vector<8x1xf32> to vector<8x8xf32>
    %122 = arith.mulf %117, %121 : vector<8x8xf32>
    %123 = arith.truncf %122 : vector<8x8xf32> to vector<8x8xbf16>
    %cst_33 = arith.constant dense<0.000000e+00> : vector<8x32xf32>
    %124 = tpu.matmul %123, %111, %cst_33 {dimension_numbers = #tpu.dot_dimension_numbers<[1], [0], [0], [1], [0, 0, 1, 1], [], []>} : vector<8x8xbf16>, vector<8x32xbf16>, vector<8x32xf32> -> vector<8x32xf32>
    %125 = vector.extract_strided_slice %88 {offsets = [0, 64], sizes = [8, 32], strides = [1, 1]} : vector<8x128xbf16> to vector<8x32xbf16>
    %126 = vector.extract_strided_slice %90 {offsets = [0, 64], sizes = [8, 32], strides = [1, 1]} : vector<8x128xbf16> to vector<8x32xbf16>
    %127 = vector.extract_strided_slice %92 {offsets = [0, 64], sizes = [8, 32], strides = [1, 1]} : vector<8x128xbf16> to vector<8x32xbf16>
    "tpu.trace_start"() <{level = 10 : i32, message = "qd,kd->qk"}> : () -> ()
    %cst_34 = arith.constant dense<0.000000e+00> : vector<8x8xf32>
    %128 = tpu.matmul %125, %126, %cst_34 {dimension_numbers = #tpu.dot_dimension_numbers<[1], [1], [0], [0], [0, 0, 1, 0], [], []>} : vector<8x32xbf16>, vector<8x32xbf16>, vector<8x8xf32> -> vector<8x8xf32>
    "tpu.trace_stop"() : () -> ()
    %cst_35 = arith.constant dense<0xFF800000> : vector<8xf32>
    %129 = vector.multi_reduction <maximumf>, %128, %cst_35 [1] : vector<8x8xf32> to vector<8xf32>
    %130 = vector.shape_cast %129 : vector<8xf32> to vector<8x1xf32>
    %131 = vector.broadcast %130 : vector<8x1xf32> to vector<8x8xf32>
    %132 = arith.subf %128, %131 : vector<8x8xf32>
    %133 = math.exp %132 : vector<8x8xf32>
    %cst_36 = arith.constant dense<0.000000e+00> : vector<8xf32>
    %134 = vector.multi_reduction <add>, %133, %cst_36 [1] : vector<8x8xf32> to vector<8xf32>
    %135 = vector.shape_cast %134 : vector<8xf32> to vector<8x1xf32>
    %136 = tpu.reciprocal %135 {approx = true} : vector<8x1xf32> -> vector<8x1xf32>
    %137 = vector.broadcast %136 : vector<8x1xf32> to vector<8x8xf32>
    %138 = arith.mulf %133, %137 : vector<8x8xf32>
    %139 = arith.truncf %138 : vector<8x8xf32> to vector<8x8xbf16>
    %cst_37 = arith.constant dense<0.000000e+00> : vector<8x32xf32>
    %140 = tpu.matmul %139, %127, %cst_37 {dimension_numbers = #tpu.dot_dimension_numbers<[1], [0], [0], [1], [0, 0, 1, 1], [], []>} : vector<8x8xbf16>, vector<8x32xbf16>, vector<8x32xf32> -> vector<8x32xf32>
    %141 = vector.extract_strided_slice %88 {offsets = [0, 96], sizes = [8, 32], strides = [1, 1]} : vector<8x128xbf16> to vector<8x32xbf16>
    %142 = vector.extract_strided_slice %90 {offsets = [0, 96], sizes = [8, 32], strides = [1, 1]} : vector<8x128xbf16> to vector<8x32xbf16>
    %143 = vector.extract_strided_slice %92 {offsets = [0, 96], sizes = [8, 32], strides = [1, 1]} : vector<8x128xbf16> to vector<8x32xbf16>
    "tpu.trace_start"() <{level = 10 : i32, message = "qd,kd->qk"}> : () -> ()
    %cst_38 = arith.constant dense<0.000000e+00> : vector<8x8xf32>
    %144 = tpu.matmul %141, %142, %cst_38 {dimension_numbers = #tpu.dot_dimension_numbers<[1], [1], [0], [0], [0, 0, 1, 0], [], []>} : vector<8x32xbf16>, vector<8x32xbf16>, vector<8x8xf32> -> vector<8x8xf32>
    "tpu.trace_stop"() : () -> ()
    %cst_39 = arith.constant dense<0xFF800000> : vector<8xf32>
    %145 = vector.multi_reduction <maximumf>, %144, %cst_39 [1] : vector<8x8xf32> to vector<8xf32>
    %146 = vector.shape_cast %145 : vector<8xf32> to vector<8x1xf32>
    %147 = vector.broadcast %146 : vector<8x1xf32> to vector<8x8xf32>
    %148 = arith.subf %144, %147 : vector<8x8xf32>
    %149 = math.exp %148 : vector<8x8xf32>
    %cst_40 = arith.constant dense<0.000000e+00> : vector<8xf32>
    %150 = vector.multi_reduction <add>, %149, %cst_40 [1] : vector<8x8xf32> to vector<8xf32>
    %151 = vector.shape_cast %150 : vector<8xf32> to vector<8x1xf32>
    %152 = tpu.reciprocal %151 {approx = true} : vector<8x1xf32> -> vector<8x1xf32>
    %153 = vector.broadcast %152 : vector<8x1xf32> to vector<8x8xf32>
    %154 = arith.mulf %149, %153 : vector<8x8xf32>
    %155 = arith.truncf %154 : vector<8x8xf32> to vector<8x8xbf16>
    %cst_41 = arith.constant dense<0.000000e+00> : vector<8x32xf32>
    %156 = tpu.matmul %155, %143, %cst_41 {dimension_numbers = #tpu.dot_dimension_numbers<[1], [0], [0], [1], [0, 0, 1, 1], [], []>} : vector<8x8xbf16>, vector<8x32xbf16>, vector<8x32xf32> -> vector<8x32xf32>
    %157 = tpu.concatenate %108, %124, %140, %156 in 1 : vector<8x32xf32>, vector<8x32xf32>, vector<8x32xf32>, vector<8x32xf32> -> vector<8x128xf32>
    %158 = tpu.concatenate %84, %157 in 0 : vector<8x128xf32>, vector<8x128xf32> -> vector<16x128xf32>
    %159 = arith.truncf %158 : vector<16x128xf32> to vector<16x128xbf16>
    %c0_42 = arith.constant 0 : index
    %c0_43 = arith.constant 0 : index
    %c0_44 = arith.constant 0 : index
    %160 = vector.load %arg5[%c0_42, %c0_43, %c0_44] : memref<1x128x128xbf16, #tpu.memory_space<vmem>>, vector<1x128x128xbf16>
    %161 = vector.shape_cast %160 : vector<1x128x128xbf16> to vector<128x128xbf16>
    %cst_45 = arith.constant dense<0.000000e+00> : vector<16x128xf32>
    %162 = tpu.matmul %159, %161, %cst_45 {dimension_numbers = #tpu.dot_dimension_numbers<[1], [0], [0], [1], [0, 0, 1, 1], [], []>} : vector<16x128xbf16>, vector<128x128xbf16>, vector<16x128xf32> -> vector<16x128xf32>
    %c0_46 = arith.constant 0 : index
    %c0_47 = arith.constant 0 : index
    %c0_48 = arith.constant 0 : index
    %163 = vector.load %arg6[%c0_46, %c0_47, %c0_48] : memref<1x1x128xf32, #tpu.memory_space<vmem>>, vector<1x1x128xf32>
    %164 = vector.shape_cast %163 : vector<1x1x128xf32> to vector<1x128xf32>
    %165 = vector.broadcast %164 : vector<1x128xf32> to vector<16x128xf32>
    %166 = arith.addf %162, %165 : vector<16x128xf32>
    %167 = arith.addf %3, %166 : vector<16x128xf32>
    %c0_49 = arith.constant 0 : index
    %c0_50 = arith.constant 0 : index
    %c0_51 = arith.constant 0 : index
    %168 = vector.load %arg7[%c0_49, %c0_50, %c0_51] : memref<1x1x128xf32, #tpu.memory_space<vmem>>, vector<1x1x128xf32>
    %169 = vector.shape_cast %168 : vector<1x1x128xf32> to vector<1x128xf32>
    %c0_52 = arith.constant 0 : index
    %c0_53 = arith.constant 0 : index
    %c0_54 = arith.constant 0 : index
    %170 = vector.load %arg8[%c0_52, %c0_53, %c0_54] : memref<1x1x128xf32, #tpu.memory_space<vmem>>, vector<1x1x128xf32>
    %171 = vector.shape_cast %170 : vector<1x1x128xf32> to vector<1x128xf32>
    %cst_55 = arith.constant dense<0.000000e+00> : vector<16xf32>
    %172 = vector.multi_reduction <add>, %167, %cst_55 [1] : vector<16x128xf32> to vector<16xf32>
    %173 = vector.shape_cast %172 : vector<16xf32> to vector<16x1xf32>
    %cst_56 = arith.constant 1.280000e+02 : f32
    %174 = vector.broadcast %cst_56 : f32 to vector<16x1xf32>
    %175 = arith.divf %173, %174 : vector<16x1xf32>
    %176 = vector.broadcast %175 : vector<16x1xf32> to vector<16x128xf32>
    %177 = arith.subf %167, %176 : vector<16x128xf32>
    %178 = arith.mulf %177, %177 : vector<16x128xf32>
    %cst_57 = arith.constant dense<0.000000e+00> : vector<16xf32>
    %179 = vector.multi_reduction <add>, %178, %cst_57 [1] : vector<16x128xf32> to vector<16xf32>
    %180 = vector.shape_cast %179 : vector<16xf32> to vector<16x1xf32>
    %cst_58 = arith.constant 1.280000e+02 : f32
    %181 = vector.broadcast %cst_58 : f32 to vector<16x1xf32>
    %182 = arith.divf %180, %181 : vector<16x1xf32>
    %183 = vector.broadcast %175 : vector<16x1xf32> to vector<16x128xf32>
    %184 = arith.subf %167, %183 : vector<16x128xf32>
    %cst_59 = arith.constant 9.99999974E-6 : f32
    %185 = vector.broadcast %cst_59 : f32 to vector<16x1xf32>
    %186 = arith.addf %182, %185 : vector<16x1xf32>
    %187 = math.rsqrt %186 : vector<16x1xf32>
    %188 = vector.broadcast %187 : vector<16x1xf32> to vector<16x128xf32>
    %189 = arith.mulf %184, %188 : vector<16x128xf32>
    %190 = vector.broadcast %169 : vector<1x128xf32> to vector<16x128xf32>
    %191 = arith.mulf %189, %190 : vector<16x128xf32>
    %192 = vector.broadcast %171 : vector<1x128xf32> to vector<16x128xf32>
    %193 = arith.addf %191, %192 : vector<16x128xf32>
    %194 = arith.truncf %193 : vector<16x128xf32> to vector<16x128xbf16>
    %c0_60 = arith.constant 0 : index
    %c0_61 = arith.constant 0 : index
    %c0_62 = arith.constant 0 : index
    %195 = vector.load %arg9[%c0_60, %c0_61, %c0_62] : memref<1x128x256xbf16, #tpu.memory_space<vmem>>, vector<1x128x256xbf16>
    %196 = vector.shape_cast %195 : vector<1x128x256xbf16> to vector<128x256xbf16>
    %cst_63 = arith.constant dense<0.000000e+00> : vector<16x256xf32>
    %197 = tpu.matmul %194, %196, %cst_63 {dimension_numbers = #tpu.dot_dimension_numbers<[1], [0], [0], [1], [0, 0, 1, 1], [], []>} : vector<16x128xbf16>, vector<128x256xbf16>, vector<16x256xf32> -> vector<16x256xf32>
    %c0_64 = arith.constant 0 : index
    %c0_65 = arith.constant 0 : index
    %c0_66 = arith.constant 0 : index
    %198 = vector.load %arg10[%c0_64, %c0_65, %c0_66] : memref<1x1x256xf32, #tpu.memory_space<vmem>>, vector<1x1x256xf32>
    %199 = vector.shape_cast %198 : vector<1x1x256xf32> to vector<1x256xf32>
    %200 = vector.broadcast %199 : vector<1x256xf32> to vector<16x256xf32>
    %201 = arith.addf %197, %200 : vector<16x256xf32>
    %cst_67 = arith.constant 5.000000e-01 : f32
    %202 = vector.broadcast %cst_67 : f32 to vector<16x256xf32>
    %203 = arith.mulf %202, %201 : vector<16x256xf32>
    %cst_68 = arith.constant 0.707106769 : f32
    %204 = vector.broadcast %cst_68 : f32 to vector<16x256xf32>
    %205 = arith.mulf %201, %204 : vector<16x256xf32>
    %cst_69 = arith.constant 0.000000e+00 : f32
    %206 = vector.broadcast %cst_69 : f32 to vector<16x256xf32>
    %207 = arith.cmpf oge, %205, %206 : vector<16x256xf32>
    %cst_70 = arith.constant 1.000000e+00 : f32
    %cst_71 = arith.constant -1.000000e+00 : f32
    %208 = vector.broadcast %cst_70 : f32 to vector<16x256xf32>
    %209 = vector.broadcast %cst_71 : f32 to vector<16x256xf32>
    %210 = arith.select %207, %208, %209 : vector<16x256xi1>, vector<16x256xf32>
    %211 = math.absf %205 : vector<16x256xf32>
    %cst_72 = arith.constant 0.327591091 : f32
    %212 = vector.broadcast %cst_72 : f32 to vector<16x256xf32>
    %213 = arith.mulf %212, %211 : vector<16x256xf32>
    %cst_73 = arith.constant 1.000000e+00 : f32
    %214 = vector.broadcast %cst_73 : f32 to vector<16x256xf32>
    %215 = arith.addf %214, %213 : vector<16x256xf32>
    %cst_74 = arith.constant 1.000000e+00 : f32
    %216 = vector.broadcast %cst_74 : f32 to vector<16x256xf32>
    %217 = arith.divf %216, %215 : vector<16x256xf32>
    %cst_75 = arith.constant 1.06140542 : f32
    %218 = vector.broadcast %cst_75 : f32 to vector<16x256xf32>
    %219 = arith.mulf %218, %217 : vector<16x256xf32>
    %cst_76 = arith.constant -1.45315206 : f32
    %220 = vector.broadcast %cst_76 : f32 to vector<16x256xf32>
    %221 = arith.addf %219, %220 : vector<16x256xf32>
    %222 = arith.mulf %221, %217 : vector<16x256xf32>
    %cst_77 = arith.constant 1.42141378 : f32
    %223 = vector.broadcast %cst_77 : f32 to vector<16x256xf32>
    %224 = arith.addf %222, %223 : vector<16x256xf32>
    %225 = arith.mulf %224, %217 : vector<16x256xf32>
    %cst_78 = arith.constant -0.284496725 : f32
    %226 = vector.broadcast %cst_78 : f32 to vector<16x256xf32>
    %227 = arith.addf %225, %226 : vector<16x256xf32>
    %228 = arith.mulf %227, %217 : vector<16x256xf32>
    %cst_79 = arith.constant 0.254829586 : f32
    %229 = vector.broadcast %cst_79 : f32 to vector<16x256xf32>
    %230 = arith.addf %228, %229 : vector<16x256xf32>
    %231 = arith.mulf %230, %217 : vector<16x256xf32>
    %cst_80 = arith.constant 0.000000e+00 : f32
    %232 = vector.broadcast %cst_80 : f32 to vector<16x256xf32>
    %233 = arith.subf %232, %211 : vector<16x256xf32>
    %234 = arith.mulf %233, %211 : vector<16x256xf32>
    %235 = math.exp %234 : vector<16x256xf32>
    %236 = arith.mulf %231, %235 : vector<16x256xf32>
    %cst_81 = arith.constant 1.000000e+00 : f32
    %237 = vector.broadcast %cst_81 : f32 to vector<16x256xf32>
    %238 = arith.subf %237, %236 : vector<16x256xf32>
    %239 = arith.mulf %210, %238 : vector<16x256xf32>
    %cst_82 = arith.constant 1.000000e+00 : f32
    %240 = vector.broadcast %cst_82 : f32 to vector<16x256xf32>
    %241 = arith.addf %240, %239 : vector<16x256xf32>
    %242 = arith.mulf %203, %241 : vector<16x256xf32>
    %243 = arith.truncf %242 : vector<16x256xf32> to vector<16x256xbf16>
    %c0_83 = arith.constant 0 : index
    %c0_84 = arith.constant 0 : index
    %c0_85 = arith.constant 0 : index
    %244 = vector.load %arg11[%c0_83, %c0_84, %c0_85] : memref<1x256x128xbf16, #tpu.memory_space<vmem>>, vector<1x256x128xbf16>
    %245 = vector.shape_cast %244 : vector<1x256x128xbf16> to vector<256x128xbf16>
    %cst_86 = arith.constant dense<0.000000e+00> : vector<16x128xf32>
    %246 = tpu.matmul %243, %245, %cst_86 {dimension_numbers = #tpu.dot_dimension_numbers<[1], [0], [0], [1], [0, 0, 1, 1], [], []>} : vector<16x256xbf16>, vector<256x128xbf16>, vector<16x128xf32> -> vector<16x128xf32>
    %c0_87 = arith.constant 0 : index
    %c0_88 = arith.constant 0 : index
    %c0_89 = arith.constant 0 : index
    %247 = vector.load %arg12[%c0_87, %c0_88, %c0_89] : memref<1x1x128xf32, #tpu.memory_space<vmem>>, vector<1x1x128xf32>
    %248 = vector.shape_cast %247 : vector<1x1x128xf32> to vector<1x128xf32>
    %249 = vector.broadcast %248 : vector<1x128xf32> to vector<16x128xf32>
    %250 = arith.addf %246, %249 : vector<16x128xf32>
    %251 = arith.addf %250, %193 : vector<16x128xf32>
    %c0_90 = arith.constant 0 : index
    %c0_91 = arith.constant 0 : index
    %c0_92 = arith.constant 0 : index
    %252 = vector.load %arg13[%c0_90, %c0_91, %c0_92] : memref<1x1x128xf32, #tpu.memory_space<vmem>>, vector<1x1x128xf32>
    %253 = vector.shape_cast %252 : vector<1x1x128xf32> to vector<1x128xf32>
    %c0_93 = arith.constant 0 : index
    %c0_94 = arith.constant 0 : index
    %c0_95 = arith.constant 0 : index
    %254 = vector.load %arg14[%c0_93, %c0_94, %c0_95] : memref<1x1x128xf32, #tpu.memory_space<vmem>>, vector<1x1x128xf32>
    %255 = vector.shape_cast %254 : vector<1x1x128xf32> to vector<1x128xf32>
    %cst_96 = arith.constant dense<0.000000e+00> : vector<16xf32>
    %256 = vector.multi_reduction <add>, %251, %cst_96 [1] : vector<16x128xf32> to vector<16xf32>
    %257 = vector.shape_cast %256 : vector<16xf32> to vector<16x1xf32>
    %cst_97 = arith.constant 1.280000e+02 : f32
    %258 = vector.broadcast %cst_97 : f32 to vector<16x1xf32>
    %259 = arith.divf %257, %258 : vector<16x1xf32>
    %260 = vector.broadcast %259 : vector<16x1xf32> to vector<16x128xf32>
    %261 = arith.subf %251, %260 : vector<16x128xf32>
    %262 = arith.mulf %261, %261 : vector<16x128xf32>
    %cst_98 = arith.constant dense<0.000000e+00> : vector<16xf32>
    %263 = vector.multi_reduction <add>, %262, %cst_98 [1] : vector<16x128xf32> to vector<16xf32>
    %264 = vector.shape_cast %263 : vector<16xf32> to vector<16x1xf32>
    %cst_99 = arith.constant 1.280000e+02 : f32
    %265 = vector.broadcast %cst_99 : f32 to vector<16x1xf32>
    %266 = arith.divf %264, %265 : vector<16x1xf32>
    %267 = vector.broadcast %259 : vector<16x1xf32> to vector<16x128xf32>
    %268 = arith.subf %251, %267 : vector<16x128xf32>
    %cst_100 = arith.constant 9.99999974E-6 : f32
    %269 = vector.broadcast %cst_100 : f32 to vector<16x1xf32>
    %270 = arith.addf %266, %269 : vector<16x1xf32>
    %271 = math.rsqrt %270 : vector<16x1xf32>
    %272 = vector.broadcast %271 : vector<16x1xf32> to vector<16x128xf32>
    %273 = arith.mulf %268, %272 : vector<16x128xf32>
    %274 = vector.broadcast %253 : vector<1x128xf32> to vector<16x128xf32>
    %275 = arith.mulf %273, %274 : vector<16x128xf32>
    %276 = vector.broadcast %255 : vector<1x128xf32> to vector<16x128xf32>
    %277 = arith.addf %275, %276 : vector<16x128xf32>
    %c0_101 = arith.constant 0 : index
    %c0_102 = arith.constant 0 : index
    %278 = vector.load %arg15[%c0_101, %c0_102] : memref<16x128xf32, #tpu.memory_space<vmem>>, vector<16x128xf32>
    tpu.vector_store %arg15[%c0_101, %c0_102], %277 {strides = array<i32>} : memref<16x128xf32, #tpu.memory_space<vmem>>, vector<16x128xf32>,
    return
  }
  func.func @transform_0(%arg0: i32, %arg1: i32) -> (i32, i32) {
    %c0_i32 = arith.constant 0 : i32
    %c0_i32_0 = arith.constant 0 : i32
    return %arg0, %c0_i32 : i32, i32
  }
  func.func @transform_1(%arg0: i32, %arg1: i32) -> (i32, i32, i32) {
    %c0_i32 = arith.constant 0 : i32
    %c0_i32_0 = arith.constant 0 : i32
    %c0_i32_1 = arith.constant 0 : i32
    return %arg1, %c0_i32, %c0_i32_0 : i32, i32, i32
  }
  func.func @transform_2(%arg0: i32, %arg1: i32) -> (i32, i32, i32) {
    %c0_i32 = arith.constant 0 : i32
    %c0_i32_0 = arith.constant 0 : i32
    %c0_i32_1 = arith.constant 0 : i32
    return %arg1, %c0_i32, %c0_i32_0 : i32, i32, i32
  }
  func.func @transform_3(%arg0: i32, %arg1: i32) -> (i32, i32, i32) {
    %c0_i32 = arith.constant 0 : i32
    %c0_i32_0 = arith.constant 0 : i32
    %c0_i32_1 = arith.constant 0 : i32
    return %arg1, %c0_i32, %c0_i32_0 : i32, i32, i32
  }
  func.func @transform_4(%arg0: i32, %arg1: i32) -> (i32, i32, i32) {
    %c0_i32 = arith.constant 0 : i32
    %c0_i32_0 = arith.constant 0 : i32
    %c0_i32_1 = arith.constant 0 : i32
    return %arg1, %c0_i32, %c0_i32_0 : i32, i32, i32
  }
  func.func @transform_5(%arg0: i32, %arg1: i32) -> (i32, i32, i32) {
    %c0_i32 = arith.constant 0 : i32
    %c0_i32_0 = arith.constant 0 : i32
    %c0_i32_1 = arith.constant 0 : i32
    return %arg1, %c0_i32, %c0_i32_0 : i32, i32, i32
  }
  func.func @transform_6(%arg0: i32, %arg1: i32) -> (i32, i32, i32) {
    %c0_i32 = arith.constant 0 : i32
    %c0_i32_0 = arith.constant 0 : i32
    %c0_i32_1 = arith.constant 0 : i32
    return %arg1, %c0_i32, %c0_i32_0 : i32, i32, i32
  }
  func.func @transform_7(%arg0: i32, %arg1: i32) -> (i32, i32, i32) {
    %c0_i32 = arith.constant 0 : i32
    %c0_i32_0 = arith.constant 0 : i32
    %c0_i32_1 = arith.constant 0 : i32
    return %arg1, %c0_i32, %c0_i32_0 : i32, i32, i32
  }
  func.func @transform_8(%arg0: i32, %arg1: i32) -> (i32, i32, i32) {
    %c0_i32 = arith.constant 0 : i32
    %c0_i32_0 = arith.constant 0 : i32
    %c0_i32_1 = arith.constant 0 : i32
    return %arg1, %c0_i32, %c0_i32_0 : i32, i32, i32
  }
  func.func @transform_9(%arg0: i32, %arg1: i32) -> (i32, i32, i32) {
    %c0_i32 = arith.constant 0 : i32
    %c0_i32_0 = arith.constant 0 : i32
    %c0_i32_1 = arith.constant 0 : i32
    return %arg1, %c0_i32, %c0_i32_0 : i32, i32, i32
  }
  func.func @transform_10(%arg0: i32, %arg1: i32) -> (i32, i32, i32) {
    %c0_i32 = arith.constant 0 : i32
    %c0_i32_0 = arith.constant 0 : i32
    %c0_i32_1 = arith.constant 0 : i32
    return %arg1, %c0_i32, %c0_i32_0 : i32, i32, i32
  }
  func.func @transform_11(%arg0: i32, %arg1: i32) -> (i32, i32, i32) {
    %c0_i32 = arith.constant 0 : i32
    %c0_i32_0 = arith.constant 0 : i32
    %c0_i32_1 = arith.constant 0 : i32
    return %arg1, %c0_i32, %c0_i32_0 : i32, i32, i32
  }
  func.func @transform_12(%arg0: i32, %arg1: i32) -> (i32, i32, i32) {
    %c0_i32 = arith.constant 0 : i32
    %c0_i32_0 = arith.constant 0 : i32
    %c0_i32_1 = arith.constant 0 : i32
    return %arg1, %c0_i32, %c0_i32_0 : i32, i32, i32
  }
  func.func @transform_13(%arg0: i32, %arg1: i32) -> (i32, i32) {
    %c0_i32 = arith.constant 0 : i32
    %c0_i32_0 = arith.constant 0 : i32
    return %arg0, %c0_i32 : i32, i32
  }
}

module attributes {stable_mosaic.version = 11 : i64} {
  func.func @bert_head_kernel(%arg0: i32, %arg1: i32, %arg2: memref<16x128xf32, #tpu.memory_space<vmem>>, %arg3: memref<128x128xbf16, #tpu.memory_space<vmem>>, %arg4: memref<1x128xf32, #tpu.memory_space<vmem>>, %arg5: memref<1x128xf32, #tpu.memory_space<vmem>>, %arg6: memref<1x128xf32, #tpu.memory_space<vmem>>, %arg7: memref<128x128xbf16, #tpu.memory_space<vmem>>, %arg8: memref<1x128xf32, #tpu.memory_space<vmem>>, %arg9: memref<16x128xf32, #tpu.memory_space<vmem>>, %arg10: memref<16x128xf32, #tpu.memory_space<vmem>>) attributes {dimension_semantics = [#tpu.dimension_semantics<parallel>, #tpu.dimension_semantics<arbitrary>], iteration_bounds = array<i64: 1, 1>, scalar_prefetch = 0 : i64, scratch_operands = 1 : i64, tpu.core_type = #tpu.core_type<tc>, window_params = [{transform_indices = @transform_0, window_bounds = array<i64: 16, 128>}, {pipeline_mode = #tpu.pipeline_mode<synchronous>, transform_indices = @transform_1, window_bounds = array<i64: 128, 128>}, {pipeline_mode = #tpu.pipeline_mode<synchronous>, transform_indices = @transform_2, window_bounds = array<i64: 1, 128>}, {pipeline_mode = #tpu.pipeline_mode<synchronous>, transform_indices = @transform_3, window_bounds = array<i64: 1, 128>}, {pipeline_mode = #tpu.pipeline_mode<synchronous>, transform_indices = @transform_4, window_bounds = array<i64: 1, 128>}, {transform_indices = @transform_5, window_bounds = array<i64: 128, 128>}, {transform_indices = @transform_6, window_bounds = array<i64: 1, 128>}, {transform_indices = @transform_7, window_bounds = array<i64: 16, 128>}]} {
    %c0_i32 = arith.constant 0 : i32
    %0 = arith.cmpi eq, %arg1, %c0_i32 : i32
    %1 = arith.extui %0 : i1 to i32
    %c0_i32_0 = arith.constant 0 : i32
    %2 = arith.cmpi ne, %1, %c0_i32_0 : i32
    scf.if %2 {
      %c0_8 = arith.constant 0 : index
      %c0_9 = arith.constant 0 : index
      %11 = vector.load %arg2[%c0_8, %c0_9] : memref<16x128xf32, #tpu.memory_space<vmem>>, vector<16x128xf32>
      %12 = arith.truncf %11 : vector<16x128xf32> to vector<16x128xbf16>
      %c0_10 = arith.constant 0 : index
      %c0_11 = arith.constant 0 : index
      %13 = vector.load %arg3[%c0_10, %c0_11] : memref<128x128xbf16, #tpu.memory_space<vmem>>, vector<128x128xbf16>
      %cst_12 = arith.constant dense<0.000000e+00> : vector<16x128xf32>
      %14 = tpu.matmul %12, %13, %cst_12 {dimension_numbers = #tpu.dot_dimension_numbers<[1], [0], [0], [1], [0, 0, 1, 1], [], []>} : vector<16x128xbf16>, vector<128x128xbf16>, vector<16x128xf32> -> vector<16x128xf32>
      %c0_13 = arith.constant 0 : index
      %c0_14 = arith.constant 0 : index
      %15 = vector.load %arg4[%c0_13, %c0_14] : memref<1x128xf32, #tpu.memory_space<vmem>>, vector<1x128xf32>
      %16 = vector.broadcast %15 : vector<1x128xf32> to vector<16x128xf32>
      %17 = arith.addf %14, %16 : vector<16x128xf32>
      %cst_15 = arith.constant 5.000000e-01 : f32
      %18 = vector.broadcast %cst_15 : f32 to vector<16x128xf32>
      %19 = arith.mulf %18, %17 : vector<16x128xf32>
      %cst_16 = arith.constant 0.707106769 : f32
      %20 = vector.broadcast %cst_16 : f32 to vector<16x128xf32>
      %21 = arith.mulf %17, %20 : vector<16x128xf32>
      %cst_17 = arith.constant 0.000000e+00 : f32
      %22 = vector.broadcast %cst_17 : f32 to vector<16x128xf32>
      %23 = arith.cmpf oge, %21, %22 : vector<16x128xf32>
      %cst_18 = arith.constant 1.000000e+00 : f32
      %cst_19 = arith.constant -1.000000e+00 : f32
      %24 = vector.broadcast %cst_18 : f32 to vector<16x128xf32>
      %25 = vector.broadcast %cst_19 : f32 to vector<16x128xf32>
      %26 = arith.select %23, %24, %25 : vector<16x128xi1>, vector<16x128xf32>
      %27 = math.absf %21 : vector<16x128xf32>
      %cst_20 = arith.constant 0.327591091 : f32
      %28 = vector.broadcast %cst_20 : f32 to vector<16x128xf32>
      %29 = arith.mulf %28, %27 : vector<16x128xf32>
      %cst_21 = arith.constant 1.000000e+00 : f32
      %30 = vector.broadcast %cst_21 : f32 to vector<16x128xf32>
      %31 = arith.addf %30, %29 : vector<16x128xf32>
      %cst_22 = arith.constant 1.000000e+00 : f32
      %32 = vector.broadcast %cst_22 : f32 to vector<16x128xf32>
      %33 = arith.divf %32, %31 : vector<16x128xf32>
      %cst_23 = arith.constant 1.06140542 : f32
      %34 = vector.broadcast %cst_23 : f32 to vector<16x128xf32>
      %35 = arith.mulf %34, %33 : vector<16x128xf32>
      %cst_24 = arith.constant -1.45315206 : f32
      %36 = vector.broadcast %cst_24 : f32 to vector<16x128xf32>
      %37 = arith.addf %35, %36 : vector<16x128xf32>
      %38 = arith.mulf %37, %33 : vector<16x128xf32>
      %cst_25 = arith.constant 1.42141378 : f32
      %39 = vector.broadcast %cst_25 : f32 to vector<16x128xf32>
      %40 = arith.addf %38, %39 : vector<16x128xf32>
      %41 = arith.mulf %40, %33 : vector<16x128xf32>
      %cst_26 = arith.constant -0.284496725 : f32
      %42 = vector.broadcast %cst_26 : f32 to vector<16x128xf32>
      %43 = arith.addf %41, %42 : vector<16x128xf32>
      %44 = arith.mulf %43, %33 : vector<16x128xf32>
      %cst_27 = arith.constant 0.254829586 : f32
      %45 = vector.broadcast %cst_27 : f32 to vector<16x128xf32>
      %46 = arith.addf %44, %45 : vector<16x128xf32>
      %47 = arith.mulf %46, %33 : vector<16x128xf32>
      %cst_28 = arith.constant 0.000000e+00 : f32
      %48 = vector.broadcast %cst_28 : f32 to vector<16x128xf32>
      %49 = arith.subf %48, %27 : vector<16x128xf32>
      %50 = arith.mulf %49, %27 : vector<16x128xf32>
      %51 = math.exp %50 : vector<16x128xf32>
      %52 = arith.mulf %47, %51 : vector<16x128xf32>
      %cst_29 = arith.constant 1.000000e+00 : f32
      %53 = vector.broadcast %cst_29 : f32 to vector<16x128xf32>
      %54 = arith.subf %53, %52 : vector<16x128xf32>
      %55 = arith.mulf %26, %54 : vector<16x128xf32>
      %cst_30 = arith.constant 1.000000e+00 : f32
      %56 = vector.broadcast %cst_30 : f32 to vector<16x128xf32>
      %57 = arith.addf %56, %55 : vector<16x128xf32>
      %58 = arith.mulf %19, %57 : vector<16x128xf32>
      %c0_31 = arith.constant 0 : index
      %c0_32 = arith.constant 0 : index
      %59 = vector.load %arg5[%c0_31, %c0_32] : memref<1x128xf32, #tpu.memory_space<vmem>>, vector<1x128xf32>
      %c0_33 = arith.constant 0 : index
      %c0_34 = arith.constant 0 : index
      %60 = vector.load %arg6[%c0_33, %c0_34] : memref<1x128xf32, #tpu.memory_space<vmem>>, vector<1x128xf32>
      %cst_35 = arith.constant dense<0.000000e+00> : vector<16xf32>
      %61 = vector.multi_reduction <add>, %58, %cst_35 [1] : vector<16x128xf32> to vector<16xf32>
      %62 = vector.shape_cast %61 : vector<16xf32> to vector<16x1xf32>
      %cst_36 = arith.constant 1.280000e+02 : f32
      %63 = vector.broadcast %cst_36 : f32 to vector<16x1xf32>
      %64 = arith.divf %62, %63 : vector<16x1xf32>
      %65 = vector.broadcast %64 : vector<16x1xf32> to vector<16x128xf32>
      %66 = arith.subf %58, %65 : vector<16x128xf32>
      %67 = arith.mulf %66, %66 : vector<16x128xf32>
      %cst_37 = arith.constant dense<0.000000e+00> : vector<16xf32>
      %68 = vector.multi_reduction <add>, %67, %cst_37 [1] : vector<16x128xf32> to vector<16xf32>
      %69 = vector.shape_cast %68 : vector<16xf32> to vector<16x1xf32>
      %cst_38 = arith.constant 1.280000e+02 : f32
      %70 = vector.broadcast %cst_38 : f32 to vector<16x1xf32>
      %71 = arith.divf %69, %70 : vector<16x1xf32>
      %72 = vector.broadcast %64 : vector<16x1xf32> to vector<16x128xf32>
      %73 = arith.subf %58, %72 : vector<16x128xf32>
      %cst_39 = arith.constant 9.99999974E-6 : f32
      %74 = vector.broadcast %cst_39 : f32 to vector<16x1xf32>
      %75 = arith.addf %71, %74 : vector<16x1xf32>
      %76 = math.rsqrt %75 : vector<16x1xf32>
      %77 = vector.broadcast %76 : vector<16x1xf32> to vector<16x128xf32>
      %78 = arith.mulf %73, %77 : vector<16x128xf32>
      %79 = vector.broadcast %59 : vector<1x128xf32> to vector<16x128xf32>
      %80 = arith.mulf %78, %79 : vector<16x128xf32>
      %81 = vector.broadcast %60 : vector<1x128xf32> to vector<16x128xf32>
      %82 = arith.addf %80, %81 : vector<16x128xf32>
      %c0_40 = arith.constant 0 : index
      %c0_41 = arith.constant 0 : index
      %83 = vector.load %arg10[%c0_40, %c0_41] : memref<16x128xf32, #tpu.memory_space<vmem>>, vector<16x128xf32>
      tpu.vector_store %arg10[%c0_40, %c0_41], %82 {strides = array<i32>} : memref<16x128xf32, #tpu.memory_space<vmem>>, vector<16x128xf32>,
    } else {
    }
    %c0 = arith.constant 0 : index
    %c0_1 = arith.constant 0 : index
    %3 = vector.load %arg10[%c0, %c0_1] : memref<16x128xf32, #tpu.memory_space<vmem>>, vector<16x128xf32>
    %4 = arith.truncf %3 : vector<16x128xf32> to vector<16x128xbf16>
    %c0_2 = arith.constant 0 : index
    %c0_3 = arith.constant 0 : index
    %5 = vector.load %arg7[%c0_2, %c0_3] : memref<128x128xbf16, #tpu.memory_space<vmem>>, vector<128x128xbf16>
    %cst = arith.constant dense<0.000000e+00> : vector<16x128xf32>
    %6 = tpu.matmul %4, %5, %cst {dimension_numbers = #tpu.dot_dimension_numbers<[1], [0], [0], [1], [0, 0, 1, 1], [], []>} : vector<16x128xbf16>, vector<128x128xbf16>, vector<16x128xf32> -> vector<16x128xf32>
    %c0_4 = arith.constant 0 : index
    %c0_5 = arith.constant 0 : index
    %7 = vector.load %arg8[%c0_4, %c0_5] : memref<1x128xf32, #tpu.memory_space<vmem>>, vector<1x128xf32>
    %8 = vector.broadcast %7 : vector<1x128xf32> to vector<16x128xf32>
    %9 = arith.addf %6, %8 : vector<16x128xf32>
    %c0_6 = arith.constant 0 : index
    %c0_7 = arith.constant 0 : index
    %10 = vector.load %arg9[%c0_6, %c0_7] : memref<16x128xf32, #tpu.memory_space<vmem>>, vector<16x128xf32>
    tpu.vector_store %arg9[%c0_6, %c0_7], %9 {strides = array<i32>} : memref<16x128xf32, #tpu.memory_space<vmem>>, vector<16x128xf32>,
    return
  }
  func.func @transform_0(%arg0: i32, %arg1: i32) -> (i32, i32) {
    %c0_i32 = arith.constant 0 : i32
    %c0_i32_0 = arith.constant 0 : i32
    return %arg0, %c0_i32 : i32, i32
  }
  func.func @transform_1(%arg0: i32, %arg1: i32) -> (i32, i32) {
    %c0_i32 = arith.constant 0 : i32
    %c0_i32_0 = arith.constant 0 : i32
    %c0_i32_1 = arith.constant 0 : i32
    return %c0_i32, %c0_i32_0 : i32, i32
  }
  func.func @transform_2(%arg0: i32, %arg1: i32) -> (i32, i32) {
    %c0_i32 = arith.constant 0 : i32
    %c0_i32_0 = arith.constant 0 : i32
    %c0_i32_1 = arith.constant 0 : i32
    return %c0_i32, %c0_i32_0 : i32, i32
  }
  func.func @transform_3(%arg0: i32, %arg1: i32) -> (i32, i32) {
    %c0_i32 = arith.constant 0 : i32
    %c0_i32_0 = arith.constant 0 : i32
    %c0_i32_1 = arith.constant 0 : i32
    return %c0_i32, %c0_i32_0 : i32, i32
  }
  func.func @transform_4(%arg0: i32, %arg1: i32) -> (i32, i32) {
    %c0_i32 = arith.constant 0 : i32
    %c0_i32_0 = arith.constant 0 : i32
    %c0_i32_1 = arith.constant 0 : i32
    return %c0_i32, %c0_i32_0 : i32, i32
  }
  func.func @transform_5(%arg0: i32, %arg1: i32) -> (i32, i32) {
    %c0_i32 = arith.constant 0 : i32
    %c0_i32_0 = arith.constant 0 : i32
    return %c0_i32, %arg1 : i32, i32
  }
  func.func @transform_6(%arg0: i32, %arg1: i32) -> (i32, i32) {
    %c0_i32 = arith.constant 0 : i32
    %c0_i32_0 = arith.constant 0 : i32
    return %c0_i32, %arg1 : i32, i32
  }
  func.func @transform_7(%arg0: i32, %arg1: i32) -> (i32, i32) {
    %c0_i32 = arith.constant 0 : i32
    return %arg0, %arg1 : i32, i32
  }
}

</mosaic_0001>

<llo_original>
// kernel: bert_forward.3
$region0: #{bert_forward.3}
  #allocation0 [shape = 'u32[]', space=smem, size = 0x4, offset = 0x4, fixed_abs, tag = 'smem constant byte address 0x4 - core index']
  #allocation1 [shape = 'u32[72,128]{1,0:T(1,128)}', space=vmem, size = 0x9000, scoped, tag = 'internal scratch']
  %s0 = inlined_call_operand.vmem [shape: f32[16,128], index: 0, kind: input, shape index: {}]
  %s1 = inlined_call_operand.vmem [shape: f32[1,128], index: 1, kind: input, shape index: {}]
  %s2 = inlined_call_operand.vmem [shape: f32[1,128], index: 2, kind: input, shape index: {}]
  %s3 = inlined_call_operand.vmem [shape: f32[16,128], index: 3, kind: output, shape index: {}]
  %s4 = sld [smem:[#allocation0]]
  $region22: #{bert_forward.3} parent=0
    _
  %s6 = ssub.s32 1, %s4
  %s7 = scalar_select 0, %s6, %s4
  // Predicated region
  $region2: #{bert_forward.3} parent=0 // pred_check
    _
  $region3: #{bert_forward.3} parent=0 // pred_check_branch
    %9 = sbr.rel (0) target = $region5
  $region4: #{bert_forward.3} parent=0 // pred_region
    _
  $region5: #{bert_forward.3} parent=0 // pred_fallthru
    _
  // Predicated region
  $region6: #{bert_forward.3} parent=0 // pred_check
    _
  $region7: #{bert_forward.3} parent=0 // pred_check_branch
    %11 = sbr.rel (0) target = $region9
  $region8: #{bert_forward.3} parent=0 // pred_region
    _
  $region9: #{bert_forward.3} parent=0 // pred_fallthru
    _
  // Predicated region
  $region10: #{bert_forward.3} parent=0 // pred_check
    _
  $region11: #{bert_forward.3} parent=0 // pred_check_branch
    %13 = sbr.rel (0) target = $region13
  $region12: #{bert_forward.3} parent=0 // pred_region
    _
  $region13: #{bert_forward.3} parent=0 // pred_fallthru
    _
  %v14 = vld [vmem:[%s0] sm:$0xff]
  %v15 = vld [vmem:[%s0 + $0x8] sm:$0xff]
  %v16 = vld [vmem:[%s1] sm:$0x1]
  %v17 = vld [vmem:[%s2] sm:$0x1]
  %18 = vadd.xlane.f32.xlu0 %v14
  %v19 = vpop.xlane.xlu0 %18
  %20 = vadd.xlane.f32.xlu0 %v15
  %v21 = vpop.xlane.xlu0 %20
  %v22 = vrcp.pop 128.0
  %v23 = vmul.f32 128.0, %v22
  %v24 = vsub.f32 1.0, %v23
  %v25 = vmul.f32 %v22, %v24
  %v26 = vadd.f32 %v22, %v25
  %vm27 = vweird.f32 %v22
  %v28 = vsel %vm27, %v22, %v26
  %v29 = vmul.f32 %v19, %v28
  %v30 = vmul.f32 %v21, %v28
  %v31 = vsub.f32 %v14, %v29
  %v32 = vsub.f32 %v15, %v30
  %v33 = vmul.f32 %v31, %v31
  %v34 = vmul.f32 %v32, %v32
  %35 = vadd.xlane.f32.xlu0 %v33
  %v36 = vpop.xlane.xlu0 %35
  %37 = vadd.xlane.f32.xlu0 %v34
  %v38 = vpop.xlane.xlu0 %37
  %v39 = vmul.f32 %v36, %v28
  %v40 = vmul.f32 %v38, %v28
  %v41 = vadd.f32 %v39, 1e-05
  %v42 = vadd.f32 %v40, 1e-05
  %v43 = vrsqrt.pop %v41
  %v44 = vmul.f32 %v43, %v41
  %v45 = vmul.f32 %v44, %v43
  %v46 = vmul.f32 0.5, %v45
  %v47 = vsub.f32 1.5, %v46
  %v48 = vmul.f32 %v43, %v47
  %vm49 = vweird.f32 %v41
  %vm50 = vweird.f32 %v43
  %vm51 = vmor %vm49, %vm50
  %v52 = vsel %vm51, %v43, %v48
  %v53 = vrsqrt.pop %v42
  %v54 = vmul.f32 %v53, %v42
  %v55 = vmul.f32 %v54, %v53
  %v56 = vmul.f32 0.5, %v55
  %v57 = vsub.f32 1.5, %v56
  %v58 = vmul.f32 %v53, %v57
  %vm59 = vweird.f32 %v42
  %vm60 = vweird.f32 %v53
  %vm61 = vmor %vm59, %vm60
  %v62 = vsel %vm61, %v53, %v58
  %v63 = vmul.f32 %v31, %v52
  %v64 = vmul.f32 %v32, %v62
  %v66 = vperm.slane %v16, 0
  %v68 = vmul.f32 %v63, %v66
  %v69 = vmul.f32 %v64, %v66
  %v71 = vperm.slane %v17, 0
  %v73 = vadd.f32 %v68, %v71
  %v74 = vadd.f32 %v69, %v71
  %75 = vst [vmem:[%s3] sm:$0xff] %v73
  %76 = vst [vmem:[%s3 + $0x8] sm:$0xff] %v74
  // Predicated region
  $region14: #{bert_forward.3} parent=0 // pred_check
    _
  $region15: #{bert_forward.3} parent=0 // pred_check_branch
    %78 = sbr.rel (0) target = $region17
  $region16: #{bert_forward.3} parent=0 // pred_region
    _
  $region17: #{bert_forward.3} parent=0 // pred_fallthru
    _
  // Predicated region
  $region18: #{bert_forward.3} parent=0 // pred_check
    _
  $region19: #{bert_forward.3} parent=0 // pred_check_branch
    %80 = sbr.rel (0) target = $region21
  $region20: #{bert_forward.3} parent=0 // pred_region
    _
  $region21: #{bert_forward.3} parent=0 // pred_fallthru
    _

// kernel: bert_forward.5
$region0: #{bert_forward.5}
  #allocation0 [shape = 'u32[]', space=smem, size = 0x4, offset = 0x4, fixed_abs, tag = 'smem constant byte address 0x4 - core index']
  #allocation1 [shape = 'u32[72,128]{1,0:T(1,128)}', space=vmem, size = 0x9000, scoped, tag = 'internal scratch']
  #allocation2 [shape = 'f32[16,128]{1,0:T(8,128)}', space=vmem, size = 0x2000, scoped, tag = 'scratch operand']
  %s0 = inlined_call_operand.vmem [shape: f32[16,128], index: 0, kind: input, shape index: {}]
  %s1 = inlined_call_operand.vmem [shape: bf16[128,128], index: 1, kind: input, shape index: {}]
  %s2 = inlined_call_operand.vmem [shape: f32[1,128], index: 2, kind: input, shape index: {}]
  %s3 = inlined_call_operand.vmem [shape: f32[1,128], index: 3, kind: input, shape index: {}]
  %s4 = inlined_call_operand.vmem [shape: f32[1,128], index: 4, kind: input, shape index: {}]
  %s5 = inlined_call_operand.hbm [shape: bf16[128,128], index: 5, kind: input, shape index: {}]
  %s6 = inlined_call_operand.vmem [shape: f32[1,128], index: 6, kind: input, shape index: {}]
  %s7 = inlined_call_operand.hbm [shape: f32[16,128], index: 7, kind: output, shape index: {}]
  %s8 = sld [smem:[#allocation0]]
  $region46: #{bert_forward.5} parent=0
    _
  %s10 = ssub.s32 1, %s8
  %s11 = scalar_select 0, %s10, %s8
  $region1: #{bert_forward.5} parent=0
    #allocation3 [shape = 'u8[32768]{0}', space=vmem, size = 0x8000, scoped, tag = 'input window, operand 5, single buffered']
    #allocation4 [shape = 's32[1]{0}', space=sflag, size = 0x4, scoped, tag = 'scoped memory for bert_forward.5']
    #allocation5 [shape = 's32[1]{0}', space=sflag, size = 0x4, scoped, tag = 'scoped memory for bert_forward.5']
    #allocation6 [shape = 'u8[8192]{0}', space=vmem, size = 0x2000, scoped, tag = 'output window, operand 0, single buffered']
    %12 = vsyncpa [#allocation4], 0
    %13 = vsyncpa [#allocation5], 0
    // Predicated region
    $region2: #{bert_forward.5} parent=1 // pred_check
      _
    $region3: #{bert_forward.5} parent=1 // pred_check_branch
      %15 = sbr.rel (0) target = $region5
    $region4: #{bert_forward.5} parent=1 // pred_region
      _
    $region5: #{bert_forward.5} parent=1 // pred_fallthru
      _
    // Predicated region
    $region6: #{bert_forward.5} parent=1 // pred_check
      _
    $region7: #{bert_forward.5} parent=1 // pred_check_branch
      %17 = sbr.rel (0) target = $region9
    $region8: #{bert_forward.5} parent=1 // pred_region
      _
    $region9: #{bert_forward.5} parent=1 // pred_fallthru
      _
    // Predicated region
    $region10: #{bert_forward.5} parent=1 // pred_check
      _
    $region11: #{bert_forward.5} parent=1 // pred_check_branch
      %19 = sbr.rel (0) target = $region13
    $region12: #{bert_forward.5} parent=1 // pred_region
      _
    $region13: #{bert_forward.5} parent=1 // pred_fallthru
      _
    // Predicated region
    $region14: #{bert_forward.5} parent=1 // pred_check
      _
    $region15: #{bert_forward.5} parent=1 // pred_check_branch
      %21 = sbr.rel (0) target = $region17
    $region16: #{bert_forward.5} parent=1 // pred_region
      _
    $region17: #{bert_forward.5} parent=1 // pred_fallthru
      _
    // Predicated region
    $region18: #{bert_forward.5} parent=1 // pred_check
      _
    $region19: #{bert_forward.5} parent=1 // pred_check_branch
      %23 = sbr.rel (0) target = $region21
    $region20: #{bert_forward.5} parent=1 // pred_region
      _
    $region21: #{bert_forward.5} parent=1 // pred_fallthru
      _
    // Predicated region
    $region22: #{bert_forward.5} parent=1 // pred_check
      _
    $region23: #{bert_forward.5} parent=1 // pred_check_branch
      %25 = sbr.rel (0) target = $region25
    $region24: #{bert_forward.5} parent=1 // pred_region
      %27 = vsyncadd [#allocation4], 0
      %s28 = sshll.u32 %s5, 4
      %s29 = int_to_ptr.hbm [resolvable:$true] %s28
      %s30 = sshll.u32 [#allocation3], 4
      %s31 = int_to_ptr.vmem [resolvable:$true] %s30
      %36 = dma.hbm_to_vmem [thread:$0]  %s29, 1024, %s31, [#allocation4], 64, 64, 4
    $region25: #{bert_forward.5} parent=1 // pred_fallthru
      _
    // Predicated region
    $region26: #{bert_forward.5} parent=1 // pred_check
      _
    $region27: #{bert_forward.5} parent=1 // pred_check_branch
      %38 = sbr.rel (0) target = $region29
    $region28: #{bert_forward.5} parent=1 // pred_region
      _
    $region29: #{bert_forward.5} parent=1 // pred_fallthru
      _
    // Predicated region
    $region30: #{bert_forward.5} parent=1 // pred_check
      _
    $region31: #{bert_forward.5} parent=1 // pred_check_branch
      %40 = sbr.rel (0) target = $region33
    $region32: #{bert_forward.5} parent=1 // pred_region
      %42 = dma.done [#allocation4], 1024
    $region33: #{bert_forward.5} parent=1 // pred_fallthru
      _
    %p43 = scmp.eq.s32.totalorder 0, 0
    // Predicated region
    $region34: #{bert_forward.5} parent=1 // pred_check
      %p44 = pneg %p43
    $region35: #{bert_forward.5} parent=1 // pred_check_branch
      %46 = sbr.rel (%p44) target = $region37
    $region36: #{bert_forward.5} parent=1 // pred_region
      %v47 = vld [vmem:[%s0] sm:$0xff]
      %v48 = vld [vmem:[%s0 + $0x8] sm:$0xff]
      %v49 = vpack.c.bf16 %v48, %v47
      %v50 = vld [vmem:[%s1] sm:$0xf]
      %v51 = vld [vmem:[%s1 + $0x4] sm:$0xf]
      %v52 = vld [vmem:[%s1 + $0x8] sm:$0xf]
      %v53 = vld [vmem:[%s1 + $0xc] sm:$0xf]
      %v54 = vld [vmem:[%s1 + $0x10] sm:$0xf]
      %v55 = vld [vmem:[%s1 + $0x14] sm:$0xf]
      %v56 = vld [vmem:[%s1 + $0x18] sm:$0xf]
      %v57 = vld [vmem:[%s1 + $0x1c] sm:$0xf]
      %v58 = vld [vmem:[%s1 + $0x20] sm:$0xf]
      %v59 = vld [vmem:[%s1 + $0x24] sm:$0xf]
      %v60 = vld [vmem:[%s1 + $0x28] sm:$0xf]
      %v61 = vld [vmem:[%s1 + $0x2c] sm:$0xf]
      %v62 = vld [vmem:[%s1 + $0x30] sm:$0xf]
      %v63 = vld [vmem:[%s1 + $0x34] sm:$0xf]
      %v64 = vld [vmem:[%s1 + $0x38] sm:$0xf]
      %v65 = vld [vmem:[%s1 + $0x3c] sm:$0xf]
      %v66 = vld [vmem:[%s2] sm:$0x1]
      %v68 = vperm.slane %v66, 0
      %v86 = vunpack.c.l.b16 %v50
      %v87 = vunpack.c.l.b16 %v51
      %v88 = vunpack.c.l.b16 %v52
      %v89 = vunpack.c.l.b16 %v53
      %v90 = vunpack.c.l.b16 %v54
      %v91 = vunpack.c.l.b16 %v55
      %v92 = vunpack.c.l.b16 %v56
      %v93 = vunpack.c.l.b16 %v57
      %v94 = vunpack.c.l.b16 %v58
      %v95 = vunpack.c.l.b16 %v59
      %v96 = vunpack.c.l.b16 %v60
      %v97 = vunpack.c.l.b16 %v61
      %v98 = vunpack.c.l.b16 %v62
      %v99 = vunpack.c.l.b16 %v63
      %v100 = vunpack.c.l.b16 %v64
      %v101 = vunpack.c.l.b16 %v65
      %v102 = vpack.c.b16 %v87, %v86
      %v103 = vpack.c.b16 %v89, %v88
      %v104 = vpack.c.b16 %v91, %v90
      %v105 = vpack.c.b16 %v93, %v92
      %v106 = vpack.c.b16 %v95, %v94
      %v107 = vpack.c.b16 %v97, %v96
      %v108 = vpack.c.b16 %v99, %v98
      %v109 = vpack.c.b16 %v101, %v100
      %118 = vmatpush.bf16.msra.mxu0 %v109
      %119 = vmatpush.bf16.msra.mxu0 %v108
      %120 = vmatpush.bf16.msra.mxu0 %v107
      %121 = vmatpush.bf16.msra.mxu0 %v106
      %122 = vmatpush.bf16.msra.mxu0 %v105
      %123 = vmatpush.bf16.msra.mxu0 %v104
      %124 = vmatpush.bf16.msra.mxu0 %v103
      %125 = vmatpush.bf16.msra.mxu0 %v102
      %126 = vmatmul.bf16.gmra.mxu0 %v49
      %v127 = vpop.f32.mrf.mxu0
      %v128 = vadd.f32 %v68, %v127
      %v129 = vpop.f32.mrf.mxu0
      %v130 = vadd.f32 %v68, %v129
      %131 = vdwg.mxu0
      %v132 = vmul.f32 %v128, 0.5
      %v133 = vmul.f32 %v130, 0.5
      %v134 = vmul.f32 %v128, 0.70710677
      %v135 = vmul.f32 %v130, 0.70710677
      %vm136 = vcmp.ge.f32.partialorder %v134, 0.0
      %vm137 = vcmp.ge.f32.partialorder %v135, 0.0
      %v138 = vsel %vm136, 1.0, -1.0
      %v139 = vsel %vm137, 1.0, -1.0
      %v140 = vand.u32 2147483647, %v134
      %v141 = vand.u32 2147483647, %v135
      %v142 = vmul.f32 %v140, 0.3275911
      %v143 = vmul.f32 %v141, 0.3275911
      %v144 = vadd.f32 %v142, 1.0
      %v145 = vadd.f32 %v143, 1.0
      %v146 = vrcp.pop %v144
      %v147 = vmul.f32 %v144, %v146
      %v148 = vsub.f32 1.0, %v147
      %v149 = vmul.f32 %v146, %v148
      %v150 = vadd.f32 %v146, %v149
      %vm151 = vweird.f32 %v144
      %vm152 = vweird.f32 %v146
      %vm153 = vmor %vm151, %vm152
      %v154 = vsel %vm153, %v146, %v150
      %v155 = vand.u32 2147483647, %v144
      %vm156 = vcmp.eq.f32.partialorder %v155, 8.507059e+37
      %v157 = vand.u32 %v144, 2147483648
      %v158 = vor.u32 1.1754944e-38, %v157
      %v159 = vsel %vm156, %v158, %v154
      %v160 = vmul.f32 1.0, %v159
      %v161 = vrcp.pop %v145
      %v162 = vmul.f32 %v145, %v161
      %v163 = vsub.f32 1.0, %v162
      %v164 = vmul.f32 %v161, %v163
      %v165 = vadd.f32 %v161, %v164
      %vm166 = vweird.f32 %v145
      %vm167 = vweird.f32 %v161
      %vm168 = vmor %vm166, %vm167
      %v169 = vsel %vm168, %v161, %v165
      %v170 = vand.u32 2147483647, %v145
      %vm171 = vcmp.eq.f32.partialorder %v170, 8.507059e+37
      %v172 = vand.u32 %v145, 2147483648
      %v173 = vor.u32 1.1754944e-38, %v172
      %v174 = vsel %vm171, %v173, %v169
      %v175 = vmul.f32 1.0, %v174
      %v176 = vmul.f32 %v160, 1.0614054
      %v177 = vmul.f32 %v175, 1.0614054
      %v178 = vadd.f32 %v176, -1.4531521
      %v179 = vadd.f32 %v177, -1.4531521
      %v180 = vmul.f32 %v178, %v160
      %v181 = vmul.f32 %v179, %v175
      %v182 = vadd.f32 %v180, 1.4214138
      %v183 = vadd.f32 %v181, 1.4214138
      %v184 = vmul.f32 %v182, %v160
      %v185 = vmul.f32 %v183, %v175
      %v186 = vadd.f32 %v184, -0.28449672
      %v187 = vadd.f32 %v185, -0.28449672
      %v188 = vmul.f32 %v186, %v160
      %v189 = vmul.f32 %v187, %v175
      %v190 = vadd.f32 %v188, 0.2548296
      %v191 = vadd.f32 %v189, 0.2548296
      %v192 = vmul.f32 %v190, %v160
      %v193 = vmul.f32 %v191, %v175
      %v194 = vsub.f32 0.0, %v140
      %v195 = vsub.f32 0.0, %v141
      %v196 = vmul.f32 %v194, %v140
      %v197 = vmul.f32 %v195, %v141
      %v198 = vmul.f32 %v196, 1.442695
      %v199 = vpow.pop %v198
      %v200 = vmul.f32 %v197, 1.442695
      %v201 = vpow.pop %v200
      %v202 = vmul.f32 %v192, %v199
      %v203 = vmul.f32 %v193, %v201
      %v204 = vsub.f32 1.0, %v202
      %v205 = vsub.f32 1.0, %v203
      %v206 = vmul.f32 %v138, %v204
      %v207 = vmul.f32 %v139, %v205
      %v208 = vadd.f32 %v206, 1.0
      %v209 = vadd.f32 %v207, 1.0
      %v210 = vmul.f32 %v132, %v208
      %v211 = vmul.f32 %v133, %v209
      %v212 = vld [vmem:[%s3] sm:$0x1]
      %v213 = vld [vmem:[%s4] sm:$0x1]
      %214 = vadd.xlane.f32.xlu0 %v210
      %v215 = vpop.xlane.xlu0 %214
      %216 = vadd.xlane.f32.xlu0 %v211
      %v217 = vpop.xlane.xlu0 %216
      %v218 = vrcp.pop 128.0
      %v219 = vmul.f32 128.0, %v218
      %v220 = vsub.f32 1.0, %v219
      %v221 = vmul.f32 %v218, %v220
      %v222 = vadd.f32 %v218, %v221
      %vm223 = vweird.f32 %v218
      %v224 = vsel %vm223, %v218, %v222
      %v225 = vmul.f32 %v215, %v224
      %v226 = vmul.f32 %v217, %v224
      %v227 = vsub.f32 %v210, %v225
      %v228 = vsub.f32 %v211, %v226
      %v229 = vmul.f32 %v227, %v227
      %v230 = vmul.f32 %v228, %v228
      %231 = vadd.xlane.f32.xlu0 %v229
      %v232 = vpop.xlane.xlu0 %231
      %233 = vadd.xlane.f32.xlu0 %v230
      %v234 = vpop.xlane.xlu0 %233
      %v235 = vmul.f32 %v232, %v224
      %v236 = vmul.f32 %v234, %v224
      %v237 = vadd.f32 %v235, 1e-05
      %v238 = vadd.f32 %v236, 1e-05
      %v239 = vrsqrt.pop %v237
      %v240 = vmul.f32 %v239, %v237
      %v241 = vmul.f32 %v240, %v239
      %v242 = vmul.f32 0.5, %v241
      %v243 = vsub.f32 1.5, %v242
      %v244 = vmul.f32 %v239, %v243
      %vm245 = vweird.f32 %v237
      %vm246 = vweird.f32 %v239
      %vm247 = vmor %vm245, %vm246
      %v248 = vsel %vm247, %v239, %v244
      %v249 = vrsqrt.pop %v238
      %v250 = vmul.f32 %v249, %v238
      %v251 = vmul.f32 %v250, %v249
      %v252 = vmul.f32 0.5, %v251
      %v253 = vsub.f32 1.5, %v252
      %v254 = vmul.f32 %v249, %v253
      %vm255 = vweird.f32 %v238
      %vm256 = vweird.f32 %v249
      %vm257 = vmor %vm255, %vm256
      %v258 = vsel %vm257, %v249, %v254
      %v259 = vmul.f32 %v227, %v248
      %v260 = vmul.f32 %v228, %v258
      %v262 = vperm.slane %v212, 0
      %v264 = vmul.f32 %v259, %v262
      %v265 = vmul.f32 %v260, %v262
      %v267 = vperm.slane %v213, 0
      %v269 = vadd.f32 %v264, %v267
      %v270 = vadd.f32 %v265, %v267
      %271 = vst [vmem:[#allocation2] sm:$0xff] %v269
      %272 = vst [vmem:[#allocation2 + $0x8] sm:$0xff] %v270
    $region37: #{bert_forward.5} parent=1 // pred_fallthru
      _
    %v273 = vld [vmem:[#allocation2] sm:$0xff]
    %v274 = vld [vmem:[#allocation2 + $0x8] sm:$0xff]
    %v275 = vpack.c.bf16 %v274, %v273
    %v276 = vld [vmem:[#allocation3] sm:$0xf]
    %v277 = vld [vmem:[#allocation3 + $0x4] sm:$0xf]
    %v278 = vld [vmem:[#allocation3 + $0x8] sm:$0xf]
    %v279 = vld [vmem:[#allocation3 + $0xc] sm:$0xf]
    %v280 = vld [vmem:[#allocation3 + $0x10] sm:$0xf]
    %v281 = vld [vmem:[#allocation3 + $0x14] sm:$0xf]
    %v282 = vld [vmem:[#allocation3 + $0x18] sm:$0xf]
    %v283 = vld [vmem:[#allocation3 + $0x1c] sm:$0xf]
    %v284 = vld [vmem:[#allocation3 + $0x20] sm:$0xf]
    %v285 = vld [vmem:[#allocation3 + $0x24] sm:$0xf]
    %v286 = vld [vmem:[#allocation3 + $0x28] sm:$0xf]
    %v287 = vld [vmem:[#allocation3 + $0x2c] sm:$0xf]
    %v288 = vld [vmem:[#allocation3 + $0x30] sm:$0xf]
    %v289 = vld [vmem:[#allocation3 + $0x34] sm:$0xf]
    %v290 = vld [vmem:[#allocation3 + $0x38] sm:$0xf]
    %v291 = vld [vmem:[#allocation3 + $0x3c] sm:$0xf]
    %v292 = vld [vmem:[%s6] sm:$0x1]
    %v294 = vperm.slane %v292, 0
    %v312 = vunpack.c.l.b16 %v276
    %v313 = vunpack.c.l.b16 %v277
    %v314 = vunpack.c.l.b16 %v278
    %v315 = vunpack.c.l.b16 %v279
    %v316 = vunpack.c.l.b16 %v280
    %v317 = vunpack.c.l.b16 %v281
    %v318 = vunpack.c.l.b16 %v282
    %v319 = vunpack.c.l.b16 %v283
    %v320 = vunpack.c.l.b16 %v284
    %v321 = vunpack.c.l.b16 %v285
    %v322 = vunpack.c.l.b16 %v286
    %v323 = vunpack.c.l.b16 %v287
    %v324 = vunpack.c.l.b16 %v288
    %v325 = vunpack.c.l.b16 %v289
    %v326 = vunpack.c.l.b16 %v290
    %v327 = vunpack.c.l.b16 %v291
    %v328 = vpack.c.b16 %v313, %v312
    %v329 = vpack.c.b16 %v315, %v314
    %v330 = vpack.c.b16 %v317, %v316
    %v331 = vpack.c.b16 %v319, %v318
    %v332 = vpack.c.b16 %v321, %v320
    %v333 = vpack.c.b16 %v323, %v322
    %v334 = vpack.c.b16 %v325, %v324
    %v335 = vpack.c.b16 %v327, %v326
    %344 = vmatpush.bf16.msra.mxu0 %v335
    %345 = vmatpush.bf16.msra.mxu0 %v334
    %346 = vmatpush.bf16.msra.mxu0 %v333
    %347 = vmatpush.bf16.msra.mxu0 %v332
    %348 = vmatpush.bf16.msra.mxu0 %v331
    %349 = vmatpush.bf16.msra.mxu0 %v330
    %350 = vmatpush.bf16.msra.mxu0 %v329
    %351 = vmatpush.bf16.msra.mxu0 %v328
    %352 = vmatmul.bf16.gmra.mxu0 %v275
    %v353 = vpop.f32.mrf.mxu0
    %v354 = vadd.f32 %v294, %v353
    %v355 = vpop.f32.mrf.mxu0
    %v356 = vadd.f32 %v294, %v355
    %357 = vdwg.mxu0
    %358 = vst [vmem:[#allocation6] sm:$0xff] %v354
    %359 = vst [vmem:[#allocation6 + $0x8] sm:$0xff] %v356
    // Predicated region
    $region38: #{bert_forward.5} parent=1 // pred_check
      _
    $region39: #{bert_forward.5} parent=1 // pred_check_branch
      %361 = sbr.rel (0) target = $region41
    $region40: #{bert_forward.5} parent=1 // pred_region
      %363 = vsyncadd [#allocation5], 0
      %s364 = sshll.u32 [#allocation6], 4
      %s365 = int_to_ptr.vmem [resolvable:$true] %s364
      %s366 = sshll.u32 %s7, 4
      %s367 = int_to_ptr.hbm [resolvable:$true] %s366
      %372 = dma.vmem_to_hbm [thread:$0]  %s365, 256, %s367, [#allocation5], 128, 128, 8
    $region41: #{bert_forward.5} parent=1 // pred_fallthru
      _
    // Predicated region
    $region42: #{bert_forward.5} parent=1 // pred_check
      _
    $region43: #{bert_forward.5} parent=1 // pred_check_branch
      %374 = sbr.rel (0) target = $region45
    $region44: #{bert_forward.5} parent=1 // pred_region
      %376 = dma.done [#allocation5], 256
    $region45: #{bert_forward.5} parent=1 // pred_fallthru
      _
    %377 = vsyncpa [#allocation4], 1
    %378 = vsyncpa [#allocation5], 1

// kernel: bert_forward.4
$region0: #{bert_forward.4}
  #allocation0 [shape = 'u32[]', space=smem, size = 0x4, offset = 0x4, fixed_abs, tag = 'smem constant byte address 0x4 - core index']
  #allocation1 [shape = 'u32[72,128]{1,0:T(1,128)}', space=vmem, size = 0x9000, scoped, tag = 'internal scratch']
  %s0 = inlined_call_operand.vmem [shape: f32[16,128], index: 0, kind: input, shape index: {}]
  %s1 = inlined_call_operand.hbm [shape: bf16[2,128,384], index: 1, kind: input, shape index: {}]
  %s2 = inlined_call_operand.vmem [shape: f32[2,1,384], index: 2, kind: input, shape index: {}]
  %s3 = inlined_call_operand.hbm [shape: bf16[2,128,128], index: 3, kind: input, shape index: {}]
  %s4 = inlined_call_operand.vmem [shape: f32[2,1,128], index: 4, kind: input, shape index: {}]
  %s5 = inlined_call_operand.vmem [shape: f32[2,1,128], index: 5, kind: input, shape index: {}]
  %s6 = inlined_call_operand.vmem [shape: f32[2,1,128], index: 6, kind: input, shape index: {}]
  %s7 = inlined_call_operand.vmem [shape: bf16[2,128,256], index: 7, kind: input, shape index: {}]
  %s8 = inlined_call_operand.vmem [shape: f32[2,1,256], index: 8, kind: input, shape index: {}]
  %s9 = inlined_call_operand.hbm [shape: bf16[2,256,128], index: 9, kind: input, shape index: {}]
  %s10 = inlined_call_operand.vmem [shape: f32[2,1,128], index: 10, kind: input, shape index: {}]
  %s11 = inlined_call_operand.vmem [shape: f32[2,1,128], index: 11, kind: input, shape index: {}]
  %s12 = inlined_call_operand.vmem [shape: f32[2,1,128], index: 12, kind: input, shape index: {}]
  %s13 = inlined_call_operand.vmem [shape: f32[16,128], index: 13, kind: output, shape index: {}]
  %s14 = sld [smem:[#allocation0]]
  $region101: #{bert_forward.4} parent=0
    _
  %s16 = ssub.s32 1, %s14
  %s17 = scalar_select 0, %s16, %s14
  $region1: #{bert_forward.4} parent=0
    #allocation2 [shape = 'u8[196608]{0}', space=vmem, size = 0x30000, scoped, tag = 'input window, operand 1']
    #allocation3 [shape = 's32[2]{0}', space=sflag, size = 0x8, scoped, tag = 'scoped memory for bert_forward.4']
    #allocation4 [shape = 'u8[65536]{0}', space=vmem, size = 0x10000, scoped, tag = 'input window, operand 3']
    #allocation5 [shape = 's32[2]{0}', space=sflag, size = 0x8, scoped, tag = 'scoped memory for bert_forward.4']
    #allocation6 [shape = 'u8[131072]{0}', space=vmem, size = 0x20000, scoped, tag = 'input window, operand 9']
    %18 = vsyncpa [#allocation3], 0
    %s19 = scalar_lea.sflag [#allocation3], 1
    %20 = vsyncpa %s19, 0
    %21 = vsyncpa [#allocation5], 0
    %s22 = scalar_lea.sflag [#allocation5], 1
    %23 = vsyncpa %s22, 0
    loop: start=0, step=1, limit=4
    $region2: #{bert_forward.4} parent=1 // loop_pre_header
      _
    $region3: #{bert_forward.4} parent=1 // loop_header
      %s25 = sphi 0, %s29
      %p26 = scmp.ge.s32.totalorder %s25, 4
      %s32 = sphi 0, %s44
      %s33 = sphi 0, %s40
      %s34 = sphi 0, %s32
      %s35 = sphi 0, %s33
      %s36 = sphi 0, %s34
      %s37 = sphi 0, %s35
      %s47 = sphi 0, %s49
      %s50 = sphi 0, %s47
      %s51 = sphi 0, %s50
      %s67 = sphi 0, %s51
      %s73 = sphi 0, %s75
      %s76 = sphi 0, %s73
      %s77 = sphi 0, %s76
      %s93 = sphi 0, %s77
      %s99 = sphi 0, %s101
      %s102 = sphi 0, %s99
      %s103 = sphi 0, %s102
      %s119 = sphi 0, %s103
      %s125 = sphi 0, %s127
      %s128 = sphi 0, %s125
      %s129 = sphi 0, %s128
      %s145 = sphi 0, %s129
      %s151 = sphi 0, %s153
      %s154 = sphi 0, %s151
      %s155 = sphi 0, %s154
      %s171 = sphi 0, %s155
      %s177 = sphi 0, %s179
      %s180 = sphi 0, %s177
      %s181 = sphi 0, %s180
      %s197 = sphi 0, %s181
      %s203 = sphi 0, %s205
      %s206 = sphi 0, %s203
      %s207 = sphi 0, %s206
      %s223 = sphi 0, %s207
      %s229 = sphi 0, %s231
      %s232 = sphi 0, %s229
      %s233 = sphi 0, %s232
      %s249 = sphi 0, %s233
      %s255 = sphi 0, %s257
      %s258 = sphi 0, %s255
      %s259 = sphi 0, %s258
      %s275 = sphi 0, %s259
      %s281 = sphi 0, %s283
      %s284 = sphi 0, %s281
      %s285 = sphi 0, %s284
      %s301 = sphi 0, %s285
      %s307 = sphi 0, %s309
      %s310 = sphi 0, %s307
      %s311 = sphi 0, %s310
      %s327 = sphi 0, %s311
      %s333 = sphi 0, %s335
      %s336 = sphi 0, %s333
      %s337 = sphi 0, %s336
      %s353 = sphi 0, %s337
      %s359 = sphi 0, %s361
      %s362 = sphi 0, %s359
      %s363 = sphi 0, %s362
      %s379 = sphi 0, %s363
      %s385 = sphi 0, %s387
      %s388 = sphi 0, %s385
      %s389 = sphi 0, %s388
      %s405 = sphi 0, %s389
    $region4: #{bert_forward.4} parent=1 // loop_header_branch
      %28 = sbr.rel (%p26) target = $region8
    $region5: #{bert_forward.4} parent=1 // loop_body
      %s30 = ssub.s32 %s25, 1
      %s31 = ssub.s32 %s25, 2
      %s38 = sadd.s32 1, %s33
      %p39 = scmp.ge.s32.totalorder %s38, 2
      %s40 = scalar_select %p39, 0, %s38
      %s41 = sadd.s32 1, %s32
      %s42 = scalar_select %p39, %s41, %s32
      %p43 = scmp.ge.s32.totalorder %s42, 1
      %s44 = scalar_select %p43, 0, %s42
      %s45 = ssub.s32 %s32, %s44
      %p46 = scmp.eq.s32.totalorder %s45, 0
      %s48 = sadd.s32 %s47, 1
      %s49 = scalar_select %p46, %s47, %s48
      %p52 = pneg %p46
      %p53 = scmp.eq.s32.totalorder %s25, 1
      %p54 = por %p52, %p53
      %p55 = scmp.ne.s32.totalorder %s47, %s50
      %p56 = scmp.eq.s32.totalorder %s25, 0
      %p57 = por %p55, %p56
      %p58 = scmp.ne.s32.totalorder %s47, %s50
      %p59 = scmp.eq.s32.totalorder %s30, 1
      %p60 = por %p58, %p59
      %p61 = scmp.ne.s32.totalorder %s50, %s51
      %p62 = scmp.eq.s32.totalorder %s30, 0
      %p63 = por %p61, %p62
      %p64 = scmp.ne.s32.totalorder %s50, %s51
      %p65 = scmp.eq.s32.totalorder %s31, 1
      %p66 = por %p64, %p65
      %p68 = scmp.ne.s32.totalorder %s51, %s67
      %p69 = scmp.eq.s32.totalorder %s31, 0
      %p70 = por %p68, %p69
      %s71 = ssub.s32 %s33, %s40
      %p72 = scmp.eq.s32.totalorder %s71, 0
      %s74 = sadd.s32 %s73, 1
      %s75 = scalar_select %p72, %s73, %s74
      %p78 = pneg %p72
      %p79 = scmp.eq.s32.totalorder %s25, 1
      %p80 = por %p78, %p79
      %p81 = scmp.ne.s32.totalorder %s73, %s76
      %p82 = scmp.eq.s32.totalorder %s25, 0
      %p83 = por %p81, %p82
      %p84 = scmp.ne.s32.totalorder %s73, %s76
      %p85 = scmp.eq.s32.totalorder %s30, 1
      %p86 = por %p84, %p85
      %p87 = scmp.ne.s32.totalorder %s76, %s77
      %p88 = scmp.eq.s32.totalorder %s30, 0
      %p89 = por %p87, %p88
      %p90 = scmp.ne.s32.totalorder %s76, %s77
      %p91 = scmp.eq.s32.totalorder %s31, 1
      %p92 = por %p90, %p91
      %p94 = scmp.ne.s32.totalorder %s77, %s93
      %p95 = scmp.eq.s32.totalorder %s31, 0
      %p96 = por %p94, %p95
      %s97 = ssub.s32 %s33, %s40
      %p98 = scmp.eq.s32.totalorder %s97, 0
      %s100 = sadd.s32 %s99, 1
      %s101 = scalar_select %p98, %s99, %s100
      %p104 = pneg %p98
      %p105 = scmp.eq.s32.totalorder %s25, 1
      %p106 = por %p104, %p105
      %p107 = scmp.ne.s32.totalorder %s99, %s102
      %p108 = scmp.eq.s32.totalorder %s25, 0
      %p109 = por %p107, %p108
      %p110 = scmp.ne.s32.totalorder %s99, %s102
      %p111 = scmp.eq.s32.totalorder %s30, 1
      %p112 = por %p110, %p111
      %p113 = scmp.ne.s32.totalorder %s102, %s103
      %p114 = scmp.eq.s32.totalorder %s30, 0
      %p115 = por %p113, %p114
      %p116 = scmp.ne.s32.totalorder %s102, %s103
      %p117 = scmp.eq.s32.totalorder %s31, 1
      %p118 = por %p116, %p117
      %p120 = scmp.ne.s32.totalorder %s103, %s119
      %p121 = scmp.eq.s32.totalorder %s31, 0
      %p122 = por %p120, %p121
      %s123 = ssub.s32 %s33, %s40
      %p124 = scmp.eq.s32.totalorder %s123, 0
      %s126 = sadd.s32 %s125, 1
      %s127 = scalar_select %p124, %s125, %s126
      %p130 = pneg %p124
      %p131 = scmp.eq.s32.totalorder %s25, 1
      %p132 = por %p130, %p131
      %p133 = scmp.ne.s32.totalorder %s125, %s128
      %p134 = scmp.eq.s32.totalorder %s25, 0
      %p135 = por %p133, %p134
      %p136 = scmp.ne.s32.totalorder %s125, %s128
      %p137 = scmp.eq.s32.totalorder %s30, 1
      %p138 = por %p136, %p137
      %p139 = scmp.ne.s32.totalorder %s128, %s129
      %p140 = scmp.eq.s32.totalorder %s30, 0
      %p141 = por %p139, %p140
      %p142 = scmp.ne.s32.totalorder %s128, %s129
      %p143 = scmp.eq.s32.totalorder %s31, 1
      %p144 = por %p142, %p143
      %p146 = scmp.ne.s32.totalorder %s129, %s145
      %p147 = scmp.eq.s32.totalorder %s31, 0
      %p148 = por %p146, %p147
      %s149 = ssub.s32 %s33, %s40
      %p150 = scmp.eq.s32.totalorder %s149, 0
      %s152 = sadd.s32 %s151, 1
      %s153 = scalar_select %p150, %s151, %s152
      %p156 = pneg %p150
      %p157 = scmp.eq.s32.totalorder %s25, 1
      %p158 = por %p156, %p157
      %p159 = scmp.ne.s32.totalorder %s151, %s154
      %p160 = scmp.eq.s32.totalorder %s25, 0
      %p161 = por %p159, %p160
      %p162 = scmp.ne.s32.totalorder %s151, %s154
      %p163 = scmp.eq.s32.totalorder %s30, 1
      %p164 = por %p162, %p163
      %p165 = scmp.ne.s32.totalorder %s154, %s155
      %p166 = scmp.eq.s32.totalorder %s30, 0
      %p167 = por %p165, %p166
      %p168 = scmp.ne.s32.totalorder %s154, %s155
      %p169 = scmp.eq.s32.totalorder %s31, 1
      %p170 = por %p168, %p169
      %p172 = scmp.ne.s32.totalorder %s155, %s171
      %p173 = scmp.eq.s32.totalorder %s31, 0
      %p174 = por %p172, %p173
      %s175 = ssub.s32 %s33, %s40
      %p176 = scmp.eq.s32.totalorder %s175, 0
      %s178 = sadd.s32 %s177, 1
      %s179 = scalar_select %p176, %s177, %s178
      %p182 = pneg %p176
      %p183 = scmp.eq.s32.totalorder %s25, 1
      %p184 = por %p182, %p183
      %p185 = scmp.ne.s32.totalorder %s177, %s180
      %p186 = scmp.eq.s32.totalorder %s25, 0
      %p187 = por %p185, %p186
      %p188 = scmp.ne.s32.totalorder %s177, %s180
      %p189 = scmp.eq.s32.totalorder %s30, 1
      %p190 = por %p188, %p189
      %p191 = scmp.ne.s32.totalorder %s180, %s181
      %p192 = scmp.eq.s32.totalorder %s30, 0
      %p193 = por %p191, %p192
      %p194 = scmp.ne.s32.totalorder %s180, %s181
      %p195 = scmp.eq.s32.totalorder %s31, 1
      %p196 = por %p194, %p195
      %p198 = scmp.ne.s32.totalorder %s181, %s197
      %p199 = scmp.eq.s32.totalorder %s31, 0
      %p200 = por %p198, %p199
      %s201 = ssub.s32 %s33, %s40
      %p202 = scmp.eq.s32.totalorder %s201, 0
      %s204 = sadd.s32 %s203, 1
      %s205 = scalar_select %p202, %s203, %s204
      %p208 = pneg %p202
      %p209 = scmp.eq.s32.totalorder %s25, 1
      %p210 = por %p208, %p209
      %p211 = scmp.ne.s32.totalorder %s203, %s206
      %p212 = scmp.eq.s32.totalorder %s25, 0
      %p213 = por %p211, %p212
      %p214 = scmp.ne.s32.totalorder %s203, %s206
      %p215 = scmp.eq.s32.totalorder %s30, 1
      %p216 = por %p214, %p215
      %p217 = scmp.ne.s32.totalorder %s206, %s207
      %p218 = scmp.eq.s32.totalorder %s30, 0
      %p219 = por %p217, %p218
      %p220 = scmp.ne.s32.totalorder %s206, %s207
      %p221 = scmp.eq.s32.totalorder %s31, 1
      %p222 = por %p220, %p221
      %p224 = scmp.ne.s32.totalorder %s207, %s223
      %p225 = scmp.eq.s32.totalorder %s31, 0
      %p226 = por %p224, %p225
      %s227 = ssub.s32 %s33, %s40
      %p228 = scmp.eq.s32.totalorder %s227, 0
      %s230 = sadd.s32 %s229, 1
      %s231 = scalar_select %p228, %s229, %s230
      %p234 = pneg %p228
      %p235 = scmp.eq.s32.totalorder %s25, 1
      %p236 = por %p234, %p235
      %p237 = scmp.ne.s32.totalorder %s229, %s232
      %p238 = scmp.eq.s32.totalorder %s25, 0
      %p239 = por %p237, %p238
      %p240 = scmp.ne.s32.totalorder %s229, %s232
      %p241 = scmp.eq.s32.totalorder %s30, 1
      %p242 = por %p240, %p241
      %p243 = scmp.ne.s32.totalorder %s232, %s233
      %p244 = scmp.eq.s32.totalorder %s30, 0
      %p245 = por %p243, %p244
      %p246 = scmp.ne.s32.totalorder %s232, %s233
      %p247 = scmp.eq.s32.totalorder %s31, 1
      %p248 = por %p246, %p247
      %p250 = scmp.ne.s32.totalorder %s233, %s249
      %p251 = scmp.eq.s32.totalorder %s31, 0
      %p252 = por %p250, %p251
      %s253 = ssub.s32 %s33, %s40
      %p254 = scmp.eq.s32.totalorder %s253, 0
      %s256 = sadd.s32 %s255, 1
      %s257 = scalar_select %p254, %s255, %s256
      %p260 = pneg %p254
      %p261 = scmp.eq.s32.totalorder %s25, 1
      %p262 = por %p260, %p261
      %p263 = scmp.ne.s32.totalorder %s255, %s258
      %p264 = scmp.eq.s32.totalorder %s25, 0
      %p265 = por %p263, %p264
      %p266 = scmp.ne.s32.totalorder %s255, %s258
      %p267 = scmp.eq.s32.totalorder %s30, 1
      %p268 = por %p266, %p267
      %p269 = scmp.ne.s32.totalorder %s258, %s259
      %p270 = scmp.eq.s32.totalorder %s30, 0
      %p271 = por %p269, %p270
      %p272 = scmp.ne.s32.totalorder %s258, %s259
      %p273 = scmp.eq.s32.totalorder %s31, 1
      %p274 = por %p272, %p273
      %p276 = scmp.ne.s32.totalorder %s259, %s275
      %p277 = scmp.eq.s32.totalorder %s31, 0
      %p278 = por %p276, %p277
      %s279 = ssub.s32 %s33, %s40
      %p280 = scmp.eq.s32.totalorder %s279, 0
      %s282 = sadd.s32 %s281, 1
      %s283 = scalar_select %p280, %s281, %s282
      %p286 = pneg %p280
      %p287 = scmp.eq.s32.totalorder %s25, 1
      %p288 = por %p286, %p287
      %p289 = scmp.ne.s32.totalorder %s281, %s284
      %p290 = scmp.eq.s32.totalorder %s25, 0
      %p291 = por %p289, %p290
      %p292 = scmp.ne.s32.totalorder %s281, %s284
      %p293 = scmp.eq.s32.totalorder %s30, 1
      %p294 = por %p292, %p293
      %p295 = scmp.ne.s32.totalorder %s284, %s285
      %p296 = scmp.eq.s32.totalorder %s30, 0
      %p297 = por %p295, %p296
      %p298 = scmp.ne.s32.totalorder %s284, %s285
      %p299 = scmp.eq.s32.totalorder %s31, 1
      %p300 = por %p298, %p299
      %p302 = scmp.ne.s32.totalorder %s285, %s301
      %p303 = scmp.eq.s32.totalorder %s31, 0
      %p304 = por %p302, %p303
      %s305 = ssub.s32 %s33, %s40
      %p306 = scmp.eq.s32.totalorder %s305, 0
      %s308 = sadd.s32 %s307, 1
      %s309 = scalar_select %p306, %s307, %s308
      %p312 = pneg %p306
      %p313 = scmp.eq.s32.totalorder %s25, 1
      %p314 = por %p312, %p313
      %p315 = scmp.ne.s32.totalorder %s307, %s310
      %p316 = scmp.eq.s32.totalorder %s25, 0
      %p317 = por %p315, %p316
      %p318 = scmp.ne.s32.totalorder %s307, %s310
      %p319 = scmp.eq.s32.totalorder %s30, 1
      %p320 = por %p318, %p319
      %p321 = scmp.ne.s32.totalorder %s310, %s311
      %p322 = scmp.eq.s32.totalorder %s30, 0
      %p323 = por %p321, %p322
      %p324 = scmp.ne.s32.totalorder %s310, %s311
      %p325 = scmp.eq.s32.totalorder %s31, 1
      %p326 = por %p324, %p325
      %p328 = scmp.ne.s32.totalorder %s311, %s327
      %p329 = scmp.eq.s32.totalorder %s31, 0
      %p330 = por %p328, %p329
      %s331 = ssub.s32 %s33, %s40
      %p332 = scmp.eq.s32.totalorder %s331, 0
      %s334 = sadd.s32 %s333, 1
      %s335 = scalar_select %p332, %s333, %s334
      %p338 = pneg %p332
      %p339 = scmp.eq.s32.totalorder %s25, 1
      %p340 = por %p338, %p339
      %p341 = scmp.ne.s32.totalorder %s333, %s336
      %p342 = scmp.eq.s32.totalorder %s25, 0
      %p343 = por %p341, %p342
      %p344 = scmp.ne.s32.totalorder %s333, %s336
      %p345 = scmp.eq.s32.totalorder %s30, 1
      %p346 = por %p344, %p345
      %p347 = scmp.ne.s32.totalorder %s336, %s337
      %p348 = scmp.eq.s32.totalorder %s30, 0
      %p349 = por %p347, %p348
      %p350 = scmp.ne.s32.totalorder %s336, %s337
      %p351 = scmp.eq.s32.totalorder %s31, 1
      %p352 = por %p350, %p351
      %p354 = scmp.ne.s32.totalorder %s337, %s353
      %p355 = scmp.eq.s32.totalorder %s31, 0
      %p356 = por %p354, %p355
      %s357 = ssub.s32 %s33, %s40
      %p358 = scmp.eq.s32.totalorder %s357, 0
      %s360 = sadd.s32 %s359, 1
      %s361 = scalar_select %p358, %s359, %s360
      %p364 = pneg %p358
      %p365 = scmp.eq.s32.totalorder %s25, 1
      %p366 = por %p364, %p365
      %p367 = scmp.ne.s32.totalorder %s359, %s362
      %p368 = scmp.eq.s32.totalorder %s25, 0
      %p369 = por %p367, %p368
      %p370 = scmp.ne.s32.totalorder %s359, %s362
      %p371 = scmp.eq.s32.totalorder %s30, 1
      %p372 = por %p370, %p371
      %p373 = scmp.ne.s32.totalorder %s362, %s363
      %p374 = scmp.eq.s32.totalorder %s30, 0
      %p375 = por %p373, %p374
      %p376 = scmp.ne.s32.totalorder %s362, %s363
      %p377 = scmp.eq.s32.totalorder %s31, 1
      %p378 = por %p376, %p377
      %p380 = scmp.ne.s32.totalorder %s363, %s379
      %p381 = scmp.eq.s32.totalorder %s31, 0
      %p382 = por %p380, %p381
      %s383 = ssub.s32 %s32, %s44
      %p384 = scmp.eq.s32.totalorder %s383, 0
      %s386 = sadd.s32 %s385, 1
      %s387 = scalar_select %p384, %s385, %s386
      %p390 = pneg %p384
      %p391 = scmp.eq.s32.totalorder %s25, 1
      %p392 = por %p390, %p391
      %p393 = scmp.ne.s32.totalorder %s385, %s388
      %p394 = scmp.eq.s32.totalorder %s25, 0
      %p395 = por %p393, %p394
      %p396 = scmp.ne.s32.totalorder %s385, %s388
      %p397 = scmp.eq.s32.totalorder %s30, 1
      %p398 = por %p396, %p397
      %p399 = scmp.ne.s32.totalorder %s388, %s389
      %p400 = scmp.eq.s32.totalorder %s30, 0
      %p401 = por %p399, %p400
      %p402 = scmp.ne.s32.totalorder %s388, %s389
      %p403 = scmp.eq.s32.totalorder %s31, 1
      %p404 = por %p402, %p403
      %p406 = scmp.ne.s32.totalorder %s389, %s405
      %p407 = scmp.eq.s32.totalorder %s31, 0
      %p408 = por %p406, %p407
      %p409 = scmp.le.s32.totalorder 1, %s25
      %p410 = scmp.lt.s32.totalorder %s25, 3
      %p411 = pnand %p409, %p410
      %p412 = pneg %p411
      // Predicated region
      $region9: #{bert_forward.4} parent=5 // pred_check
        _
      $region10: #{bert_forward.4} parent=5 // pred_check_branch
        %414 = sbr.rel (%p411) target = $region12
      $region11: #{bert_forward.4} parent=5 // pred_region
        %s415 = ssub.s32 %s25, 1
        // Predicated region
        $region13: #{bert_forward.4} parent=11 // pred_check
          %p416 = pneg %p63
        $region14: #{bert_forward.4} parent=11 // pred_check_branch
          %418 = sbr.rel (%p416) target = $region16
        $region15: #{bert_forward.4} parent=11 // pred_region
          %s419 = smul.u32 2, %s34
          %p420 = scmp.lt.s32.totalorder %s419, 1
          %s421 = scalar_select %p420, %s419, 1
          %s422 = smul.addr %s421, 8
          %s423 = scalar_lea.vmem %s0, %s422
          %s424 = smul.u32 2, %s34
        $region16: #{bert_forward.4} parent=11 // pred_fallthru
          _
      $region12: #{bert_forward.4} parent=5 // pred_fallthru
        _
      %p425 = scmp.lt.s32.totalorder %s25, 2
      // Predicated region
      $region17: #{bert_forward.4} parent=5 // pred_check
        %p426 = pneg %p425
      $region18: #{bert_forward.4} parent=5 // pred_check_branch
        %428 = sbr.rel (%p426) target = $region20
      $region19: #{bert_forward.4} parent=5 // pred_region
        // Predicated region
        $region21: #{bert_forward.4} parent=19 // pred_check
          %p429 = pneg %p83
        $region22: #{bert_forward.4} parent=19 // pred_check_branch
          %431 = sbr.rel (%p429) target = $region24
        $region23: #{bert_forward.4} parent=19 // pred_region
          %s432 = sand.u32 %s73, 1
          %s433 = scalar_lea.sflag [#allocation3], %s432
          %s434 = sand.u32 %s73, 1
          %s435 = smul.addr %s434, 192
          %s436 = scalar_lea.vmem [#allocation2], %s435
          %438 = vsyncadd %s433, 0
          %s439 = smul.addr %s33, 48
          %s440 = smul.addr %s439, 4
          %s441 = scalar_lea.hbm %s1, %s440
          %s442 = sshll.u32 %s441, 4
          %s443 = int_to_ptr.hbm [resolvable:$true] %s442
          %s444 = sshll.u32 %s436, 4
          %s445 = int_to_ptr.vmem [resolvable:$true] %s444
          %450 = dma.hbm_to_vmem [thread:$0]  %s443, 3072, %s445, %s433, 192, 192, 12
        $region24: #{bert_forward.4} parent=19 // pred_fallthru
          _
        // Predicated region
        $region25: #{bert_forward.4} parent=19 // pred_check
          %p451 = pneg %p109
        $region26: #{bert_forward.4} parent=19 // pred_check_branch
          %453 = sbr.rel (%p451) target = $region28
        $region27: #{bert_forward.4} parent=19 // pred_region
          %p454 = scmp.lt.s32.totalorder %s33, 1
          %s455 = scalar_select %p454, %s33, 1
          %s456 = smul.addr %s455, 3
          %s457 = scalar_lea.vmem %s2, %s456
        $region28: #{bert_forward.4} parent=19 // pred_fallthru
          _
        // Predicated region
        $region29: #{bert_forward.4} parent=19 // pred_check
          %p458 = pneg %p135
        $region30: #{bert_forward.4} parent=19 // pred_check_branch
          %460 = sbr.rel (%p458) target = $region32
        $region31: #{bert_forward.4} parent=19 // pred_region
          %s461 = sand.u32 %s25, 1
          %s462 = scalar_lea.sflag [#allocation5], %s461
          %s463 = sand.u32 %s125, 1
          %s464 = smul.addr %s463, 64
          %s465 = scalar_lea.vmem [#allocation4], %s464
          %467 = vsyncadd %s462, 0
          %s468 = smul.addr %s33, 16
          %s469 = smul.addr %s468, 4
          %s470 = scalar_lea.hbm %s3, %s469
          %s471 = sshll.u32 %s470, 4
          %s472 = int_to_ptr.hbm [resolvable:$true] %s471
          %s473 = sshll.u32 %s465, 4
          %s474 = int_to_ptr.vmem [resolvable:$true] %s473
          %479 = dma.hbm_to_vmem [thread:$0]  %s472, 1024, %s474, %s462, 64, 64, 4
        $region32: #{bert_forward.4} parent=19 // pred_fallthru
          _
        // Predicated region
        $region33: #{bert_forward.4} parent=19 // pred_check
          %p480 = pneg %p161
        $region34: #{bert_forward.4} parent=19 // pred_check_branch
          %482 = sbr.rel (%p480) target = $region36
        $region35: #{bert_forward.4} parent=19 // pred_region
          %p483 = scmp.lt.s32.totalorder %s33, 1
          %s484 = scalar_select %p483, %s33, 1
          %s485 = scalar_lea.vmem %s4, %s484
        $region36: #{bert_forward.4} parent=19 // pred_fallthru
          _
        // Predicated region
        $region37: #{bert_forward.4} parent=19 // pred_check
          %p486 = pneg %p187
        $region38: #{bert_forward.4} parent=19 // pred_check_branch
          %488 = sbr.rel (%p486) target = $region40
        $region39: #{bert_forward.4} parent=19 // pred_region
          %p489 = scmp.lt.s32.totalorder %s33, 1
          %s490 = scalar_select %p489, %s33, 1
          %s491 = scalar_lea.vmem %s5, %s490
        $region40: #{bert_forward.4} parent=19 // pred_fallthru
          _
        // Predicated region
        $region41: #{bert_forward.4} parent=19 // pred_check
          %p492 = pneg %p213
        $region42: #{bert_forward.4} parent=19 // pred_check_branch
          %494 = sbr.rel (%p492) target = $region44
        $region43: #{bert_forward.4} parent=19 // pred_region
          %p495 = scmp.lt.s32.totalorder %s33, 1
          %s496 = scalar_select %p495, %s33, 1
          %s497 = scalar_lea.vmem %s6, %s496
        $region44: #{bert_forward.4} parent=19 // pred_fallthru
          _
        // Predicated region
        $region45: #{bert_forward.4} parent=19 // pred_check
          %p498 = pneg %p239
        $region46: #{bert_forward.4} parent=19 // pred_check_branch
          %500 = sbr.rel (%p498) target = $region48
        $region47: #{bert_forward.4} parent=19 // pred_region
          %p501 = scmp.lt.s32.totalorder %s33, 1
          %s502 = scalar_select %p501, %s33, 1
          %s503 = smul.addr %s502, 32
          %s504 = smul.addr %s503, 4
          %s505 = scalar_lea.vmem %s7, %s504
        $region48: #{bert_forward.4} parent=19 // pred_fallthru
          _
        // Predicated region
        $region49: #{bert_forward.4} parent=19 // pred_check
          %p506 = pneg %p265
        $region50: #{bert_forward.4} parent=19 // pred_check_branch
          %508 = sbr.rel (%p506) target = $region52
        $region51: #{bert_forward.4} parent=19 // pred_region
          %p509 = scmp.lt.s32.totalorder %s33, 1
          %s510 = scalar_select %p509, %s33, 1
          %s511 = smul.addr %s510, 2
          %s512 = scalar_lea.vmem %s8, %s511
        $region52: #{bert_forward.4} parent=19 // pred_fallthru
          _
        // Predicated region
        $region53: #{bert_forward.4} parent=19 // pred_check
          %p513 = pneg %p291
        $region54: #{bert_forward.4} parent=19 // pred_check_branch
          %515 = sbr.rel (%p513) target = $region56
        $region55: #{bert_forward.4} parent=19 // pred_region
          %s516 = sand.u32 %s25, 1
          %s517 = scalar_lea.sflag [#allocation5], %s516
          %s518 = sand.u32 %s281, 1
          %s519 = smul.addr %s518, 128
          %s520 = scalar_lea.vmem [#allocation6], %s519
          %522 = vsyncadd %s517, 0
          %s523 = smul.addr %s33, 32
          %s524 = smul.addr %s523, 4
          %s525 = scalar_lea.hbm %s9, %s524
          %s526 = sshll.u32 %s525, 4
          %s527 = int_to_ptr.hbm [resolvable:$true] %s526
          %s528 = sshll.u32 %s520, 4
          %s529 = int_to_ptr.vmem [resolvable:$true] %s528
          %534 = dma.hbm_to_vmem [thread:$0]  %s527, 2048, %s529, %s517, 64, 64, 4
        $region56: #{bert_forward.4} parent=19 // pred_fallthru
          _
        // Predicated region
        $region57: #{bert_forward.4} parent=19 // pred_check
          %p535 = pneg %p317
        $region58: #{bert_forward.4} parent=19 // pred_check_branch
          %537 = sbr.rel (%p535) target = $region60
        $region59: #{bert_forward.4} parent=19 // pred_region
          %p538 = scmp.lt.s32.totalorder %s33, 1
          %s539 = scalar_select %p538, %s33, 1
          %s540 = scalar_lea.vmem %s10, %s539
        $region60: #{bert_forward.4} parent=19 // pred_fallthru
          _
        // Predicated region
        $region61: #{bert_forward.4} parent=19 // pred_check
          %p541 = pneg %p343
        $region62: #{bert_forward.4} parent=19 // pred_check_branch
          %543 = sbr.rel (%p541) target = $region64
        $region63: #{bert_forward.4} parent=19 // pred_region
          %p544 = scmp.lt.s32.totalorder %s33, 1
          %s545 = scalar_select %p544, %s33, 1
          %s546 = scalar_lea.vmem %s11, %s545
        $region64: #{bert_forward.4} parent=19 // pred_fallthru
          _
        // Predicated region
        $region65: #{bert_forward.4} parent=19 // pred_check
          %p547 = pneg %p369
        $region66: #{bert_forward.4} parent=19 // pred_check_branch
          %549 = sbr.rel (%p547) target = $region68
        $region67: #{bert_forward.4} parent=19 // pred_region
          %p550 = scmp.lt.s32.totalorder %s33, 1
          %s551 = scalar_select %p550, %s33, 1
          %s552 = scalar_lea.vmem %s12, %s551
        $region68: #{bert_forward.4} parent=19 // pred_fallthru
          _
      $region20: #{bert_forward.4} parent=5 // pred_fallthru
        _
      %p553 = scmp.le.s32.totalorder 1, %s25
      %p554 = scmp.lt.s32.totalorder %s25, 3
      %p555 = pnand %p553, %p554
      %p556 = pneg %p555
      // Predicated region
      $region69: #{bert_forward.4} parent=5 // pred_check
        _
      $region70: #{bert_forward.4} parent=5 // pred_check_branch
        %558 = sbr.rel (%p555) target = $region72
      $region71: #{bert_forward.4} parent=5 // pred_region
        %s559 = ssub.s32 %s25, 1
        %s560 = sand.u32 %s76, 1
        %s561 = scalar_lea.sflag [#allocation3], %s560
        %s562 = sand.u32 %s76, 1
        %s563 = smul.addr %s562, 192
        %s564 = scalar_lea.vmem [#allocation2], %s563
        // Predicated region
        $region73: #{bert_forward.4} parent=71 // pred_check
          %p565 = pneg %p89
        $region74: #{bert_forward.4} parent=71 // pred_check_branch
          %567 = sbr.rel (%p565) target = $region76
        $region75: #{bert_forward.4} parent=71 // pred_region
          %569 = dma.done %s561, 3072
        $region76: #{bert_forward.4} parent=71 // pred_fallthru
          _
        %s570 = sand.u32 %s30, 1
        %s571 = scalar_lea.sflag [#allocation5], %s570
        %s572 = sand.u32 %s128, 1
        %s573 = smul.addr %s572, 64
        %s574 = scalar_lea.vmem [#allocation4], %s573
        // Predicated region
        $region77: #{bert_forward.4} parent=71 // pred_check
          %p575 = pneg %p141
        $region78: #{bert_forward.4} parent=71 // pred_check_branch
          %577 = sbr.rel (%p575) target = $region80
        $region79: #{bert_forward.4} parent=71 // pred_region
          %579 = dma.done %s571, 1024
        $region80: #{bert_forward.4} parent=71 // pred_fallthru
          _
        %s580 = sand.u32 %s30, 1
        %s581 = scalar_lea.sflag [#allocation5], %s580
        %s582 = sand.u32 %s284, 1
        %s583 = smul.addr %s582, 128
        %s584 = scalar_lea.vmem [#allocation6], %s583
        // Predicated region
        $region81: #{bert_forward.4} parent=71 // pred_check
          %p585 = pneg %p297
        $region82: #{bert_forward.4} parent=71 // pred_check_branch
          %587 = sbr.rel (%p585) target = $region84
        $region83: #{bert_forward.4} parent=71 // pred_region
          %589 = dma.done %s581, 2048
        $region84: #{bert_forward.4} parent=71 // pred_fallthru
          _
        %s590 = smul.u32 2, %s34
        %p591 = scmp.lt.s32.totalorder %s590, 1
        %s592 = scalar_select %p591, %s590, 1
        %s593 = smul.addr %s592, 8
        %s594 = scalar_lea.vmem %s0, %s593
        %p595 = pneg %p63
        %p596 = pneg %p60
        %s597 = sand.u32 %s76, 1
        %s598 = scalar_lea.sflag [#allocation3], %s597
        %s599 = sand.u32 %s76, 1
        %s600 = smul.addr %s599, 192
        %s601 = scalar_lea.vmem [#allocation2], %s600
        %p602 = pneg %p89
        %p603 = pneg %p86
        %p604 = scmp.lt.s32.totalorder %s35, 1
        %s605 = scalar_select %p604, %s35, 1
        %s606 = smul.addr %s605, 3
        %s607 = scalar_lea.vmem %s2, %s606
        %p608 = pneg %p115
        %p609 = pneg %p112
        %s610 = sand.u32 %s30, 1
        %s611 = scalar_lea.sflag [#allocation5], %s610
        %s612 = sand.u32 %s128, 1
        %s613 = smul.addr %s612, 64
        %s614 = scalar_lea.vmem [#allocation4], %s613
        %p615 = pneg %p141
        %p616 = pneg %p138
        %p617 = scmp.lt.s32.totalorder %s35, 1
        %s618 = scalar_select %p617, %s35, 1
        %s619 = scalar_lea.vmem %s4, %s618
        %p620 = pneg %p167
        %p621 = pneg %p164
        %p622 = scmp.lt.s32.totalorder %s35, 1
        %s623 = scalar_select %p622, %s35, 1
        %s624 = scalar_lea.vmem %s5, %s623
        %p625 = pneg %p193
        %p626 = pneg %p190
        %p627 = scmp.lt.s32.totalorder %s35, 1
        %s628 = scalar_select %p627, %s35, 1
        %s629 = scalar_lea.vmem %s6, %s628
        %p630 = pneg %p219
        %p631 = pneg %p216
        %p632 = scmp.lt.s32.totalorder %s35, 1
        %s633 = scalar_select %p632, %s35, 1
        %s634 = smul.addr %s633, 32
        %s635 = smul.addr %s634, 4
        %s636 = scalar_lea.vmem %s7, %s635
        %p637 = pneg %p245
        %p638 = pneg %p242
        %p639 = scmp.lt.s32.totalorder %s35, 1
        %s640 = scalar_select %p639, %s35, 1
        %s641 = smul.addr %s640, 2
        %s642 = scalar_lea.vmem %s8, %s641
        %p643 = pneg %p271
        %p644 = pneg %p268
        %s645 = sand.u32 %s30, 1
        %s646 = scalar_lea.sflag [#allocation5], %s645
        %s647 = sand.u32 %s284, 1
        %s648 = smul.addr %s647, 128
        %s649 = scalar_lea.vmem [#allocation6], %s648
        %p650 = pneg %p297
        %p651 = pneg %p294
        %p652 = scmp.lt.s32.totalorder %s35, 1
        %s653 = scalar_select %p652, %s35, 1
        %s654 = scalar_lea.vmem %s10, %s653
        %p655 = pneg %p323
        %p656 = pneg %p320
        %p657 = scmp.lt.s32.totalorder %s35, 1
        %s658 = scalar_select %p657, %s35, 1
        %s659 = scalar_lea.vmem %s11, %s658
        %p660 = pneg %p349
        %p661 = pneg %p346
        %p662 = scmp.lt.s32.totalorder %s35, 1
        %s663 = scalar_select %p662, %s35, 1
        %s664 = scalar_lea.vmem %s12, %s663
        %p665 = pneg %p375
        %p666 = pneg %p372
        %p667 = pneg %p401
        %p668 = pneg %p398
        %s669 = smul.u32 2, %s34
        %p670 = scmp.lt.s32.totalorder %s669, 1
        %s671 = scalar_select %p670, %s669, 1
        %s672 = smul.addr %s671, 8
        %s673 = scalar_lea.vmem %s13, %s672
        %s674 = smul.u32 2, %s34
        %p675 = scmp.lt.s32.totalorder %s674, 1
        %s676 = scalar_select %p675, %s674, 1
        %s677 = smul.addr %s676, 8
        %s678 = scalar_lea.vmem %s0, %s677
        %s679 = smul.u32 2, %s34
        %p680 = scmp.lt.s32.totalorder %s35, 1
        %s681 = scalar_select %p680, %s35, 1
        %s682 = smul.addr %s681, 3
        %s683 = scalar_lea.vmem %s2, %s682
        %p684 = scmp.lt.s32.totalorder %s35, 1
        %s685 = scalar_select %p684, %s35, 1
        %s686 = scalar_lea.vmem %s4, %s685
        %p687 = scmp.lt.s32.totalorder %s35, 1
        %s688 = scalar_select %p687, %s35, 1
        %s689 = scalar_lea.vmem %s5, %s688
        %p690 = scmp.lt.s32.totalorder %s35, 1
        %s691 = scalar_select %p690, %s35, 1
        %s692 = scalar_lea.vmem %s6, %s691
        %p693 = scmp.lt.s32.totalorder %s35, 1
        %s694 = scalar_select %p693, %s35, 1
        %s695 = smul.addr %s694, 32
        %s696 = smul.addr %s695, 4
        %s697 = scalar_lea.vmem %s7, %s696
        %p698 = scmp.lt.s32.totalorder %s35, 1
        %s699 = scalar_select %p698, %s35, 1
        %s700 = smul.addr %s699, 2
        %s701 = scalar_lea.vmem %s8, %s700
        %p702 = scmp.lt.s32.totalorder %s35, 1
        %s703 = scalar_select %p702, %s35, 1
        %s704 = scalar_lea.vmem %s10, %s703
        %p705 = scmp.lt.s32.totalorder %s35, 1
        %s706 = scalar_select %p705, %s35, 1
        %s707 = scalar_lea.vmem %s11, %s706
        %p708 = scmp.lt.s32.totalorder %s35, 1
        %s709 = scalar_select %p708, %s35, 1
        %s710 = scalar_lea.vmem %s12, %s709
        %s711 = smul.u32 2, %s34
        %p712 = scmp.lt.s32.totalorder %s711, 1
        %s713 = scalar_select %p712, %s711, 1
        %s714 = smul.addr %s713, 8
        %s715 = scalar_lea.vmem %s13, %s714
        %s716 = smul.u32 2, %s34
        %p718 = scmp.eq.s32.totalorder %s35, 0
        // Predicated region
        $region85: #{bert_forward.4} parent=71 // pred_check
          %p719 = pneg %p718
        $region86: #{bert_forward.4} parent=71 // pred_check_branch
          %721 = sbr.rel (%p719) target = $region88
        $region87: #{bert_forward.4} parent=71 // pred_region
          %v722 = vld [vmem:[%s678] sm:$0xff]
          %v723 = vld [vmem:[%s678 + $0x8] sm:$0xff]
          %724 = vst [vmem:[%s715] sm:$0xff] %v722
          %725 = vst [vmem:[%s715 + $0x8] sm:$0xff] %v723
        $region88: #{bert_forward.4} parent=71 // pred_fallthru
          _
        %v726 = vld [vmem:[%s715] sm:$0xff]
        %v727 = vld [vmem:[%s715 + $0x8] sm:$0xff]
        %v728 = vpack.c.bf16 %v727, %v726
        %v729 = vld [vmem:[%s564] sm:$0xff]
        %v730 = vld [vmem:[%s564 + $0x8] sm:$0xf]
        %v731 = vld [vmem:[%s564 + $0xc] sm:$0xff]
        %v732 = vld [vmem:[%s564 + $0x14] sm:$0xf]
        %v733 = vld [vmem:[%s564 + $0x18] sm:$0xff]
        %v734 = vld [vmem:[%s564 + $0x20] sm:$0xf]
        %v735 = vld [vmem:[%s564 + $0x24] sm:$0xff]
        %v736 = vld [vmem:[%s564 + $0x2c] sm:$0xf]
        %v737 = vld [vmem:[%s564 + $0x30] sm:$0xff]
        %v738 = vld [vmem:[%s564 + $0x38] sm:$0xf]
        %v739 = vld [vmem:[%s564 + $0x3c] sm:$0xff]
        %v740 = vld [vmem:[%s564 + $0x44] sm:$0xf]
        %v741 = vld [vmem:[%s564 + $0x48] sm:$0xff]
        %v742 = vld [vmem:[%s564 + $0x50] sm:$0xf]
        %v743 = vld [vmem:[%s564 + $0x54] sm:$0xff]
        %v744 = vld [vmem:[%s564 + $0x5c] sm:$0xf]
        %v745 = vld [vmem:[%s564 + $0x60] sm:$0xff]
        %v746 = vld [vmem:[%s564 + $0x68] sm:$0xf]
        %v747 = vld [vmem:[%s564 + $0x6c] sm:$0xff]
        %v748 = vld [vmem:[%s564 + $0x74] sm:$0xf]
        %v749 = vld [vmem:[%s564 + $0x78] sm:$0xff]
        %v750 = vld [vmem:[%s564 + $0x80] sm:$0xf]
        %v751 = vld [vmem:[%s564 + $0x84] sm:$0xff]
        %v752 = vld [vmem:[%s564 + $0x8c] sm:$0xf]
        %v753 = vld [vmem:[%s564 + $0x90] sm:$0xff]
        %v754 = vld [vmem:[%s564 + $0x98] sm:$0xf]
        %v755 = vld [vmem:[%s564 + $0x9c] sm:$0xff]
        %v756 = vld [vmem:[%s564 + $0xa4] sm:$0xf]
        %v757 = vld [vmem:[%s564 + $0xa8] sm:$0xff]
        %v758 = vld [vmem:[%s564 + $0xb0] sm:$0xf]
        %v759 = vld [vmem:[%s564 + $0xb4] sm:$0xff]
        %v760 = vld [vmem:[%s564 + $0xbc] sm:$0xf]
        %v761 = vld [vmem:[%s683] sm:$0x7]
        %v763 = vperm.slane %v761, 0
        %v764 = vperm.slane %v761, 1
        %v765 = vperm.slane %v761, 2
        %v801 = vunpack.c.l.b16 %v729
        %v802 = vunpack.c.h.b16 %v729
        %v803 = vunpack.c.l.b16 %v730
        %v804 = vunpack.c.l.b16 %v731
        %v805 = vunpack.c.h.b16 %v731
        %v806 = vunpack.c.l.b16 %v732
        %v807 = vunpack.c.l.b16 %v733
        %v808 = vunpack.c.h.b16 %v733
        %v809 = vunpack.c.l.b16 %v734
        %v810 = vunpack.c.l.b16 %v735
        %v811 = vunpack.c.h.b16 %v735
        %v812 = vunpack.c.l.b16 %v736
        %v813 = vunpack.c.l.b16 %v737
        %v814 = vunpack.c.h.b16 %v737
        %v815 = vunpack.c.l.b16 %v738
        %v816 = vunpack.c.l.b16 %v739
        %v817 = vunpack.c.h.b16 %v739
        %v818 = vunpack.c.l.b16 %v740
        %v819 = vunpack.c.l.b16 %v741
        %v820 = vunpack.c.h.b16 %v741
        %v821 = vunpack.c.l.b16 %v742
        %v822 = vunpack.c.l.b16 %v743
        %v823 = vunpack.c.h.b16 %v743
        %v824 = vunpack.c.l.b16 %v744
        %v825 = vunpack.c.l.b16 %v745
        %v826 = vunpack.c.h.b16 %v745
        %v827 = vunpack.c.l.b16 %v746
        %v828 = vunpack.c.l.b16 %v747
        %v829 = vunpack.c.h.b16 %v747
        %v830 = vunpack.c.l.b16 %v748
        %v831 = vunpack.c.l.b16 %v749
        %v832 = vunpack.c.h.b16 %v749
        %v833 = vunpack.c.l.b16 %v750
        %v834 = vunpack.c.l.b16 %v751
        %v835 = vunpack.c.h.b16 %v751
        %v836 = vunpack.c.l.b16 %v752
        %v837 = vunpack.c.l.b16 %v753
        %v838 = vunpack.c.h.b16 %v753
        %v839 = vunpack.c.l.b16 %v754
        %v840 = vunpack.c.l.b16 %v755
        %v841 = vunpack.c.h.b16 %v755
        %v842 = vunpack.c.l.b16 %v756
        %v843 = vunpack.c.l.b16 %v757
        %v844 = vunpack.c.h.b16 %v757
        %v845 = vunpack.c.l.b16 %v758
        %v846 = vunpack.c.l.b16 %v759
        %v847 = vunpack.c.h.b16 %v759
        %v848 = vunpack.c.l.b16 %v760
        %v849 = vpack.c.b16 %v804, %v801
        %v850 = vpack.c.b16 %v805, %v802
        %v851 = vpack.c.b16 %v806, %v803
        %v852 = vpack.c.b16 %v810, %v807
        %v853 = vpack.c.b16 %v811, %v808
        %v854 = vpack.c.b16 %v812, %v809
        %v855 = vpack.c.b16 %v816, %v813
        %v856 = vpack.c.b16 %v817, %v814
        %v857 = vpack.c.b16 %v818, %v815
        %v858 = vpack.c.b16 %v822, %v819
        %v859 = vpack.c.b16 %v823, %v820
        %v860 = vpack.c.b16 %v824, %v821
        %v861 = vpack.c.b16 %v828, %v825
        %v862 = vpack.c.b16 %v829, %v826
        %v863 = vpack.c.b16 %v830, %v827
        %v864 = vpack.c.b16 %v834, %v831
        %v865 = vpack.c.b16 %v835, %v832
        %v866 = vpack.c.b16 %v836, %v833
        %v867 = vpack.c.b16 %v840, %v837
        %v868 = vpack.c.b16 %v841, %v838
        %v869 = vpack.c.b16 %v842, %v839
        %v870 = vpack.c.b16 %v846, %v843
        %v871 = vpack.c.b16 %v847, %v844
        %v872 = vpack.c.b16 %v848, %v845
        %897 = vmatpush.bf16.msra.mxu0 %v870
        %898 = vmatpush.bf16.msra.mxu0 %v867
        %899 = vmatpush.bf16.msra.mxu0 %v864
        %900 = vmatpush.bf16.msra.mxu0 %v861
        %901 = vmatpush.bf16.msra.mxu0 %v858
        %902 = vmatpush.bf16.msra.mxu0 %v855
        %903 = vmatpush.bf16.msra.mxu0 %v852
        %904 = vmatpush.bf16.msra.mxu0 %v849
        %905 = vmatmul.bf16.gmra.mxu0 %v728
        %v906 = vpop.f32.mrf.mxu0
        %v907 = vadd.f32 %v763, %v906
        %v908 = vpop.f32.mrf.mxu0
        %v909 = vadd.f32 %v763, %v908
        %910 = vdwg.mxu0
        %911 = vmatpush.bf16.msra.mxu0 %v871
        %912 = vmatpush.bf16.msra.mxu0 %v868
        %913 = vmatpush.bf16.msra.mxu0 %v865
        %914 = vmatpush.bf16.msra.mxu0 %v862
        %915 = vmatpush.bf16.msra.mxu0 %v859
        %916 = vmatpush.bf16.msra.mxu0 %v856
        %917 = vmatpush.bf16.msra.mxu0 %v853
        %918 = vmatpush.bf16.msra.mxu0 %v850
        %919 = vmatmul.bf16.gmra.mxu0 %v728
        %v920 = vpop.f32.mrf.mxu0
        %v921 = vadd.f32 %v764, %v920
        %v922 = vpop.f32.mrf.mxu0
        %v923 = vadd.f32 %v764, %v922
        %924 = vdwg.mxu0
        %925 = vmatpush.bf16.msra.mxu0 %v872
        %926 = vmatpush.bf16.msra.mxu0 %v869
        %927 = vmatpush.bf16.msra.mxu0 %v866
        %928 = vmatpush.bf16.msra.mxu0 %v863
        %929 = vmatpush.bf16.msra.mxu0 %v860
        %930 = vmatpush.bf16.msra.mxu0 %v857
        %931 = vmatpush.bf16.msra.mxu0 %v854
        %932 = vmatpush.bf16.msra.mxu0 %v851
        %933 = vmatmul.bf16.gmra.mxu0 %v728
        %v934 = vpop.f32.mrf.mxu0
        %v935 = vadd.f32 %v765, %v934
        %v936 = vpop.f32.mrf.mxu0
        %v937 = vadd.f32 %v765, %v936
        %938 = vdwg.mxu0
        %v939 = vmul.f32 %v907, 0.17677669
        %v940 = vpack.c.bf16 %v939, %v939
        %v941 = vpack.c.bf16 %v921, %v921
        %v942 = vpack.c.bf16 %v935, %v935
        %vm943 = vcmask 261120
        %v945 = vsel %vm943, %v940, 0
        %v948 = vsel %vm943, %v941, 0
        %950 = vmatpush.bf16.xpose.msra.mxu0 0
        %951 = vmatpush.bf16.xpose.msra.mxu0 0
        %952 = vmatpush.bf16.xpose.msra.mxu0 0
        %953 = vmatpush.bf16.xpose.msra.mxu0 0
        %954 = vmatpush.bf16.xpose.msra.mxu0 0
        %955 = vmatpush.bf16.xpose.msra.mxu0 0
        %956 = vmatpush.bf16.xpose.msra.mxu0 0
        %957 = vmatpush.bf16.xpose.msra.mxu0 %v948
        %958 = vmatmul.bf16.gmra.mxu0 %v945
        %v959 = vpop.f32.mrf.mxu0
        %v960 = vadd.f32 0.0, %v959
        %v961 = vpop.f32.mrf.mxu0
        %962 = vdwg.mxu0
        %vm963 = vcmask 64512
        %v964 = vsel %vm963, %v960, -inf
        %965 = vmax.xlane.f32.xlu0 %v964
        %v966 = vpop.xlane.xlu0 %965
        %v967 = vsub.f32 %v960, %v966
        %v968 = vmul.f32 %v967, 1.442695
        %v969 = vpow.pop %v968
        %v970 = vsel %vm963, %v969, 0.0
        %971 = vadd.xlane.f32.xlu0 %v970
        %v972 = vpop.xlane.xlu0 %971
        %v973 = vrcp.pop %v972
        %v974 = vmul.f32 %v969, %v973
        %v975 = vpack.c.bf16 %v974, %v974
        %v977 = vsel %vm963, %v975, 0
        %vm979 = vcmask 1043456
        %v981 = vsel %vm979, %v942, 0
        %983 = vmatpush.bf16.msra.mxu0 0
        %984 = vmatpush.bf16.msra.mxu0 0
        %985 = vmatpush.bf16.msra.mxu0 0
        %986 = vmatpush.bf16.msra.mxu0 0
        %987 = vmatpush.bf16.msra.mxu0 0
        %988 = vmatpush.bf16.msra.mxu0 0
        %989 = vmatpush.bf16.msra.mxu0 0
        %990 = vmatpush.bf16.msra.mxu0 %v981
        %991 = vmatmul.bf16.gmra.mxu0 %v977
        %v992 = vpop.f32.mrf.mxu0
        %v993 = vadd.f32 0.0, %v992
        %v994 = vpop.f32.mrf.mxu0
        %995 = vdwg.mxu0
        %v997 = vunpack.c.l.b16 %v940
        %v998 = vpack.c.b16 %v997, %v997
        %999 = vrot.lane.b32.xlu0 %v998, 96
        %v1000 = vpop.permute.xlu0 %999
        %v1002 = vunpack.c.l.b16 %v941
        %v1003 = vpack.c.b16 %v1002, %v1002
        %1004 = vrot.lane.b32.xlu0 %v1003, 96
        %v1005 = vpop.permute.xlu0 %1004
        %v1007 = vsel %vm943, %v1000, 0
        %v1010 = vsel %vm943, %v1005, 0
        %1012 = vmatpush.bf16.xpose.msra.mxu0 0
        %1013 = vmatpush.bf16.xpose.msra.mxu0 0
        %1014 = vmatpush.bf16.xpose.msra.mxu0 0
        %1015 = vmatpush.bf16.xpose.msra.mxu0 0
        %1016 = vmatpush.bf16.xpose.msra.mxu0 0
        %1017 = vmatpush.bf16.xpose.msra.mxu0 0
        %1018 = vmatpush.bf16.xpose.msra.mxu0 0
        %1019 = vmatpush.bf16.xpose.msra.mxu0 %v1010
        %1020 = vmatmul.bf16.gmra.mxu0 %v1007
        %v1021 = vpop.f32.mrf.mxu0
        %v1022 = vadd.f32 0.0, %v1021
        %v1023 = vpop.f32.mrf.mxu0
        %1024 = vdwg.mxu0
        %v1025 = vsel %vm963, %v1022, -inf
        %1026 = vmax.xlane.f32.xlu0 %v1025
        %v1027 = vpop.xlane.xlu0 %1026
        %v1028 = vsub.f32 %v1022, %v1027
        %v1029 = vmul.f32 %v1028, 1.442695
        %v1030 = vpow.pop %v1029
        %v1031 = vsel %vm963, %v1030, 0.0
        %1032 = vadd.xlane.f32.xlu0 %v1031
        %v1033 = vpop.xlane.xlu0 %1032
        %v1034 = vrcp.pop %v1033
        %v1035 = vmul.f32 %v1030, %v1034
        %v1036 = vpack.c.bf16 %v1035, %v1035
        %v1038 = vunpack.c.l.b16 %v942
        %v1039 = vpack.c.b16 %v1038, %v1038
        %1040 = vrot.lane.b32.xlu0 %v1039, 96
        %v1041 = vpop.permute.xlu0 %1040
        %v1043 = vsel %vm963, %v1036, 0
        %v1046 = vsel %vm979, %v1041, 0
        %1048 = vmatpush.bf16.msra.mxu0 0
        %1049 = vmatpush.bf16.msra.mxu0 0
        %1050 = vmatpush.bf16.msra.mxu0 0
        %1051 = vmatpush.bf16.msra.mxu0 0
        %1052 = vmatpush.bf16.msra.mxu0 0
        %1053 = vmatpush.bf16.msra.mxu0 0
        %1054 = vmatpush.bf16.msra.mxu0 0
        %1055 = vmatpush.bf16.msra.mxu0 %v1046
        %1056 = vmatmul.bf16.gmra.mxu0 %v1043
        %v1057 = vpop.f32.mrf.mxu0
        %v1058 = vadd.f32 0.0, %v1057
        %v1059 = vpop.f32.mrf.mxu0
        %1060 = vdwg.mxu0
        %1061 = vrot.lane.b32.xlu0 %v998, 64
        %v1062 = vpop.permute.xlu0 %1061
        %1063 = vrot.lane.b32.xlu0 %v1003, 64
        %v1064 = vpop.permute.xlu0 %1063
        %v1066 = vsel %vm943, %v1062, 0
        %v1069 = vsel %vm943, %v1064, 0
        %1071 = vmatpush.bf16.xpose.msra.mxu0 0
        %1072 = vmatpush.bf16.xpose.msra.mxu0 0
        %1073 = vmatpush.bf16.xpose.msra.mxu0 0
        %1074 = vmatpush.bf16.xpose.msra.mxu0 0
        %1075 = vmatpush.bf16.xpose.msra.mxu0 0
        %1076 = vmatpush.bf16.xpose.msra.mxu0 0
        %1077 = vmatpush.bf16.xpose.msra.mxu0 0
        %1078 = vmatpush.bf16.xpose.msra.mxu0 %v1069
        %1079 = vmatmul.bf16.gmra.mxu0 %v1066
        %v1080 = vpop.f32.mrf.mxu0
        %v1081 = vadd.f32 0.0, %v1080
        %v1082 = vpop.f32.mrf.mxu0
        %1083 = vdwg.mxu0
        %v1084 = vsel %vm963, %v1081, -inf
        %1085 = vmax.xlane.f32.xlu0 %v1084
        %v1086 = vpop.xlane.xlu0 %1085
        %v1087 = vsub.f32 %v1081, %v1086
        %v1088 = vmul.f32 %v1087, 1.442695
        %v1089 = vpow.pop %v1088
        %v1090 = vsel %vm963, %v1089, 0.0
        %1091 = vadd.xlane.f32.xlu0 %v1090
        %v1092 = vpop.xlane.xlu0 %1091
        %v1093 = vrcp.pop %v1092
        %v1094 = vmul.f32 %v1089, %v1093
        %v1095 = vpack.c.bf16 %v1094, %v1094
        %1096 = vrot.lane.b32.xlu0 %v1039, 64
        %v1097 = vpop.permute.xlu0 %1096
        %v1099 = vsel %vm963, %v1095, 0
        %v1102 = vsel %vm979, %v1097, 0
        %1104 = vmatpush.bf16.msra.mxu0 0
        %1105 = vmatpush.bf16.msra.mxu0 0
        %1106 = vmatpush.bf16.msra.mxu0 0
        %1107 = vmatpush.bf16.msra.mxu0 0
        %1108 = vmatpush.bf16.msra.mxu0 0
        %1109 = vmatpush.bf16.msra.mxu0 0
        %1110 = vmatpush.bf16.msra.mxu0 0
        %1111 = vmatpush.bf16.msra.mxu0 %v1102
        %1112 = vmatmul.bf16.gmra.mxu0 %v1099
        %v1113 = vpop.f32.mrf.mxu0
        %v1114 = vadd.f32 0.0, %v1113
        %v1115 = vpop.f32.mrf.mxu0
        %1116 = vdwg.mxu0
        %1117 = vrot.lane.b32.xlu0 %v998, 32
        %v1118 = vpop.permute.xlu0 %1117
        %1119 = vrot.lane.b32.xlu0 %v1003, 32
        %v1120 = vpop.permute.xlu0 %1119
        %v1122 = vsel %vm943, %v1118, 0
        %v1125 = vsel %vm943, %v1120, 0
        %1127 = vmatpush.bf16.xpose.msra.mxu0 0
        %1128 = vmatpush.bf16.xpose.msra.mxu0 0
        %1129 = vmatpush.bf16.xpose.msra.mxu0 0
        %1130 = vmatpush.bf16.xpose.msra.mxu0 0
        %1131 = vmatpush.bf16.xpose.msra.mxu0 0
        %1132 = vmatpush.bf16.xpose.msra.mxu0 0
        %1133 = vmatpush.bf16.xpose.msra.mxu0 0
        %1134 = vmatpush.bf16.xpose.msra.mxu0 %v1125
        %1135 = vmatmul.bf16.gmra.mxu0 %v1122
        %v1136 = vpop.f32.mrf.mxu0
        %v1137 = vadd.f32 0.0, %v1136
        %v1138 = vpop.f32.mrf.mxu0
        %1139 = vdwg.mxu0
        %v1140 = vsel %vm963, %v1137, -inf
        %1141 = vmax.xlane.f32.xlu0 %v1140
        %v1142 = vpop.xlane.xlu0 %1141
        %v1143 = vsub.f32 %v1137, %v1142
        %v1144 = vmul.f32 %v1143, 1.442695
        %v1145 = vpow.pop %v1144
        %v1146 = vsel %vm963, %v1145, 0.0
        %1147 = vadd.xlane.f32.xlu0 %v1146
        %v1148 = vpop.xlane.xlu0 %1147
        %v1149 = vrcp.pop %v1148
        %v1150 = vmul.f32 %v1145, %v1149
        %v1151 = vpack.c.bf16 %v1150, %v1150
        %1152 = vrot.lane.b32.xlu0 %v1039, 32
        %v1153 = vpop.permute.xlu0 %1152
        %v1155 = vsel %vm963, %v1151, 0
        %v1158 = vsel %vm979, %v1153, 0
        %1160 = vmatpush.bf16.msra.mxu0 0
        %1161 = vmatpush.bf16.msra.mxu0 0
        %1162 = vmatpush.bf16.msra.mxu0 0
        %1163 = vmatpush.bf16.msra.mxu0 0
        %1164 = vmatpush.bf16.msra.mxu0 0
        %1165 = vmatpush.bf16.msra.mxu0 0
        %1166 = vmatpush.bf16.msra.mxu0 0
        %1167 = vmatpush.bf16.msra.mxu0 %v1158
        %1168 = vmatmul.bf16.gmra.mxu0 %v1155
        %v1169 = vpop.f32.mrf.mxu0
        %v1170 = vadd.f32 0.0, %v1169
        %v1171 = vpop.f32.mrf.mxu0
        %1172 = vdwg.mxu0
        %1174 = vrot.lane.b32.xlu0 %v1058, 32
        %v1175 = vpop.permute.xlu0 %1174
        %1178 = vrot.lane.b32.xlu0 %v1114, 64
        %v1179 = vpop.permute.xlu0 %1178
        %1182 = vrot.lane.b32.xlu0 %v1170, 96
        %v1183 = vpop.permute.xlu0 %1182
        %v1185 = vsel %vm943, %v993, %v1175
        %vm1186 = vcmask 523264
        %v1187 = vsel %vm1186, %v1185, %v1179
        %vm1188 = vcmask 785408
        %v1189 = vsel %vm1188, %v1187, %v1183
        %v1190 = vmul.f32 %v909, 0.17677669
        %v1191 = vpack.c.bf16 %v1190, %v1190
        %v1192 = vpack.c.bf16 %v923, %v923
        %v1193 = vpack.c.bf16 %v937, %v937
        %v1195 = vsel %vm943, %v1191, 0
        %v1198 = vsel %vm943, %v1192, 0
        %1200 = vmatpush.bf16.xpose.msra.mxu0 0
        %1201 = vmatpush.bf16.xpose.msra.mxu0 0
        %1202 = vmatpush.bf16.xpose.msra.mxu0 0
        %1203 = vmatpush.bf16.xpose.msra.mxu0 0
        %1204 = vmatpush.bf16.xpose.msra.mxu0 0
        %1205 = vmatpush.bf16.xpose.msra.mxu0 0
        %1206 = vmatpush.bf16.xpose.msra.mxu0 0
        %1207 = vmatpush.bf16.xpose.msra.mxu0 %v1198
        %1208 = vmatmul.bf16.gmra.mxu0 %v1195
        %v1209 = vpop.f32.mrf.mxu0
        %v1210 = vadd.f32 0.0, %v1209
        %v1211 = vpop.f32.mrf.mxu0
        %1212 = vdwg.mxu0
        %v1213 = vsel %vm963, %v1210, -inf
        %1214 = vmax.xlane.f32.xlu0 %v1213
        %v1215 = vpop.xlane.xlu0 %1214
        %v1216 = vsub.f32 %v1210, %v1215
        %v1217 = vmul.f32 %v1216, 1.442695
        %v1218 = vpow.pop %v1217
        %v1219 = vsel %vm963, %v1218, 0.0
        %1220 = vadd.xlane.f32.xlu0 %v1219
        %v1221 = vpop.xlane.xlu0 %1220
        %v1222 = vrcp.pop %v1221
        %v1223 = vmul.f32 %v1218, %v1222
        %v1224 = vpack.c.bf16 %v1223, %v1223
        %v1226 = vsel %vm963, %v1224, 0
        %v1229 = vsel %vm979, %v1193, 0
        %1231 = vmatpush.bf16.msra.mxu0 0
        %1232 = vmatpush.bf16.msra.mxu0 0
        %1233 = vmatpush.bf16.msra.mxu0 0
        %1234 = vmatpush.bf16.msra.mxu0 0
        %1235 = vmatpush.bf16.msra.mxu0 0
        %1236 = vmatpush.bf16.msra.mxu0 0
        %1237 = vmatpush.bf16.msra.mxu0 0
        %1238 = vmatpush.bf16.msra.mxu0 %v1229
        %1239 = vmatmul.bf16.gmra.mxu0 %v1226
        %v1240 = vpop.f32.mrf.mxu0
        %v1241 = vadd.f32 0.0, %v1240
        %v1242 = vpop.f32.mrf.mxu0
        %1243 = vdwg.mxu0
        %v1245 = vunpack.c.l.b16 %v1191
        %v1246 = vpack.c.b16 %v1245, %v1245
        %1247 = vrot.lane.b32.xlu0 %v1246, 96
        %v1248 = vpop.permute.xlu0 %1247
        %v1250 = vunpack.c.l.b16 %v1192
        %v1251 = vpack.c.b16 %v1250, %v1250
        %1252 = vrot.lane.b32.xlu0 %v1251, 96
        %v1253 = vpop.permute.xlu0 %1252
        %v1255 = vsel %vm943, %v1248, 0
        %v1258 = vsel %vm943, %v1253, 0
        %1260 = vmatpush.bf16.xpose.msra.mxu0 0
        %1261 = vmatpush.bf16.xpose.msra.mxu0 0
        %1262 = vmatpush.bf16.xpose.msra.mxu0 0
        %1263 = vmatpush.bf16.xpose.msra.mxu0 0
        %1264 = vmatpush.bf16.xpose.msra.mxu0 0
        %1265 = vmatpush.bf16.xpose.msra.mxu0 0
        %1266 = vmatpush.bf16.xpose.msra.mxu0 0
        %1267 = vmatpush.bf16.xpose.msra.mxu0 %v1258
        %1268 = vmatmul.bf16.gmra.mxu0 %v1255
        %v1269 = vpop.f32.mrf.mxu0
        %v1270 = vadd.f32 0.0, %v1269
        %v1271 = vpop.f32.mrf.mxu0
        %1272 = vdwg.mxu0
        %v1273 = vsel %vm963, %v1270, -inf
        %1274 = vmax.xlane.f32.xlu0 %v1273
        %v1275 = vpop.xlane.xlu0 %1274
        %v1276 = vsub.f32 %v1270, %v1275
        %v1277 = vmul.f32 %v1276, 1.442695
        %v1278 = vpow.pop %v1277
        %v1279 = vsel %vm963, %v1278, 0.0
        %1280 = vadd.xlane.f32.xlu0 %v1279
        %v1281 = vpop.xlane.xlu0 %1280
        %v1282 = vrcp.pop %v1281
        %v1283 = vmul.f32 %v1278, %v1282
        %v1284 = vpack.c.bf16 %v1283, %v1283
        %v1286 = vunpack.c.l.b16 %v1193
        %v1287 = vpack.c.b16 %v1286, %v1286
        %1288 = vrot.lane.b32.xlu0 %v1287, 96
        %v1289 = vpop.permute.xlu0 %1288
        %v1291 = vsel %vm963, %v1284, 0
        %v1294 = vsel %vm979, %v1289, 0
        %1296 = vmatpush.bf16.msra.mxu0 0
        %1297 = vmatpush.bf16.msra.mxu0 0
        %1298 = vmatpush.bf16.msra.mxu0 0
        %1299 = vmatpush.bf16.msra.mxu0 0
        %1300 = vmatpush.bf16.msra.mxu0 0
        %1301 = vmatpush.bf16.msra.mxu0 0
        %1302 = vmatpush.bf16.msra.mxu0 0
        %1303 = vmatpush.bf16.msra.mxu0 %v1294
        %1304 = vmatmul.bf16.gmra.mxu0 %v1291
        %v1305 = vpop.f32.mrf.mxu0
        %v1306 = vadd.f32 0.0, %v1305
        %v1307 = vpop.f32.mrf.mxu0
        %1308 = vdwg.mxu0
        %1309 = vrot.lane.b32.xlu0 %v1246, 64
        %v1310 = vpop.permute.xlu0 %1309
        %1311 = vrot.lane.b32.xlu0 %v1251, 64
        %v1312 = vpop.permute.xlu0 %1311
        %v1314 = vsel %vm943, %v1310, 0
        %v1317 = vsel %vm943, %v1312, 0
        %1319 = vmatpush.bf16.xpose.msra.mxu0 0
        %1320 = vmatpush.bf16.xpose.msra.mxu0 0
        %1321 = vmatpush.bf16.xpose.msra.mxu0 0
        %1322 = vmatpush.bf16.xpose.msra.mxu0 0
        %1323 = vmatpush.bf16.xpose.msra.mxu0 0
        %1324 = vmatpush.bf16.xpose.msra.mxu0 0
        %1325 = vmatpush.bf16.xpose.msra.mxu0 0
        %1326 = vmatpush.bf16.xpose.msra.mxu0 %v1317
        %1327 = vmatmul.bf16.gmra.mxu0 %v1314
        %v1328 = vpop.f32.mrf.mxu0
        %v1329 = vadd.f32 0.0, %v1328
        %v1330 = vpop.f32.mrf.mxu0
        %1331 = vdwg.mxu0
        %v1332 = vsel %vm963, %v1329, -inf
        %1333 = vmax.xlane.f32.xlu0 %v1332
        %v1334 = vpop.xlane.xlu0 %1333
        %v1335 = vsub.f32 %v1329, %v1334
        %v1336 = vmul.f32 %v1335, 1.442695
        %v1337 = vpow.pop %v1336
        %v1338 = vsel %vm963, %v1337, 0.0
        %1339 = vadd.xlane.f32.xlu0 %v1338
        %v1340 = vpop.xlane.xlu0 %1339
        %v1341 = vrcp.pop %v1340
        %v1342 = vmul.f32 %v1337, %v1341
        %v1343 = vpack.c.bf16 %v1342, %v1342
        %1344 = vrot.lane.b32.xlu0 %v1287, 64
        %v1345 = vpop.permute.xlu0 %1344
        %v1347 = vsel %vm963, %v1343, 0
        %v1350 = vsel %vm979, %v1345, 0
        %1352 = vmatpush.bf16.msra.mxu0 0
        %1353 = vmatpush.bf16.msra.mxu0 0
        %1354 = vmatpush.bf16.msra.mxu0 0
        %1355 = vmatpush.bf16.msra.mxu0 0
        %1356 = vmatpush.bf16.msra.mxu0 0
        %1357 = vmatpush.bf16.msra.mxu0 0
        %1358 = vmatpush.bf16.msra.mxu0 0
        %1359 = vmatpush.bf16.msra.mxu0 %v1350
        %1360 = vmatmul.bf16.gmra.mxu0 %v1347
        %v1361 = vpop.f32.mrf.mxu0
        %v1362 = vadd.f32 0.0, %v1361
        %v1363 = vpop.f32.mrf.mxu0
        %1364 = vdwg.mxu0
        %1365 = vrot.lane.b32.xlu0 %v1246, 32
        %v1366 = vpop.permute.xlu0 %1365
        %1367 = vrot.lane.b32.xlu0 %v1251, 32
        %v1368 = vpop.permute.xlu0 %1367
        %v1370 = vsel %vm943, %v1366, 0
        %v1373 = vsel %vm943, %v1368, 0
        %1375 = vmatpush.bf16.xpose.msra.mxu0 0
        %1376 = vmatpush.bf16.xpose.msra.mxu0 0
        %1377 = vmatpush.bf16.xpose.msra.mxu0 0
        %1378 = vmatpush.bf16.xpose.msra.mxu0 0
        %1379 = vmatpush.bf16.xpose.msra.mxu0 0
        %1380 = vmatpush.bf16.xpose.msra.mxu0 0
        %1381 = vmatpush.bf16.xpose.msra.mxu0 0
        %1382 = vmatpush.bf16.xpose.msra.mxu0 %v1373
        %1383 = vmatmul.bf16.gmra.mxu0 %v1370
        %v1384 = vpop.f32.mrf.mxu0
        %v1385 = vadd.f32 0.0, %v1384
        %v1386 = vpop.f32.mrf.mxu0
        %1387 = vdwg.mxu0
        %v1388 = vsel %vm963, %v1385, -inf
        %1389 = vmax.xlane.f32.xlu0 %v1388
        %v1390 = vpop.xlane.xlu0 %1389
        %v1391 = vsub.f32 %v1385, %v1390
        %v1392 = vmul.f32 %v1391, 1.442695
        %v1393 = vpow.pop %v1392
        %v1394 = vsel %vm963, %v1393, 0.0
        %1395 = vadd.xlane.f32.xlu0 %v1394
        %v1396 = vpop.xlane.xlu0 %1395
        %v1397 = vrcp.pop %v1396
        %v1398 = vmul.f32 %v1393, %v1397
        %v1399 = vpack.c.bf16 %v1398, %v1398
        %1400 = vrot.lane.b32.xlu0 %v1287, 32
        %v1401 = vpop.permute.xlu0 %1400
        %v1403 = vsel %vm963, %v1399, 0
        %v1406 = vsel %vm979, %v1401, 0
        %1408 = vmatpush.bf16.msra.mxu0 0
        %1409 = vmatpush.bf16.msra.mxu0 0
        %1410 = vmatpush.bf16.msra.mxu0 0
        %1411 = vmatpush.bf16.msra.mxu0 0
        %1412 = vmatpush.bf16.msra.mxu0 0
        %1413 = vmatpush.bf16.msra.mxu0 0
        %1414 = vmatpush.bf16.msra.mxu0 0
        %1415 = vmatpush.bf16.msra.mxu0 %v1406
        %1416 = vmatmul.bf16.gmra.mxu0 %v1403
        %v1417 = vpop.f32.mrf.mxu0
        %v1418 = vadd.f32 0.0, %v1417
        %v1419 = vpop.f32.mrf.mxu0
        %1420 = vdwg.mxu0
        %1422 = vrot.lane.b32.xlu0 %v1306, 32
        %v1423 = vpop.permute.xlu0 %1422
        %1426 = vrot.lane.b32.xlu0 %v1362, 64
        %v1427 = vpop.permute.xlu0 %1426
        %1430 = vrot.lane.b32.xlu0 %v1418, 96
        %v1431 = vpop.permute.xlu0 %1430
        %v1433 = vsel %vm943, %v1241, %v1423
        %v1434 = vsel %vm1186, %v1433, %v1427
        %v1435 = vsel %vm1188, %v1434, %v1431
        %v1436 = vpack.c.bf16 %v1435, %v1189
        %v1437 = vld [vmem:[%s574] sm:$0xf]
        %v1438 = vld [vmem:[%s574 + $0x4] sm:$0xf]
        %v1439 = vld [vmem:[%s574 + $0x8] sm:$0xf]
        %v1440 = vld [vmem:[%s574 + $0xc] sm:$0xf]
        %v1441 = vld [vmem:[%s574 + $0x10] sm:$0xf]
        %v1442 = vld [vmem:[%s574 + $0x14] sm:$0xf]
        %v1443 = vld [vmem:[%s574 + $0x18] sm:$0xf]
        %v1444 = vld [vmem:[%s574 + $0x1c] sm:$0xf]
        %v1445 = vld [vmem:[%s574 + $0x20] sm:$0xf]
        %v1446 = vld [vmem:[%s574 + $0x24] sm:$0xf]
        %v1447 = vld [vmem:[%s574 + $0x28] sm:$0xf]
        %v1448 = vld [vmem:[%s574 + $0x2c] sm:$0xf]
        %v1449 = vld [vmem:[%s574 + $0x30] sm:$0xf]
        %v1450 = vld [vmem:[%s574 + $0x34] sm:$0xf]
        %v1451 = vld [vmem:[%s574 + $0x38] sm:$0xf]
        %v1452 = vld [vmem:[%s574 + $0x3c] sm:$0xf]
        %v1453 = vld [vmem:[%s686] sm:$0x1]
        %v1455 = vperm.slane %v1453, 0
        %v1473 = vunpack.c.l.b16 %v1437
        %v1474 = vunpack.c.l.b16 %v1438
        %v1475 = vunpack.c.l.b16 %v1439
        %v1476 = vunpack.c.l.b16 %v1440
        %v1477 = vunpack.c.l.b16 %v1441
        %v1478 = vunpack.c.l.b16 %v1442
        %v1479 = vunpack.c.l.b16 %v1443
        %v1480 = vunpack.c.l.b16 %v1444
        %v1481 = vunpack.c.l.b16 %v1445
        %v1482 = vunpack.c.l.b16 %v1446
        %v1483 = vunpack.c.l.b16 %v1447
        %v1484 = vunpack.c.l.b16 %v1448
        %v1485 = vunpack.c.l.b16 %v1449
        %v1486 = vunpack.c.l.b16 %v1450
        %v1487 = vunpack.c.l.b16 %v1451
        %v1488 = vunpack.c.l.b16 %v1452
        %v1489 = vpack.c.b16 %v1474, %v1473
        %v1490 = vpack.c.b16 %v1476, %v1475
        %v1491 = vpack.c.b16 %v1478, %v1477
        %v1492 = vpack.c.b16 %v1480, %v1479
        %v1493 = vpack.c.b16 %v1482, %v1481
        %v1494 = vpack.c.b16 %v1484, %v1483
        %v1495 = vpack.c.b16 %v1486, %v1485
        %v1496 = vpack.c.b16 %v1488, %v1487
        %1505 = vmatpush.bf16.msra.mxu0 %v1496
        %1506 = vmatpush.bf16.msra.mxu0 %v1495
        %1507 = vmatpush.bf16.msra.mxu0 %v1494
        %1508 = vmatpush.bf16.msra.mxu0 %v1493
        %1509 = vmatpush.bf16.msra.mxu0 %v1492
        %1510 = vmatpush.bf16.msra.mxu0 %v1491
        %1511 = vmatpush.bf16.msra.mxu0 %v1490
        %1512 = vmatpush.bf16.msra.mxu0 %v1489
        %1513 = vmatmul.bf16.gmra.mxu0 %v1436
        %v1514 = vpop.f32.mrf.mxu0
        %v1515 = vadd.f32 %v1455, %v1514
        %v1516 = vpop.f32.mrf.mxu0
        %v1517 = vadd.f32 %v1455, %v1516
        %1518 = vdwg.mxu0
        %v1519 = vadd.f32 %v726, %v1515
        %v1520 = vadd.f32 %v727, %v1517
        %v1521 = vld [vmem:[%s689] sm:$0x1]
        %v1522 = vld [vmem:[%s692] sm:$0x1]
        %1523 = vadd.xlane.f32.xlu0 %v1519
        %v1524 = vpop.xlane.xlu0 %1523
        %1525 = vadd.xlane.f32.xlu0 %v1520
        %v1526 = vpop.xlane.xlu0 %1525
        %v1527 = vrcp.pop 128.0
        %v1528 = vmul.f32 128.0, %v1527
        %v1529 = vsub.f32 1.0, %v1528
        %v1530 = vmul.f32 %v1527, %v1529
        %v1531 = vadd.f32 %v1527, %v1530
        %vm1532 = vweird.f32 %v1527
        %v1533 = vsel %vm1532, %v1527, %v1531
        %v1534 = vmul.f32 %v1524, %v1533
        %v1535 = vmul.f32 %v1526, %v1533
        %v1536 = vsub.f32 %v1519, %v1534
        %v1537 = vsub.f32 %v1520, %v1535
        %v1538 = vmul.f32 %v1536, %v1536
        %v1539 = vmul.f32 %v1537, %v1537
        %1540 = vadd.xlane.f32.xlu0 %v1538
        %v1541 = vpop.xlane.xlu0 %1540
        %1542 = vadd.xlane.f32.xlu0 %v1539
        %v1543 = vpop.xlane.xlu0 %1542
        %v1544 = vmul.f32 %v1541, %v1533
        %v1545 = vmul.f32 %v1543, %v1533
        %v1546 = vadd.f32 %v1544, 1e-05
        %v1547 = vadd.f32 %v1545, 1e-05
        %v1548 = vrsqrt.pop %v1546
        %v1549 = vmul.f32 %v1548, %v1546
        %v1550 = vmul.f32 %v1549, %v1548
        %v1551 = vmul.f32 0.5, %v1550
        %v1552 = vsub.f32 1.5, %v1551
        %v1553 = vmul.f32 %v1548, %v1552
        %vm1554 = vweird.f32 %v1546
        %vm1555 = vweird.f32 %v1548
        %vm1556 = vmor %vm1554, %vm1555
        %v1557 = vsel %vm1556, %v1548, %v1553
        %v1558 = vrsqrt.pop %v1547
        %v1559 = vmul.f32 %v1558, %v1547
        %v1560 = vmul.f32 %v1559, %v1558
        %v1561 = vmul.f32 0.5, %v1560
        %v1562 = vsub.f32 1.5, %v1561
        %v1563 = vmul.f32 %v1558, %v1562
        %vm1564 = vweird.f32 %v1547
        %vm1565 = vweird.f32 %v1558
        %vm1566 = vmor %vm1564, %vm1565
        %v1567 = vsel %vm1566, %v1558, %v1563
        %v1568 = vmul.f32 %v1536, %v1557
        %v1569 = vmul.f32 %v1537, %v1567
        %v1571 = vperm.slane %v1521, 0
        %v1573 = vmul.f32 %v1568, %v1571
        %v1574 = vmul.f32 %v1569, %v1571
        %v1576 = vperm.slane %v1522, 0
        %v1578 = vadd.f32 %v1573, %v1576
        %v1579 = vadd.f32 %v1574, %v1576
        %v1580 = vpack.c.bf16 %v1579, %v1578
        %v1581 = vld [vmem:[%s697] sm:$0xff]
        %v1582 = vld [vmem:[%s697 + $0x8] sm:$0xff]
        %v1583 = vld [vmem:[%s697 + $0x10] sm:$0xff]
        %v1584 = vld [vmem:[%s697 + $0x18] sm:$0xff]
        %v1585 = vld [vmem:[%s697 + $0x20] sm:$0xff]
        %v1586 = vld [vmem:[%s697 + $0x28] sm:$0xff]
        %v1587 = vld [vmem:[%s697 + $0x30] sm:$0xff]
        %v1588 = vld [vmem:[%s697 + $0x38] sm:$0xff]
        %v1589 = vld [vmem:[%s697 + $0x40] sm:$0xff]
        %v1590 = vld [vmem:[%s697 + $0x48] sm:$0xff]
        %v1591 = vld [vmem:[%s697 + $0x50] sm:$0xff]
        %v1592 = vld [vmem:[%s697 + $0x58] sm:$0xff]
        %v1593 = vld [vmem:[%s697 + $0x60] sm:$0xff]
        %v1594 = vld [vmem:[%s697 + $0x68] sm:$0xff]
        %v1595 = vld [vmem:[%s697 + $0x70] sm:$0xff]
        %v1596 = vld [vmem:[%s697 + $0x78] sm:$0xff]
        %v1597 = vld [vmem:[%s701] sm:$0x3]
        %v1599 = vperm.slane %v1597, 0
        %v1600 = vperm.slane %v1597, 1
        %v1619 = vunpack.c.l.b16 %v1581
        %v1620 = vunpack.c.h.b16 %v1581
        %v1621 = vunpack.c.l.b16 %v1582
        %v1622 = vunpack.c.h.b16 %v1582
        %v1623 = vunpack.c.l.b16 %v1583
        %v1624 = vunpack.c.h.b16 %v1583
        %v1625 = vunpack.c.l.b16 %v1584
        %v1626 = vunpack.c.h.b16 %v1584
        %v1627 = vunpack.c.l.b16 %v1585
        %v1628 = vunpack.c.h.b16 %v1585
        %v1629 = vunpack.c.l.b16 %v1586
        %v1630 = vunpack.c.h.b16 %v1586
        %v1631 = vunpack.c.l.b16 %v1587
        %v1632 = vunpack.c.h.b16 %v1587
        %v1633 = vunpack.c.l.b16 %v1588
        %v1634 = vunpack.c.h.b16 %v1588
        %v1635 = vunpack.c.l.b16 %v1589
        %v1636 = vunpack.c.h.b16 %v1589
        %v1637 = vunpack.c.l.b16 %v1590
        %v1638 = vunpack.c.h.b16 %v1590
        %v1639 = vunpack.c.l.b16 %v1591
        %v1640 = vunpack.c.h.b16 %v1591
        %v1641 = vunpack.c.l.b16 %v1592
        %v1642 = vunpack.c.h.b16 %v1592
        %v1643 = vunpack.c.l.b16 %v1593
        %v1644 = vunpack.c.h.b16 %v1593
        %v1645 = vunpack.c.l.b16 %v1594
        %v1646 = vunpack.c.h.b16 %v1594
        %v1647 = vunpack.c.l.b16 %v1595
        %v1648 = vunpack.c.h.b16 %v1595
        %v1649 = vunpack.c.l.b16 %v1596
        %v1650 = vunpack.c.h.b16 %v1596
        %v1651 = vpack.c.b16 %v1621, %v1619
        %v1652 = vpack.c.b16 %v1622, %v1620
        %v1653 = vpack.c.b16 %v1625, %v1623
        %v1654 = vpack.c.b16 %v1626, %v1624
        %v1655 = vpack.c.b16 %v1629, %v1627
        %v1656 = vpack.c.b16 %v1630, %v1628
        %v1657 = vpack.c.b16 %v1633, %v1631
        %v1658 = vpack.c.b16 %v1634, %v1632
        %v1659 = vpack.c.b16 %v1637, %v1635
        %v1660 = vpack.c.b16 %v1638, %v1636
        %v1661 = vpack.c.b16 %v1641, %v1639
        %v1662 = vpack.c.b16 %v1642, %v1640
        %v1663 = vpack.c.b16 %v1645, %v1643
        %v1664 = vpack.c.b16 %v1646, %v1644
        %v1665 = vpack.c.b16 %v1649, %v1647
        %v1666 = vpack.c.b16 %v1650, %v1648
        %1683 = vmatpush.bf16.msra.mxu0 %v1665
        %1684 = vmatpush.bf16.msra.mxu0 %v1663
        %1685 = vmatpush.bf16.msra.mxu0 %v1661
        %1686 = vmatpush.bf16.msra.mxu0 %v1659
        %1687 = vmatpush.bf16.msra.mxu0 %v1657
        %1688 = vmatpush.bf16.msra.mxu0 %v1655
        %1689 = vmatpush.bf16.msra.mxu0 %v1653
        %1690 = vmatpush.bf16.msra.mxu0 %v1651
        %1691 = vmatmul.bf16.gmra.mxu0 %v1580
        %v1692 = vpop.f32.mrf.mxu0
        %v1693 = vadd.f32 %v1599, %v1692
        %v1694 = vpop.f32.mrf.mxu0
        %v1695 = vadd.f32 %v1599, %v1694
        %1696 = vdwg.mxu0
        %1697 = vmatpush.bf16.msra.mxu0 %v1666
        %1698 = vmatpush.bf16.msra.mxu0 %v1664
        %1699 = vmatpush.bf16.msra.mxu0 %v1662
        %1700 = vmatpush.bf16.msra.mxu0 %v1660
        %1701 = vmatpush.bf16.msra.mxu0 %v1658
        %1702 = vmatpush.bf16.msra.mxu0 %v1656
        %1703 = vmatpush.bf16.msra.mxu0 %v1654
        %1704 = vmatpush.bf16.msra.mxu0 %v1652
        %1705 = vmatmul.bf16.gmra.mxu0 %v1580
        %v1706 = vpop.f32.mrf.mxu0
        %v1707 = vadd.f32 %v1600, %v1706
        %v1708 = vpop.f32.mrf.mxu0
        %v1709 = vadd.f32 %v1600, %v1708
        %1710 = vdwg.mxu0
        %v1711 = vmul.f32 %v1693, 0.5
        %v1712 = vmul.f32 %v1707, 0.5
        %v1713 = vmul.f32 %v1695, 0.5
        %v1714 = vmul.f32 %v1709, 0.5
        %v1715 = vmul.f32 %v1693, 0.70710677
        %v1716 = vmul.f32 %v1707, 0.70710677
        %v1717 = vmul.f32 %v1695, 0.70710677
        %v1718 = vmul.f32 %v1709, 0.70710677
        %vm1719 = vcmp.ge.f32.partialorder %v1715, 0.0
        %vm1720 = vcmp.ge.f32.partialorder %v1716, 0.0
        %vm1721 = vcmp.ge.f32.partialorder %v1717, 0.0
        %vm1722 = vcmp.ge.f32.partialorder %v1718, 0.0
        %v1723 = vsel %vm1719, 1.0, -1.0
        %v1724 = vsel %vm1720, 1.0, -1.0
        %v1725 = vsel %vm1721, 1.0, -1.0
        %v1726 = vsel %vm1722, 1.0, -1.0
        %v1727 = vand.u32 2147483647, %v1715
        %v1728 = vand.u32 2147483647, %v1716
        %v1729 = vand.u32 2147483647, %v1717
        %v1730 = vand.u32 2147483647, %v1718
        %v1731 = vmul.f32 %v1727, 0.3275911
        %v1732 = vmul.f32 %v1728, 0.3275911
        %v1733 = vmul.f32 %v1729, 0.3275911
        %v1734 = vmul.f32 %v1730, 0.3275911
        %v1735 = vadd.f32 %v1731, 1.0
        %v1736 = vadd.f32 %v1732, 1.0
        %v1737 = vadd.f32 %v1733, 1.0
        %v1738 = vadd.f32 %v1734, 1.0
        %v1739 = vrcp.pop %v1735
        %v1740 = vmul.f32 %v1735, %v1739
        %v1741 = vsub.f32 1.0, %v1740
        %v1742 = vmul.f32 %v1739, %v1741
        %v1743 = vadd.f32 %v1739, %v1742
        %vm1744 = vweird.f32 %v1735
        %vm1745 = vweird.f32 %v1739
        %vm1746 = vmor %vm1744, %vm1745
        %v1747 = vsel %vm1746, %v1739, %v1743
        %v1748 = vand.u32 2147483647, %v1735
        %vm1749 = vcmp.eq.f32.partialorder %v1748, 8.507059e+37
        %v1750 = vand.u32 %v1735, 2147483648
        %v1751 = vor.u32 1.1754944e-38, %v1750
        %v1752 = vsel %vm1749, %v1751, %v1747
        %v1753 = vmul.f32 1.0, %v1752
        %v1754 = vrcp.pop %v1736
        %v1755 = vmul.f32 %v1736, %v1754
        %v1756 = vsub.f32 1.0, %v1755
        %v1757 = vmul.f32 %v1754, %v1756
        %v1758 = vadd.f32 %v1754, %v1757
        %vm1759 = vweird.f32 %v1736
        %vm1760 = vweird.f32 %v1754
        %vm1761 = vmor %vm1759, %vm1760
        %v1762 = vsel %vm1761, %v1754, %v1758
        %v1763 = vand.u32 2147483647, %v1736
        %vm1764 = vcmp.eq.f32.partialorder %v1763, 8.507059e+37
        %v1765 = vand.u32 %v1736, 2147483648
        %v1766 = vor.u32 1.1754944e-38, %v1765
        %v1767 = vsel %vm1764, %v1766, %v1762
        %v1768 = vmul.f32 1.0, %v1767
        %v1769 = vrcp.pop %v1737
        %v1770 = vmul.f32 %v1737, %v1769
        %v1771 = vsub.f32 1.0, %v1770
        %v1772 = vmul.f32 %v1769, %v1771
        %v1773 = vadd.f32 %v1769, %v1772
        %vm1774 = vweird.f32 %v1737
        %vm1775 = vweird.f32 %v1769
        %vm1776 = vmor %vm1774, %vm1775
        %v1777 = vsel %vm1776, %v1769, %v1773
        %v1778 = vand.u32 2147483647, %v1737
        %vm1779 = vcmp.eq.f32.partialorder %v1778, 8.507059e+37
        %v1780 = vand.u32 %v1737, 2147483648
        %v1781 = vor.u32 1.1754944e-38, %v1780
        %v1782 = vsel %vm1779, %v1781, %v1777
        %v1783 = vmul.f32 1.0, %v1782
        %v1784 = vrcp.pop %v1738
        %v1785 = vmul.f32 %v1738, %v1784
        %v1786 = vsub.f32 1.0, %v1785
        %v1787 = vmul.f32 %v1784, %v1786
        %v1788 = vadd.f32 %v1784, %v1787
        %vm1789 = vweird.f32 %v1738
        %vm1790 = vweird.f32 %v1784
        %vm1791 = vmor %vm1789, %vm1790
        %v1792 = vsel %vm1791, %v1784, %v1788
        %v1793 = vand.u32 2147483647, %v1738
        %vm1794 = vcmp.eq.f32.partialorder %v1793, 8.507059e+37
        %v1795 = vand.u32 %v1738, 2147483648
        %v1796 = vor.u32 1.1754944e-38, %v1795
        %v1797 = vsel %vm1794, %v1796, %v1792
        %v1798 = vmul.f32 1.0, %v1797
        %v1799 = vmul.f32 %v1753, 1.0614054
        %v1800 = vmul.f32 %v1768, 1.0614054
        %v1801 = vmul.f32 %v1783, 1.0614054
        %v1802 = vmul.f32 %v1798, 1.0614054
        %v1803 = vadd.f32 %v1799, -1.4531521
        %v1804 = vadd.f32 %v1800, -1.4531521
        %v1805 = vadd.f32 %v1801, -1.4531521
        %v1806 = vadd.f32 %v1802, -1.4531521
        %v1807 = vmul.f32 %v1803, %v1753
        %v1808 = vmul.f32 %v1804, %v1768
        %v1809 = vmul.f32 %v1805, %v1783
        %v1810 = vmul.f32 %v1806, %v1798
        %v1811 = vadd.f32 %v1807, 1.4214138
        %v1812 = vadd.f32 %v1808, 1.4214138
        %v1813 = vadd.f32 %v1809, 1.4214138
        %v1814 = vadd.f32 %v1810, 1.4214138
        %v1815 = vmul.f32 %v1811, %v1753
        %v1816 = vmul.f32 %v1812, %v1768
        %v1817 = vmul.f32 %v1813, %v1783
        %v1818 = vmul.f32 %v1814, %v1798
        %v1819 = vadd.f32 %v1815, -0.28449672
        %v1820 = vadd.f32 %v1816, -0.28449672
        %v1821 = vadd.f32 %v1817, -0.28449672
        %v1822 = vadd.f32 %v1818, -0.28449672
        %v1823 = vmul.f32 %v1819, %v1753
        %v1824 = vmul.f32 %v1820, %v1768
        %v1825 = vmul.f32 %v1821, %v1783
        %v1826 = vmul.f32 %v1822, %v1798
        %v1827 = vadd.f32 %v1823, 0.2548296
        %v1828 = vadd.f32 %v1824, 0.2548296
        %v1829 = vadd.f32 %v1825, 0.2548296
        %v1830 = vadd.f32 %v1826, 0.2548296
        %v1831 = vmul.f32 %v1827, %v1753
        %v1832 = vmul.f32 %v1828, %v1768
        %v1833 = vmul.f32 %v1829, %v1783
        %v1834 = vmul.f32 %v1830, %v1798
        %v1835 = vsub.f32 0.0, %v1727
        %v1836 = vsub.f32 0.0, %v1728
        %v1837 = vsub.f32 0.0, %v1729
        %v1838 = vsub.f32 0.0, %v1730
        %v1839 = vmul.f32 %v1835, %v1727
        %v1840 = vmul.f32 %v1836, %v1728
        %v1841 = vmul.f32 %v1837, %v1729
        %v1842 = vmul.f32 %v1838, %v1730
        %v1843 = vmul.f32 %v1839, 1.442695
        %v1844 = vpow.pop %v1843
        %v1845 = vmul.f32 %v1840, 1.442695
        %v1846 = vpow.pop %v1845
        %v1847 = vmul.f32 %v1841, 1.442695
        %v1848 = vpow.pop %v1847
        %v1849 = vmul.f32 %v1842, 1.442695
        %v1850 = vpow.pop %v1849
        %v1851 = vmul.f32 %v1831, %v1844
        %v1852 = vmul.f32 %v1832, %v1846
        %v1853 = vmul.f32 %v1833, %v1848
        %v1854 = vmul.f32 %v1834, %v1850
        %v1855 = vsub.f32 1.0, %v1851
        %v1856 = vsub.f32 1.0, %v1852
        %v1857 = vsub.f32 1.0, %v1853
        %v1858 = vsub.f32 1.0, %v1854
        %v1859 = vmul.f32 %v1723, %v1855
        %v1860 = vmul.f32 %v1724, %v1856
        %v1861 = vmul.f32 %v1725, %v1857
        %v1862 = vmul.f32 %v1726, %v1858
        %v1863 = vadd.f32 %v1859, 1.0
        %v1864 = vadd.f32 %v1860, 1.0
        %v1865 = vadd.f32 %v1861, 1.0
        %v1866 = vadd.f32 %v1862, 1.0
        %v1867 = vmul.f32 %v1711, %v1863
        %v1868 = vmul.f32 %v1712, %v1864
        %v1869 = vmul.f32 %v1713, %v1865
        %v1870 = vmul.f32 %v1714, %v1866
        %v1871 = vpack.c.bf16 %v1869, %v1867
        %v1872 = vpack.c.bf16 %v1870, %v1868
        %v1873 = vld [vmem:[%s584] sm:$0xf]
        %v1874 = vld [vmem:[%s584 + $0x4] sm:$0xf]
        %v1875 = vld [vmem:[%s584 + $0x8] sm:$0xf]
        %v1876 = vld [vmem:[%s584 + $0xc] sm:$0xf]
        %v1877 = vld [vmem:[%s584 + $0x10] sm:$0xf]
        %v1878 = vld [vmem:[%s584 + $0x14] sm:$0xf]
        %v1879 = vld [vmem:[%s584 + $0x18] sm:$0xf]
        %v1880 = vld [vmem:[%s584 + $0x1c] sm:$0xf]
        %v1881 = vld [vmem:[%s584 + $0x20] sm:$0xf]
        %v1882 = vld [vmem:[%s584 + $0x24] sm:$0xf]
        %v1883 = vld [vmem:[%s584 + $0x28] sm:$0xf]
        %v1884 = vld [vmem:[%s584 + $0x2c] sm:$0xf]
        %v1885 = vld [vmem:[%s584 + $0x30] sm:$0xf]
        %v1886 = vld [vmem:[%s584 + $0x34] sm:$0xf]
        %v1887 = vld [vmem:[%s584 + $0x38] sm:$0xf]
        %v1888 = vld [vmem:[%s584 + $0x3c] sm:$0xf]
        %v1889 = vld [vmem:[%s584 + $0x40] sm:$0xf]
        %v1890 = vld [vmem:[%s584 + $0x44] sm:$0xf]
        %v1891 = vld [vmem:[%s584 + $0x48] sm:$0xf]
        %v1892 = vld [vmem:[%s584 + $0x4c] sm:$0xf]
        %v1893 = vld [vmem:[%s584 + $0x50] sm:$0xf]
        %v1894 = vld [vmem:[%s584 + $0x54] sm:$0xf]
        %v1895 = vld [vmem:[%s584 + $0x58] sm:$0xf]
        %v1896 = vld [vmem:[%s584 + $0x5c] sm:$0xf]
        %v1897 = vld [vmem:[%s584 + $0x60] sm:$0xf]
        %v1898 = vld [vmem:[%s584 + $0x64] sm:$0xf]
        %v1899 = vld [vmem:[%s584 + $0x68] sm:$0xf]
        %v1900 = vld [vmem:[%s584 + $0x6c] sm:$0xf]
        %v1901 = vld [vmem:[%s584 + $0x70] sm:$0xf]
        %v1902 = vld [vmem:[%s584 + $0x74] sm:$0xf]
        %v1903 = vld [vmem:[%s584 + $0x78] sm:$0xf]
        %v1904 = vld [vmem:[%s584 + $0x7c] sm:$0xf]
        %v1905 = vld [vmem:[%s704] sm:$0x1]
        %v1907 = vperm.slane %v1905, 0
        %v1941 = vunpack.c.l.b16 %v1873
        %v1942 = vunpack.c.l.b16 %v1874
        %v1943 = vunpack.c.l.b16 %v1875
        %v1944 = vunpack.c.l.b16 %v1876
        %v1945 = vunpack.c.l.b16 %v1877
        %v1946 = vunpack.c.l.b16 %v1878
        %v1947 = vunpack.c.l.b16 %v1879
        %v1948 = vunpack.c.l.b16 %v1880
        %v1949 = vunpack.c.l.b16 %v1881
        %v1950 = vunpack.c.l.b16 %v1882
        %v1951 = vunpack.c.l.b16 %v1883
        %v1952 = vunpack.c.l.b16 %v1884
        %v1953 = vunpack.c.l.b16 %v1885
        %v1954 = vunpack.c.l.b16 %v1886
        %v1955 = vunpack.c.l.b16 %v1887
        %v1956 = vunpack.c.l.b16 %v1888
        %v1957 = vunpack.c.l.b16 %v1889
        %v1958 = vunpack.c.l.b16 %v1890
        %v1959 = vunpack.c.l.b16 %v1891
        %v1960 = vunpack.c.l.b16 %v1892
        %v1961 = vunpack.c.l.b16 %v1893
        %v1962 = vunpack.c.l.b16 %v1894
        %v1963 = vunpack.c.l.b16 %v1895
        %v1964 = vunpack.c.l.b16 %v1896
        %v1965 = vunpack.c.l.b16 %v1897
        %v1966 = vunpack.c.l.b16 %v1898
        %v1967 = vunpack.c.l.b16 %v1899
        %v1968 = vunpack.c.l.b16 %v1900
        %v1969 = vunpack.c.l.b16 %v1901
        %v1970 = vunpack.c.l.b16 %v1902
        %v1971 = vunpack.c.l.b16 %v1903
        %v1972 = vunpack.c.l.b16 %v1904
        %v1973 = vpack.c.b16 %v1942, %v1941
        %v1974 = vpack.c.b16 %v1944, %v1943
        %v1975 = vpack.c.b16 %v1946, %v1945
        %v1976 = vpack.c.b16 %v1948, %v1947
        %v1977 = vpack.c.b16 %v1950, %v1949
        %v1978 = vpack.c.b16 %v1952, %v1951
        %v1979 = vpack.c.b16 %v1954, %v1953
        %v1980 = vpack.c.b16 %v1956, %v1955
        %v1981 = vpack.c.b16 %v1958, %v1957
        %v1982 = vpack.c.b16 %v1960, %v1959
        %v1983 = vpack.c.b16 %v1962, %v1961
        %v1984 = vpack.c.b16 %v1964, %v1963
        %v1985 = vpack.c.b16 %v1966, %v1965
        %v1986 = vpack.c.b16 %v1968, %v1967
        %v1987 = vpack.c.b16 %v1970, %v1969
        %v1988 = vpack.c.b16 %v1972, %v1971
        %2005 = vmatpush.bf16.msra.mxu0 %v1980
        %2006 = vmatpush.bf16.msra.mxu0 %v1979
        %2007 = vmatpush.bf16.msra.mxu0 %v1978
        %2008 = vmatpush.bf16.msra.mxu0 %v1977
        %2009 = vmatpush.bf16.msra.mxu0 %v1976
        %2010 = vmatpush.bf16.msra.mxu0 %v1975
        %2011 = vmatpush.bf16.msra.mxu0 %v1974
        %2012 = vmatpush.bf16.msra.mxu0 %v1973
        %2013 = vmatmul.bf16.gmra.mxu0 %v1871
        %v2014 = vpop.f32.mrf.mxu0
        %v2015 = vadd.f32 %v1907, %v2014
        %v2016 = vpop.f32.mrf.mxu0
        %v2017 = vadd.f32 %v1907, %v2016
        %2018 = vdwg.mxu0
        %2019 = vmatpush.bf16.msra.mxu0 %v1988
        %2020 = vmatpush.bf16.msra.mxu0 %v1987
        %2021 = vmatpush.bf16.msra.mxu0 %v1986
        %2022 = vmatpush.bf16.msra.mxu0 %v1985
        %2023 = vmatpush.bf16.msra.mxu0 %v1984
        %2024 = vmatpush.bf16.msra.mxu0 %v1983
        %2025 = vmatpush.bf16.msra.mxu0 %v1982
        %2026 = vmatpush.bf16.msra.mxu0 %v1981
        %2027 = vmatmul.bf16.gmra.mxu0 %v1872
        %v2028 = vpop.f32.mrf.mxu0
        %v2029 = vadd.f32 %v2015, %v2028
        %v2030 = vpop.f32.mrf.mxu0
        %v2031 = vadd.f32 %v2017, %v2030
        %2032 = vdwg.mxu0
        %v2033 = vadd.f32 %v2029, %v1578
        %v2034 = vadd.f32 %v2031, %v1579
        %v2035 = vld [vmem:[%s707] sm:$0x1]
        %v2036 = vld [vmem:[%s710] sm:$0x1]
        %2037 = vadd.xlane.f32.xlu0 %v2033
        %v2038 = vpop.xlane.xlu0 %2037
        %2039 = vadd.xlane.f32.xlu0 %v2034
        %v2040 = vpop.xlane.xlu0 %2039
        %v2041 = vmul.f32 %v2038, %v1533
        %v2042 = vmul.f32 %v2040, %v1533
        %v2043 = vsub.f32 %v2033, %v2041
        %v2044 = vsub.f32 %v2034, %v2042
        %v2045 = vmul.f32 %v2043, %v2043
        %v2046 = vmul.f32 %v2044, %v2044
        %2047 = vadd.xlane.f32.xlu0 %v2045
        %v2048 = vpop.xlane.xlu0 %2047
        %2049 = vadd.xlane.f32.xlu0 %v2046
        %v2050 = vpop.xlane.xlu0 %2049
        %v2051 = vmul.f32 %v2048, %v1533
        %v2052 = vmul.f32 %v2050, %v1533
        %v2053 = vadd.f32 %v2051, 1e-05
        %v2054 = vadd.f32 %v2052, 1e-05
        %v2055 = vrsqrt.pop %v2053
        %v2056 = vmul.f32 %v2055, %v2053
        %v2057 = vmul.f32 %v2056, %v2055
        %v2058 = vmul.f32 0.5, %v2057
        %v2059 = vsub.f32 1.5, %v2058
        %v2060 = vmul.f32 %v2055, %v2059
        %vm2061 = vweird.f32 %v2053
        %vm2062 = vweird.f32 %v2055
        %vm2063 = vmor %vm2061, %vm2062
        %v2064 = vsel %vm2063, %v2055, %v2060
        %v2065 = vrsqrt.pop %v2054
        %v2066 = vmul.f32 %v2065, %v2054
        %v2067 = vmul.f32 %v2066, %v2065
        %v2068 = vmul.f32 0.5, %v2067
        %v2069 = vsub.f32 1.5, %v2068
        %v2070 = vmul.f32 %v2065, %v2069
        %vm2071 = vweird.f32 %v2054
        %vm2072 = vweird.f32 %v2065
        %vm2073 = vmor %vm2071, %vm2072
        %v2074 = vsel %vm2073, %v2065, %v2070
        %v2075 = vmul.f32 %v2043, %v2064
        %v2076 = vmul.f32 %v2044, %v2074
        %v2078 = vperm.slane %v2035, 0
        %v2080 = vmul.f32 %v2075, %v2078
        %v2081 = vmul.f32 %v2076, %v2078
        %v2083 = vperm.slane %v2036, 0
        %v2085 = vadd.f32 %v2080, %v2083
        %v2086 = vadd.f32 %v2081, %v2083
        %2087 = vst [vmem:[%s715] sm:$0xff] %v2085
        %2088 = vst [vmem:[%s715 + $0x8] sm:$0xff] %v2086
        %s2089 = smul.u32 2, %s34
        %p2090 = scmp.lt.s32.totalorder %s2089, 1
        %s2091 = scalar_select %p2090, %s2089, 1
        %s2092 = smul.addr %s2091, 8
        %s2093 = scalar_lea.vmem %s13, %s2092
        // Predicated region
        $region89: #{bert_forward.4} parent=71 // pred_check
          %p2094 = pneg %p398
        $region90: #{bert_forward.4} parent=71 // pred_check_branch
          %2096 = sbr.rel (%p2094) target = $region92
        $region91: #{bert_forward.4} parent=71 // pred_region
          %s2097 = smul.u32 2, %s34
        $region92: #{bert_forward.4} parent=71 // pred_fallthru
          _
        // Predicated region
        $region93: #{bert_forward.4} parent=71 // pred_check
          %p2098 = pneg %p398
        $region94: #{bert_forward.4} parent=71 // pred_check_branch
          %2100 = sbr.rel (%p2098) target = $region96
        $region95: #{bert_forward.4} parent=71 // pred_region
          %s2101 = smul.u32 2, %s34
          %p2102 = scmp.lt.s32.totalorder %s2101, 1
          %s2103 = scalar_select %p2102, %s2101, 1
          %s2104 = smul.addr %s2103, 8
          %s2105 = scalar_lea.vmem %s13, %s2104
        $region96: #{bert_forward.4} parent=71 // pred_fallthru
          _
      $region72: #{bert_forward.4} parent=5 // pred_fallthru
        _
      %p2106 = scmp.le.s32.totalorder 2, %s25
      // Predicated region
      $region97: #{bert_forward.4} parent=5 // pred_check
        %p2107 = pneg %p2106
      $region98: #{bert_forward.4} parent=5 // pred_check_branch
        %2109 = sbr.rel (%p2107) target = $region100
      $region99: #{bert_forward.4} parent=5 // pred_region
        %s2110 = ssub.s32 %s25, 2
      $region100: #{bert_forward.4} parent=5 // pred_fallthru
        _
    $region6: #{bert_forward.4} parent=1 // loop_footer
      %s29 = sadd.s32 1, %s25
    $region7: #{bert_forward.4} parent=1 // loop_footer_branch
      %24 = sbr.rel target = $region3
    $region8: #{bert_forward.4} parent=1 // loop_exit
      _
    %2111 = vsyncpa [#allocation3], 1
    %s2112 = scalar_lea.sflag [#allocation3], 1
    %2113 = vsyncpa %s2112, 1
    %2114 = vsyncpa [#allocation5], 1
    %s2115 = scalar_lea.sflag [#allocation5], 1
    %2116 = vsyncpa %s2115, 1

</llo_original>
